<compile_context>
chip_gen: v6e
topology: v6e:2x2x1
jax: 0.10.0
libtpu: 0.0.40
codegen_flags: <defaults>
</compile_context>

<pallas_src>
import functools

import jax
import jax.numpy as jnp
from jax.experimental import pallas as pl
from jax.experimental.pallas import tpu as pltpu

QUANT_BLOCK = 128  # DeepSeek-style 128x128 per-block scales


# --------------------------------------------------------------------------- #
# Kernels
# --------------------------------------------------------------------------- #
def _subblock_kernel(x_ref, w_ref, s_ref, o_ref, acc_ref,
                     *, n_sub, k_sub, kb_total):
    """Exact path (v4/v5e): 128x128 dots, scale folded into the f32 accumulation."""
    # grid = (M/tm, N/tn, K/tk); reduction axis (k) last.
    j = pl.program_id(1)
    k = pl.program_id(2)

    @pl.when(k == 0)
    def _():
        acc_ref[...] = jnp.zeros_like(acc_ref)

    tm = x_ref.shape[0]
    for ns in range(n_sub):              # static, unrolled: output-feature sub-blocks
        n0 = ns * QUANT_BLOCK
        # Accumulate this (tm, 128) output sub-block in vregs across the ks loop;
        # a single acc_ref read-modify-write per ns instead of per (ns, ks).
        local = jnp.zeros((tm, QUANT_BLOCK), jnp.float32)
        for ks in range(k_sub):          # static, unrolled: reduction sub-blocks
            k0 = ks * QUANT_BLOCK
            # flat index into the 1D SMEM scale table: n_blk * KB + k_blk
            scale = s_ref[(j * n_sub + ns) * kb_total + (k * k_sub + ks)]
            w_blk = w_ref[n0:n0 + QUANT_BLOCK,
                          k0:k0 + QUANT_BLOCK].astype(jnp.bfloat16)
            x_blk = x_ref[:, k0:k0 + QUANT_BLOCK]
            # (tm, 128) x (tn=128, 128) contracted on K -> (tm, 128) on the MXU;
            # scale folded into the f32 contribution (exact w.r.t. fp8 values).
            local = local + scale * jax.lax.dot_general(
                x_blk, w_blk,
                dimension_numbers=(((1,), (1,)), ((), ())),
                preferred_element_type=jnp.float32)
        acc_ref[:, n0:n0 + QUANT_BLOCK] += local

    @pl.when(k == pl.num_programs(2) - 1)
    def _():
        o_ref[...] = acc_ref[...].astype(o_ref.dtype)


def _dequant_kernel(x_ref, w_ref, s_ref, o_ref, acc_ref, w_deq_ref,
                    *, n_sub, k_sub, kb_total):
    """Big-MXU path (v6e/v7x): dequantize the fp8 tile into bf16 scratch, one big dot.

    Introduces bf16 rounding of the *scaled* weights (negligible vs. fp8 quant
    error) in exchange for a full-width (tm,tk)x(tk->tn) matmul that keeps the
    256x256 MXUs fully fed.
    """
    j = pl.program_id(1)
    k = pl.program_id(2)

    @pl.when(k == 0)
    def _():
        acc_ref[...] = jnp.zeros_like(acc_ref)

    # Scale application fused with the fp8 -> bf16 widen, written once per
    # 128x128 quant sub-block into the bf16 scratch tile.
    for ns in range(n_sub):
        n0 = ns * QUANT_BLOCK
        for ks in range(k_sub):
            k0 = ks * QUANT_BLOCK
            scale = s_ref[(j * n_sub + ns) * kb_total + (k * k_sub + ks)]
            w_deq_ref[n0:n0 + QUANT_BLOCK, k0:k0 + QUANT_BLOCK] = (
                w_ref[n0:n0 + QUANT_BLOCK, k0:k0 + QUANT_BLOCK].astype(jnp.float32)
                * scale).astype(jnp.bfloat16)

    acc_ref[...] += jax.lax.dot_general(
        x_ref[...], w_deq_ref[...],
        dimension_numbers=(((1,), (1,)), ((), ())),
        preferred_element_type=jnp.float32)

    @pl.when(k == pl.num_programs(2) - 1)
    def _():
        o_ref[...] = acc_ref[...].astype(o_ref.dtype)


# --------------------------------------------------------------------------- #
# Wrapper
# --------------------------------------------------------------------------- #
def _tpu_generation():
    try:
        kind = jax.devices()[0].device_kind.lower()
    except Exception:
        return None
    for gen in (7, 6, 5, 4):
        if (f"v{gen}" in kind) or (f"tpu{gen}" in kind):
            return gen
    return None


def _largest_tile(dim, cap):
    """Largest multiple of QUANT_BLOCK <= cap dividing dim (dim % 128 == 0 assumed)."""
    if dim <= cap:
        return dim
    t = (cap // QUANT_BLOCK) * QUANT_BLOCK
    while t > QUANT_BLOCK and dim % t != 0:
        t -= QUANT_BLOCK
    return t


def _vmem_bytes(tm, tn, tk, dequant):
    # double-buffered x(bf16) + w(fp8) + out(bf16), plus f32 acc (+ bf16 deq scratch)
    b = 2 * (tm * tk * 2 + tn * tk * 1 + tm * tn * 2) + tm * tn * 4
    if dequant:
        b += tn * tk * 2
    return b


def packed_block_linear(x, weight_packed, weight_scale_inv,
                        *, tm=None, tn=None, tk=None, variant="auto"):
    """x: (M, K) bf16; weight_packed: (N, K) float8_e4m3fn;
    weight_scale_inv: (N/128, K/128) f32.  Returns (M, N) bf16."""
    M, K = x.shape
    N, K2 = weight_packed.shape
    assert K == K2
    assert N % QUANT_BLOCK == 0 and K % QUANT_BLOCK == 0
    NB, KB = N // QUANT_BLOCK, K // QUANT_BLOCK
    assert weight_scale_inv.shape == (NB, KB)

    gen = _tpu_generation()
    if variant == "auto":
        # v4/v5e MXUs are 128x128 -> the exact sub-block path already saturates
        # them; v6e/v7x MXUs are 256x256 -> dequant + single big matmul.
        variant = "subblock" if (gen is not None and gen <= 5) else "dequant"
    assert variant in ("subblock", "dequant")
    dequant = variant == "dequant"

    # Per-generation scoped-VMEM budget: v7x has only 64 MiB physical VMEM.
    vmem_limit = (48 if (gen == 7 or gen is None) else 64) * 1024 * 1024

    # ---- tile defaults ------------------------------------------------------
    # tm: whole-M-resident for decode-sized batches; 256-512 for prefill so the
    # weight (index_map ignores i) is re-streamed from HBM fewer times.
    if tm is None:
        if M <= 256:
            tm = M
        else:
            tm = next((c for c in (512, 256, 128) if M % c == 0), M)
    # tn/tk: big weight tiles (up to 1 MiB fp8 per DMA) to amortize per-grid-step
    # overhead; cap at 512 on the sub-block path to bound the unrolled dot loop.
    cap = 1024 if dequant else 512
    auto_tn = tn is None
    if tn is None:
        tn = _largest_tile(N, cap)
    if tk is None:
        tk = _largest_tile(K, cap)
    # v7x: keep >=2 steps on the parallel j axis so both TensorCores get work.
    if (auto_tn and gen == 7 and N // tn < 2
            and N >= 2 * QUANT_BLOCK and (N // 2) % QUANT_BLOCK == 0):
        tn = N // 2
    # Shrink tiles if the double-buffered footprint would overflow the budget.
    while _vmem_bytes(tm, tn, tk, dequant) > int(0.75 * vmem_limit):
        if tk > QUANT_BLOCK and tk >= tn:
            tk = _largest_tile(K, tk // 2)
        elif tn > QUANT_BLOCK:
            tn = _largest_tile(N, tn // 2)
        else:
            break

    assert M % tm == 0 and N % tn == 0 and K % tk == 0
    assert tn % QUANT_BLOCK == 0 and tk % QUANT_BLOCK == 0

    # 1D scale table resident in SMEM (2D SMEM would pad rows to 8 / lanes to 128).
    scales_flat = weight_scale_inv.astype(jnp.float32).reshape(-1)

    n_sub, k_sub = tn // QUANT_BLOCK, tk // QUANT_BLOCK
    if dequant:
        kernel = functools.partial(_dequant_kernel,
                                   n_sub=n_sub, k_sub=k_sub, kb_total=KB)
        scratch = [pltpu.VMEM((tm, tn), jnp.float32),       # f32 accumulator
                   pltpu.VMEM((tn, tk), jnp.bfloat16)]      # dequantized weight tile
    else:
        kernel = functools.partial(_subblock_kernel,
                                   n_sub=n_sub, k_sub=k_sub, kb_total=KB)
        scratch = [pltpu.VMEM((tm, tn), jnp.float32)]       # f32 accumulator

    grid = (M // tm, N // tn, K // tk)
    return pl.pallas_call(
        kernel,
        out_shape=jax.ShapeDtypeStruct((M, N), jnp.bfloat16),
        grid_spec=pltpu.PrefetchScalarGridSpec(
            num_scalar_prefetch=0,
            grid=grid,
            in_specs=[
                pl.BlockSpec((tm, tk), lambda i, j, k: (i, k)),      # activations (bf16)
                pl.BlockSpec((tn, tk), lambda i, j, k: (j, k)),      # packed weight (fp8)
                pl.BlockSpec(memory_space=pltpu.MemorySpace.SMEM),   # 1D block scales
            ],
            out_specs=pl.BlockSpec((tm, tn), lambda i, j, k: (i, j)),
            scratch_shapes=scratch,
        ),
        compiler_params=pltpu.CompilerParams(
            dimension_semantics=("parallel", "parallel", "arbitrary"),
            vmem_limit_bytes=vmem_limit),
    )(x, weight_packed, scales_flat)


# --------------------------------------------------------------------------- #
# Test harness
# --------------------------------------------------------------------------- #
def _make_packed_weight(key, n, k, block=QUANT_BLOCK):
    """Deterministically build (weight_fp8, weight_scale_inv) like openquant packing."""
    w = jax.random.normal(key, (n, k), dtype=jnp.float32)
    nb, kb = n // block, k // block
    w_blk = w.reshape(nb, block, kb, block)
    amax = jnp.max(jnp.abs(w_blk), axis=(1, 3))                 # (nb, kb)
    scale_inv = jnp.maximum(amax / 448.0, 1e-12)                # e4m3 max = 448
    w_scaled = w_blk / scale_inv[:, None, :, None]
    w_fp8 = w_scaled.reshape(n, k).astype(jnp.float8_e4m3fn)
    return w_fp8, scale_inv.astype(jnp.float32)


if __name__ == "__main__":
    key = jax.random.PRNGKey(0)
    k_w, k_x = jax.random.split(key)

    M, K, N = 32, 512, 512
    weight_fp8, weight_scale_inv = _make_packed_weight(k_w, N, K)
    x = jax.random.normal(k_x, (M, K), dtype=jnp.float32).astype(jnp.bfloat16)

    # Reference: dequantize in fp32 and do a plain matmul.
    w_dq = (weight_fp8.astype(jnp.float32).reshape(
        N // QUANT_BLOCK, QUANT_BLOCK, K // QUANT_BLOCK, QUANT_BLOCK)
        * weight_scale_inv[:, None, :, None]).reshape(N, K)
    ref = x.astype(jnp.float32) @ w_dq.T

    # tn=tk=256 at these small shapes -> grid (1, 2, 2): exercises the k-axis
    # accumulation, multiple output-feature tiles, and the 2x2 sub-block loops.
    # Run the auto (chip-gated) variant and force-run both code paths.
    for variant in ("auto", "subblock", "dequant"):
        out = packed_block_linear(x, weight_fp8, weight_scale_inv,
                                  tn=256, tk=256, variant=variant)
        out = jax.block_until_ready(out)
        assert out.shape == (M, N) and out.dtype == jnp.bfloat16
        err = (jnp.max(jnp.abs(out.astype(jnp.float32) - ref))
               / (jnp.max(jnp.abs(ref)) + 1e-6))
        assert float(err) < 2e-2, f"{variant}: relative error too large: {float(err)}"

    print("KERNEL_OK")
</pallas_src>

<mosaic_0001>
module attributes {stable_mosaic.version = 11 : i64} {
  func.func @_dequant_kernel(%arg0: i32, %arg1: i32, %arg2: i32, %arg3: memref<32x256xbf16, #tpu.memory_space<vmem>>, %arg4: memref<256x256xf8E4M3FN, #tpu.memory_space<vmem>>, %arg5: memref<16xf32, #tpu.memory_space<smem>>, %arg6: memref<32x256xbf16, #tpu.memory_space<vmem>>, %arg7: memref<32x256xf32, #tpu.memory_space<vmem>>, %arg8: memref<256x256xbf16, #tpu.memory_space<vmem>>) attributes {dimension_semantics = [#tpu.dimension_semantics<parallel>, #tpu.dimension_semantics<parallel>, #tpu.dimension_semantics<arbitrary>], iteration_bounds = array<i64: 1, 2, 2>, scalar_prefetch = 0 : i64, scratch_operands = 2 : i64, tpu.core_type = #tpu.core_type<tc>, window_params = [{transform_indices = @transform_0, window_bounds = array<i64: 32, 256>}, {transform_indices = @transform_1, window_bounds = array<i64: 256, 256>}, {transform_indices = @transform_2, window_bounds = array<i64: 16>}, {transform_indices = @transform_3, window_bounds = array<i64: 32, 256>}]} {
    %c0_i32 = arith.constant 0 : i32
    %0 = arith.cmpi eq, %arg2, %c0_i32 : i32
    %1 = arith.extui %0 : i1 to i32
    %c0_i32_0 = arith.constant 0 : i32
    %2 = arith.cmpi ne, %1, %c0_i32_0 : i32
    scf.if %2 {
      %cst_42 = arith.constant 0.000000e+00 : f32
      %68 = vector.broadcast %cst_42 : f32 to vector<32x256xf32>
      %c0_43 = arith.constant 0 : index
      %c0_44 = arith.constant 0 : index
      %69 = vector.load %arg7[%c0_43, %c0_44] : memref<32x256xf32, #tpu.memory_space<vmem>>, vector<32x256xf32>
      tpu.vector_store %arg7[%c0_43, %c0_44], %68 {strides = array<i32>} : memref<32x256xf32, #tpu.memory_space<vmem>>, vector<32x256xf32>,
    } else {
    }
    %c2_i32 = arith.constant 2 : i32
    %3 = arith.muli %arg1, %c2_i32 : i32
    %c0_i32_1 = arith.constant 0 : i32
    %4 = arith.addi %3, %c0_i32_1 : i32
    %c4_i32 = arith.constant 4 : i32
    %5 = arith.muli %4, %c4_i32 : i32
    %c2_i32_2 = arith.constant 2 : i32
    %6 = arith.muli %arg2, %c2_i32_2 : i32
    %c0_i32_3 = arith.constant 0 : i32
    %7 = arith.addi %6, %c0_i32_3 : i32
    %8 = arith.addi %5, %7 : i32
    %9 = arith.index_cast %8 : i32 to index
    %10 = memref.load %arg5[%9] : memref<16xf32, #tpu.memory_space<smem>>
    %c0 = arith.constant 0 : index
    %c0_4 = arith.constant 0 : index
    %11 = vector.load %arg4[%c0, %c0_4] : memref<256x256xf8E4M3FN, #tpu.memory_space<vmem>>, vector<128x128xf8E4M3FN>
    %12 = arith.extf %11 : vector<128x128xf8E4M3FN> to vector<128x128xf32>
    %13 = vector.broadcast %10 : f32 to vector<128x128xf32>
    %14 = arith.mulf %12, %13 : vector<128x128xf32>
    %15 = arith.truncf %14 : vector<128x128xf32> to vector<128x128xbf16>
    %c0_5 = arith.constant 0 : index
    %c0_6 = arith.constant 0 : index
    %16 = vector.load %arg8[%c0_5, %c0_6] : memref<256x256xbf16, #tpu.memory_space<vmem>>, vector<128x128xbf16>
    tpu.vector_store %arg8[%c0_5, %c0_6], %15 {strides = array<i32>} : memref<256x256xbf16, #tpu.memory_space<vmem>>, vector<128x128xbf16>,
    %c2_i32_7 = arith.constant 2 : i32
    %17 = arith.muli %arg1, %c2_i32_7 : i32
    %c0_i32_8 = arith.constant 0 : i32
    %18 = arith.addi %17, %c0_i32_8 : i32
    %c4_i32_9 = arith.constant 4 : i32
    %19 = arith.muli %18, %c4_i32_9 : i32
    %c2_i32_10 = arith.constant 2 : i32
    %20 = arith.muli %arg2, %c2_i32_10 : i32
    %c1_i32 = arith.constant 1 : i32
    %21 = arith.addi %20, %c1_i32 : i32
    %22 = arith.addi %19, %21 : i32
    %23 = arith.index_cast %22 : i32 to index
    %24 = memref.load %arg5[%23] : memref<16xf32, #tpu.memory_space<smem>>
    %c0_11 = arith.constant 0 : index
    %c128 = arith.constant 128 : index
    %25 = vector.load %arg4[%c0_11, %c128] : memref<256x256xf8E4M3FN, #tpu.memory_space<vmem>>, vector<128x128xf8E4M3FN>
    %26 = arith.extf %25 : vector<128x128xf8E4M3FN> to vector<128x128xf32>
    %27 = vector.broadcast %24 : f32 to vector<128x128xf32>
    %28 = arith.mulf %26, %27 : vector<128x128xf32>
    %29 = arith.truncf %28 : vector<128x128xf32> to vector<128x128xbf16>
    %c0_12 = arith.constant 0 : index
    %c128_13 = arith.constant 128 : index
    %30 = vector.load %arg8[%c0_12, %c128_13] : memref<256x256xbf16, #tpu.memory_space<vmem>>, vector<128x128xbf16>
    tpu.vector_store %arg8[%c0_12, %c128_13], %29 {strides = array<i32>} : memref<256x256xbf16, #tpu.memory_space<vmem>>, vector<128x128xbf16>,
    %c2_i32_14 = arith.constant 2 : i32
    %31 = arith.muli %arg1, %c2_i32_14 : i32
    %c1_i32_15 = arith.constant 1 : i32
    %32 = arith.addi %31, %c1_i32_15 : i32
    %c4_i32_16 = arith.constant 4 : i32
    %33 = arith.muli %32, %c4_i32_16 : i32
    %c2_i32_17 = arith.constant 2 : i32
    %34 = arith.muli %arg2, %c2_i32_17 : i32
    %c0_i32_18 = arith.constant 0 : i32
    %35 = arith.addi %34, %c0_i32_18 : i32
    %36 = arith.addi %33, %35 : i32
    %37 = arith.index_cast %36 : i32 to index
    %38 = memref.load %arg5[%37] : memref<16xf32, #tpu.memory_space<smem>>
    %c128_19 = arith.constant 128 : index
    %c0_20 = arith.constant 0 : index
    %39 = vector.load %arg4[%c128_19, %c0_20] : memref<256x256xf8E4M3FN, #tpu.memory_space<vmem>>, vector<128x128xf8E4M3FN>
    %40 = arith.extf %39 : vector<128x128xf8E4M3FN> to vector<128x128xf32>
    %41 = vector.broadcast %38 : f32 to vector<128x128xf32>
    %42 = arith.mulf %40, %41 : vector<128x128xf32>
    %43 = arith.truncf %42 : vector<128x128xf32> to vector<128x128xbf16>
    %c128_21 = arith.constant 128 : index
    %c0_22 = arith.constant 0 : index
    %44 = vector.load %arg8[%c128_21, %c0_22] : memref<256x256xbf16, #tpu.memory_space<vmem>>, vector<128x128xbf16>
    tpu.vector_store %arg8[%c128_21, %c0_22], %43 {strides = array<i32>} : memref<256x256xbf16, #tpu.memory_space<vmem>>, vector<128x128xbf16>,
    %c2_i32_23 = arith.constant 2 : i32
    %45 = arith.muli %arg1, %c2_i32_23 : i32
    %c1_i32_24 = arith.constant 1 : i32
    %46 = arith.addi %45, %c1_i32_24 : i32
    %c4_i32_25 = arith.constant 4 : i32
    %47 = arith.muli %46, %c4_i32_25 : i32
    %c2_i32_26 = arith.constant 2 : i32
    %48 = arith.muli %arg2, %c2_i32_26 : i32
    %c1_i32_27 = arith.constant 1 : i32
    %49 = arith.addi %48, %c1_i32_27 : i32
    %50 = arith.addi %47, %49 : i32
    %51 = arith.index_cast %50 : i32 to index
    %52 = memref.load %arg5[%51] : memref<16xf32, #tpu.memory_space<smem>>
    %c128_28 = arith.constant 128 : index
    %c128_29 = arith.constant 128 : index
    %53 = vector.load %arg4[%c128_28, %c128_29] : memref<256x256xf8E4M3FN, #tpu.memory_space<vmem>>, vector<128x128xf8E4M3FN>
    %54 = arith.extf %53 : vector<128x128xf8E4M3FN> to vector<128x128xf32>
    %55 = vector.broadcast %52 : f32 to vector<128x128xf32>
    %56 = arith.mulf %54, %55 : vector<128x128xf32>
    %57 = arith.truncf %56 : vector<128x128xf32> to vector<128x128xbf16>
    %c128_30 = arith.constant 128 : index
    %c128_31 = arith.constant 128 : index
    %58 = vector.load %arg8[%c128_30, %c128_31] : memref<256x256xbf16, #tpu.memory_space<vmem>>, vector<128x128xbf16>
    tpu.vector_store %arg8[%c128_30, %c128_31], %57 {strides = array<i32>} : memref<256x256xbf16, #tpu.memory_space<vmem>>, vector<128x128xbf16>,
    %c0_32 = arith.constant 0 : index
    %c0_33 = arith.constant 0 : index
    %59 = vector.load %arg7[%c0_32, %c0_33] : memref<32x256xf32, #tpu.memory_space<vmem>>, vector<32x256xf32>
    %c0_34 = arith.constant 0 : index
    %c0_35 = arith.constant 0 : index
    %60 = vector.load %arg3[%c0_34, %c0_35] : memref<32x256xbf16, #tpu.memory_space<vmem>>, vector<32x256xbf16>
    %c0_36 = arith.constant 0 : index
    %c0_37 = arith.constant 0 : index
    %61 = vector.load %arg8[%c0_36, %c0_37] : memref<256x256xbf16, #tpu.memory_space<vmem>>, vector<256x256xbf16>
    %cst = arith.constant dense<0.000000e+00> : vector<32x256xf32>
    %62 = tpu.matmul %60, %61, %cst {dimension_numbers = #tpu.dot_dimension_numbers<[1], [1], [0], [0], [0, 0, 1, 0], [], []>} : vector<32x256xbf16>, vector<256x256xbf16>, vector<32x256xf32> -> vector<32x256xf32>
    %63 = arith.addf %59, %62 : vector<32x256xf32>
    %c0_38 = arith.constant 0 : index
    %c0_39 = arith.constant 0 : index
    %64 = vector.load %arg7[%c0_38, %c0_39] : memref<32x256xf32, #tpu.memory_space<vmem>>, vector<32x256xf32>
    tpu.vector_store %arg7[%c0_38, %c0_39], %63 {strides = array<i32>} : memref<32x256xf32, #tpu.memory_space<vmem>>, vector<32x256xf32>,
    %c1_i32_40 = arith.constant 1 : i32
    %65 = arith.cmpi eq, %arg2, %c1_i32_40 : i32
    %66 = arith.extui %65 : i1 to i32
    %c0_i32_41 = arith.constant 0 : i32
    %67 = arith.cmpi ne, %66, %c0_i32_41 : i32
    scf.if %67 {
      %c0_42 = arith.constant 0 : index
      %c0_43 = arith.constant 0 : index
      %68 = vector.load %arg7[%c0_42, %c0_43] : memref<32x256xf32, #tpu.memory_space<vmem>>, vector<32x256xf32>
      %69 = arith.truncf %68 : vector<32x256xf32> to vector<32x256xbf16>
      %c0_44 = arith.constant 0 : index
      %c0_45 = arith.constant 0 : index
      %70 = vector.load %arg6[%c0_44, %c0_45] : memref<32x256xbf16, #tpu.memory_space<vmem>>, vector<32x256xbf16>
      tpu.vector_store %arg6[%c0_44, %c0_45], %69 {strides = array<i32>} : memref<32x256xbf16, #tpu.memory_space<vmem>>, vector<32x256xbf16>,
    } else {
    }
    return
  }
  func.func @transform_0(%arg0: i32, %arg1: i32, %arg2: i32) -> (i32, i32) {
    %c0_i32 = arith.constant 0 : i32
    return %arg0, %arg2 : i32, i32
  }
  func.func @transform_1(%arg0: i32, %arg1: i32, %arg2: i32) -> (i32, i32) {
    %c0_i32 = arith.constant 0 : i32
    return %arg1, %arg2 : i32, i32
  }
  func.func @transform_2(%arg0: i32, %arg1: i32, %arg2: i32) -> i32 {
    %c0_i32 = arith.constant 0 : i32
    %c0_i32_0 = arith.constant 0 : i32
    return %c0_i32 : i32
  }
  func.func @transform_3(%arg0: i32, %arg1: i32, %arg2: i32) -> (i32, i32) {
    %c0_i32 = arith.constant 0 : i32
    return %arg0, %arg1 : i32, i32
  }
}

</mosaic_0001>

<llo_original>
// kernel: tpu_custom_call.1
$region0: #{tpu_custom_call.1}
  #allocation0 [shape = 'u32[]', space=smem, size = 0x4, offset = 0x4, fixed_abs, tag = 'smem constant byte address 0x4 - core index']
  #allocation1 [shape = 'u32[144,128]{1,0:T(1,128)}', space=vmem, size = 0x12000, scoped, tag = 'internal scratch']
  #allocation2 [shape = 'f32[32,256]{1,0:T(8,128)}', space=vmem, size = 0x8000, scoped, tag = 'scratch operand']
  #allocation3 [shape = 'bf16[256,256]{1,0:T(8,128)(2,1)}', space=vmem, size = 0x20000, scoped, tag = 'scratch operand']
  %s0 = inlined_call_operand.hbm [shape: bf16[32,512], index: 0, kind: input, shape index: {}]
  %s1 = inlined_call_operand.hbm [shape: f8e4m3fn[512,512], index: 1, kind: input, shape index: {}]
  %s2 = inlined_call_operand.vmem [shape: f32[16], index: 2, kind: input, shape index: {}]
  %s3 = inlined_call_operand.hbm [shape: bf16[32,512], index: 3, kind: output, shape index: {}]
  %s4 = sld [smem:[#allocation0]]
  $region129: #{tpu_custom_call.1} parent=0
    _
  %s6 = ssub.s32 1, %s4
  %s7 = scalar_select 0, %s6, %s4
  $region1: #{tpu_custom_call.1} parent=0
    #allocation4 [shape = 'u8[32768]{0}', space=vmem, size = 0x8000, scoped, tag = 'input window, operand 0']
    #allocation5 [shape = 's32[2]{0}', space=sflag, size = 0x8, scoped, tag = 'scoped memory for tpu_custom_call.1']
    #allocation6 [shape = 's32[2]{0}', space=sflag, size = 0x8, scoped, tag = 'scoped memory for tpu_custom_call.1']
    #allocation7 [shape = 's32[2]{0}', space=sflag, size = 0x8, scoped, tag = 'scoped memory for tpu_custom_call.1']
    #allocation8 [shape = 'u8[131072]{0}', space=vmem, size = 0x20000, scoped, tag = 'input window, operand 1']
    #allocation9 [shape = 's32[2]{0}', space=sflag, size = 0x8, scoped, tag = 'scoped memory for tpu_custom_call.1']
    #allocation10 [shape = 'u8[512]{0}', space=smem, size = 0x200, scoped, tag = 'input window, operand 2, single buffered']
    #allocation11 [shape = 'u8[32768]{0}', space=vmem, size = 0x8000, scoped, tag = 'output window, operand 0']
    %8 = vsyncpa [#allocation5], 0
    %s9 = scalar_lea.sflag [#allocation5], 1
    %10 = vsyncpa %s9, 0
    %11 = vsyncpa [#allocation9], 0
    %s12 = scalar_lea.sflag [#allocation9], 1
    %13 = vsyncpa %s12, 0
    %14 = vsyncpa [#allocation7], 0
    %15 = vsyncpa [#allocation6], 0
    %s16 = scalar_lea.sflag [#allocation6], 1
    %17 = vsyncpa %s16, 0
    loop: start=0, step=1, limit=6
    $region2: #{tpu_custom_call.1} parent=1 // loop_pre_header
      _
    $region3: #{tpu_custom_call.1} parent=1 // loop_header
      %s19 = sphi 0, %s23
      %p20 = scmp.ge.s32.totalorder %s19, 6
      %s26 = sphi 0, %s45
      %s27 = sphi 0, %s41
      %s28 = sphi 0, %s37
      %s29 = sphi 0, %s26
      %s30 = sphi 0, %s27
      %s31 = sphi 0, %s28
      %s32 = sphi 0, %s29
      %s33 = sphi 0, %s30
      %s34 = sphi 0, %s31
      %s50 = sphi 0, %s52
      %s53 = sphi 0, %s50
      %s54 = sphi 0, %s53
      %s70 = sphi 0, %s54
      %s78 = sphi 0, %s80
      %s81 = sphi 0, %s78
      %s82 = sphi 0, %s81
      %s98 = sphi 0, %s82
      %s102 = sphi 0, %s102
      %s104 = sphi 0, %s102
      %s105 = sphi 0, %s104
      %s119 = sphi 0, %s105
      %s127 = sphi 0, %s129
      %s130 = sphi 0, %s127
      %s131 = sphi 0, %s130
      %s147 = sphi 0, %s131
    $region4: #{tpu_custom_call.1} parent=1 // loop_header_branch
      %22 = sbr.rel (%p20) target = $region8
    $region5: #{tpu_custom_call.1} parent=1 // loop_body
      %s24 = ssub.s32 %s19, 1
      %s25 = ssub.s32 %s19, 2
      %s35 = sadd.s32 1, %s28
      %p36 = scmp.ge.s32.totalorder %s35, 2
      %s37 = scalar_select %p36, 0, %s35
      %s38 = sadd.s32 1, %s27
      %s39 = scalar_select %p36, %s38, %s27
      %p40 = scmp.ge.s32.totalorder %s39, 2
      %s41 = scalar_select %p40, 0, %s39
      %s42 = sadd.s32 1, %s26
      %s43 = scalar_select %p40, %s42, %s26
      %p44 = scmp.ge.s32.totalorder %s43, 1
      %s45 = scalar_select %p44, 0, %s43
      %s46 = ssub.s32 %s26, %s45
      %s47 = ssub.s32 %s28, %s37
      %s48 = sor.u32 %s46, %s47
      %p49 = scmp.eq.s32.totalorder %s48, 0
      %s51 = sadd.s32 %s50, 1
      %s52 = scalar_select %p49, %s50, %s51
      %p55 = pneg %p49
      %p56 = scmp.eq.s32.totalorder %s19, 3
      %p57 = por %p55, %p56
      %p58 = scmp.ne.s32.totalorder %s50, %s53
      %p59 = scmp.eq.s32.totalorder %s19, 0
      %p60 = por %p58, %p59
      %p61 = scmp.ne.s32.totalorder %s50, %s53
      %p62 = scmp.eq.s32.totalorder %s24, 3
      %p63 = por %p61, %p62
      %p64 = scmp.ne.s32.totalorder %s53, %s54
      %p65 = scmp.eq.s32.totalorder %s24, 0
      %p66 = por %p64, %p65
      %p67 = scmp.ne.s32.totalorder %s53, %s54
      %p68 = scmp.eq.s32.totalorder %s25, 3
      %p69 = por %p67, %p68
      %p71 = scmp.ne.s32.totalorder %s54, %s70
      %p72 = scmp.eq.s32.totalorder %s25, 0
      %p73 = por %p71, %p72
      %s74 = ssub.s32 %s27, %s41
      %s75 = ssub.s32 %s28, %s37
      %s76 = sor.u32 %s74, %s75
      %p77 = scmp.eq.s32.totalorder %s76, 0
      %s79 = sadd.s32 %s78, 1
      %s80 = scalar_select %p77, %s78, %s79
      %p83 = pneg %p77
      %p84 = scmp.eq.s32.totalorder %s19, 3
      %p85 = por %p83, %p84
      %p86 = scmp.ne.s32.totalorder %s78, %s81
      %p87 = scmp.eq.s32.totalorder %s19, 0
      %p88 = por %p86, %p87
      %p89 = scmp.ne.s32.totalorder %s78, %s81
      %p90 = scmp.eq.s32.totalorder %s24, 3
      %p91 = por %p89, %p90
      %p92 = scmp.ne.s32.totalorder %s81, %s82
      %p93 = scmp.eq.s32.totalorder %s24, 0
      %p94 = por %p92, %p93
      %p95 = scmp.ne.s32.totalorder %s81, %s82
      %p96 = scmp.eq.s32.totalorder %s25, 3
      %p97 = por %p95, %p96
      %p99 = scmp.ne.s32.totalorder %s82, %s98
      %p100 = scmp.eq.s32.totalorder %s25, 0
      %p101 = por %p99, %p100
      %s103 = sadd.s32 %s102, 1
      %p106 = scmp.eq.s32.totalorder %s19, 3
      %p107 = scmp.ne.s32.totalorder %s102, %s104
      %p108 = scmp.eq.s32.totalorder %s19, 0
      %p109 = por %p107, %p108
      %p110 = scmp.ne.s32.totalorder %s102, %s104
      %p111 = scmp.eq.s32.totalorder %s24, 3
      %p112 = por %p110, %p111
      %p113 = scmp.ne.s32.totalorder %s104, %s105
      %p114 = scmp.eq.s32.totalorder %s24, 0
      %p115 = por %p113, %p114
      %p116 = scmp.ne.s32.totalorder %s104, %s105
      %p117 = scmp.eq.s32.totalorder %s25, 3
      %p118 = por %p116, %p117
      %p120 = scmp.ne.s32.totalorder %s105, %s119
      %p121 = scmp.eq.s32.totalorder %s25, 0
      %p122 = por %p120, %p121
      %s123 = ssub.s32 %s26, %s45
      %s124 = ssub.s32 %s27, %s41
      %s125 = sor.u32 %s123, %s124
      %p126 = scmp.eq.s32.totalorder %s125, 0
      %s128 = sadd.s32 %s127, 1
      %s129 = scalar_select %p126, %s127, %s128
      %p132 = pneg %p126
      %p133 = scmp.eq.s32.totalorder %s19, 3
      %p134 = por %p132, %p133
      %p135 = scmp.ne.s32.totalorder %s127, %s130
      %p136 = scmp.eq.s32.totalorder %s19, 0
      %p137 = por %p135, %p136
      %p138 = scmp.ne.s32.totalorder %s127, %s130
      %p139 = scmp.eq.s32.totalorder %s24, 3
      %p140 = por %p138, %p139
      %p141 = scmp.ne.s32.totalorder %s130, %s131
      %p142 = scmp.eq.s32.totalorder %s24, 0
      %p143 = por %p141, %p142
      %p144 = scmp.ne.s32.totalorder %s130, %s131
      %p145 = scmp.eq.s32.totalorder %s25, 3
      %p146 = por %p144, %p145
      %p148 = scmp.ne.s32.totalorder %s131, %s147
      %p149 = scmp.eq.s32.totalorder %s25, 0
      %p150 = por %p148, %p149
      %p151 = scmp.le.s32.totalorder 1, %s19
      %p152 = scmp.lt.s32.totalorder %s19, 5
      %p153 = pnand %p151, %p152
      %p154 = pneg %p153
      // Predicated region
      $region9: #{tpu_custom_call.1} parent=5 // pred_check
        _
      $region10: #{tpu_custom_call.1} parent=5 // pred_check_branch
        %156 = sbr.rel (%p153) target = $region12
      $region11: #{tpu_custom_call.1} parent=5 // pred_region
        %s157 = ssub.s32 %s19, 1
        // Predicated region
        $region13: #{tpu_custom_call.1} parent=11 // pred_check
          %p158 = pneg %p115
        $region14: #{tpu_custom_call.1} parent=11 // pred_check_branch
          %160 = sbr.rel (%p158) target = $region16
        $region15: #{tpu_custom_call.1} parent=11 // pred_region
          %s162 = ssub.s32 16, 16
          %163 = vsyncadd [#allocation7], %s162
          %s165 = sshll.u32 %s2, 4
          %s166 = int_to_ptr.vmem [resolvable:$true] %s165
          %168 = dma.vmem_to_smem %s166, 16, [#allocation10], [#allocation7]
        $region16: #{tpu_custom_call.1} parent=11 // pred_fallthru
          _
      $region12: #{tpu_custom_call.1} parent=5 // pred_fallthru
        _
      %p169 = scmp.lt.s32.totalorder %s19, 4
      // Predicated region
      $region17: #{tpu_custom_call.1} parent=5 // pred_check
        %p170 = pneg %p169
      $region18: #{tpu_custom_call.1} parent=5 // pred_check_branch
        %172 = sbr.rel (%p170) target = $region20
      $region19: #{tpu_custom_call.1} parent=5 // pred_region
        // Predicated region
        $region21: #{tpu_custom_call.1} parent=19 // pred_check
          %p173 = pneg %p60
        $region22: #{tpu_custom_call.1} parent=19 // pred_check_branch
          %175 = sbr.rel (%p173) target = $region24
        $region23: #{tpu_custom_call.1} parent=19 // pred_region
          %s176 = sand.u32 %s50, 1
          %s177 = scalar_lea.sflag [#allocation5], %s176
          %s178 = sand.u32 %s50, 1
          %s179 = smul.addr %s178, 32
          %s180 = scalar_lea.vmem [#allocation4], %s179
          %s181 = smul.u32 4, %s26
          %s182 = smul.u32 2, %s28
          %s184 = ssub.s32 512, 512
          %185 = vsyncadd %s177, %s184
          %s186 = smul.addr %s181, 4
          %s187 = sadd.s32 %s182, %s186
          %s188 = smul.addr %s187, 64
          %s189 = scalar_lea.hbm %s0, %s188
          %s190 = sshll.u32 %s180, 4
          %s191 = int_to_ptr.vmem [resolvable:$true] %s190
          %196 = dma.hbm_to_vmem [thread:$0]  %s189, 512, %s191, %s177, 256, 128, 8
        $region24: #{tpu_custom_call.1} parent=19 // pred_fallthru
          _
        // Predicated region
        $region25: #{tpu_custom_call.1} parent=19 // pred_check
          %p197 = pneg %p88
        $region26: #{tpu_custom_call.1} parent=19 // pred_check_branch
          %199 = sbr.rel (%p197) target = $region28
        $region27: #{tpu_custom_call.1} parent=19 // pred_region
          %s200 = sand.u32 %s78, 1
          %s201 = scalar_lea.sflag [#allocation9], %s200
          %s202 = sand.u32 %s78, 1
          %s203 = smul.addr %s202, 128
          %s204 = scalar_lea.vmem [#allocation8], %s203
          %s205 = smul.u32 8, %s27
          %s206 = smul.u32 2, %s28
          %s208 = ssub.s32 2048, 2048
          %209 = vsyncadd %s201, %s208
          %s210 = smul.addr %s205, 4
          %s211 = sadd.s32 %s206, %s210
          %s212 = smul.addr %s211, 128
          %s213 = scalar_lea.hbm %s1, %s212
          %s214 = sshll.u32 %s204, 4
          %s215 = int_to_ptr.vmem [resolvable:$true] %s214
          %220 = dma.hbm_to_vmem [thread:$0]  %s213, 2048, %s215, %s201, 512, 256, 16
        $region28: #{tpu_custom_call.1} parent=19 // pred_fallthru
          _
      $region20: #{tpu_custom_call.1} parent=5 // pred_fallthru
        _
      %p221 = scmp.le.s32.totalorder 1, %s19
      %p222 = scmp.lt.s32.totalorder %s19, 5
      %p223 = pnand %p221, %p222
      %p224 = pneg %p223
      // Predicated region
      $region29: #{tpu_custom_call.1} parent=5 // pred_check
        _
      $region30: #{tpu_custom_call.1} parent=5 // pred_check_branch
        %226 = sbr.rel (%p223) target = $region32
      $region31: #{tpu_custom_call.1} parent=5 // pred_region
        %s227 = ssub.s32 %s19, 1
        %s228 = sand.u32 %s53, 1
        %s229 = scalar_lea.sflag [#allocation5], %s228
        %s230 = sand.u32 %s53, 1
        %s231 = smul.addr %s230, 32
        %s232 = scalar_lea.vmem [#allocation4], %s231
        // Predicated region
        $region33: #{tpu_custom_call.1} parent=31 // pred_check
          %p233 = pneg %p66
        $region34: #{tpu_custom_call.1} parent=31 // pred_check_branch
          %235 = sbr.rel (%p233) target = $region36
        $region35: #{tpu_custom_call.1} parent=31 // pred_region
          %236 = dma.done %s229, 512
        $region36: #{tpu_custom_call.1} parent=31 // pred_fallthru
          _
        %s237 = sand.u32 %s81, 1
        %s238 = scalar_lea.sflag [#allocation9], %s237
        %s239 = sand.u32 %s81, 1
        %s240 = smul.addr %s239, 128
        %s241 = scalar_lea.vmem [#allocation8], %s240
        // Predicated region
        $region37: #{tpu_custom_call.1} parent=31 // pred_check
          %p242 = pneg %p94
        $region38: #{tpu_custom_call.1} parent=31 // pred_check_branch
          %244 = sbr.rel (%p242) target = $region40
        $region39: #{tpu_custom_call.1} parent=31 // pred_region
          %245 = dma.done %s238, 2048
        $region40: #{tpu_custom_call.1} parent=31 // pred_fallthru
          _
        // Predicated region
        $region41: #{tpu_custom_call.1} parent=31 // pred_check
          %p246 = pneg %p115
        $region42: #{tpu_custom_call.1} parent=31 // pred_check_branch
          %248 = sbr.rel (%p246) target = $region44
        $region43: #{tpu_custom_call.1} parent=31 // pred_region
          %249 = dma.done [#allocation7], 16
        $region44: #{tpu_custom_call.1} parent=31 // pred_fallthru
          _
        %250 = sfence
        %s251 = sand.u32 %s53, 1
        %s252 = scalar_lea.sflag [#allocation5], %s251
        %s253 = sand.u32 %s53, 1
        %s254 = smul.addr %s253, 32
        %s255 = scalar_lea.vmem [#allocation4], %s254
        %p256 = pneg %p66
        %p257 = pneg %p63
        %s258 = sand.u32 %s81, 1
        %s259 = scalar_lea.sflag [#allocation9], %s258
        %s260 = sand.u32 %s81, 1
        %s261 = smul.addr %s260, 128
        %s262 = scalar_lea.vmem [#allocation8], %s261
        %p263 = pneg %p94
        %p264 = pneg %p91
        %p265 = pneg %p115
        %p266 = pneg %p112
        %p267 = pneg %p143
        %p268 = pneg %p140
        %s269 = sand.u32 %s130, 1
        %s270 = scalar_lea.sflag [#allocation6], %s269
        %s271 = sand.u32 %s130, 1
        %s272 = smul.addr %s271, 32
        %s273 = scalar_lea.vmem [#allocation11], %s272
        %s274 = smul.u32 4, %s29
        %s275 = smul.u32 2, %s31
        %s276 = smul.u32 8, %s30
        %s277 = smul.u32 2, %s31
        %s278 = smul.u32 4, %s29
        %s279 = smul.u32 2, %s30
        %p280 = scmp.eq.s32.totalorder %s31, 0
        // Predicated region
        $region45: #{tpu_custom_call.1} parent=31 // pred_check
          %p281 = pneg %p280
        $region46: #{tpu_custom_call.1} parent=31 // pred_check_branch
          %283 = sbr.rel (%p281) target = $region48
        $region47: #{tpu_custom_call.1} parent=31 // pred_region
          %284 = vst [vmem:[#allocation2] sm:$0xff] 0.0
          %285 = vst [vmem:[#allocation2 + $0x8] sm:$0xff] 0.0
          %286 = vst [vmem:[#allocation2 + $0x10] sm:$0xff] 0.0
          %287 = vst [vmem:[#allocation2 + $0x18] sm:$0xff] 0.0
          %288 = vst [vmem:[#allocation2 + $0x20] sm:$0xff] 0.0
          %289 = vst [vmem:[#allocation2 + $0x28] sm:$0xff] 0.0
          %290 = vst [vmem:[#allocation2 + $0x30] sm:$0xff] 0.0
          %291 = vst [vmem:[#allocation2 + $0x38] sm:$0xff] 0.0
        $region48: #{tpu_custom_call.1} parent=31 // pred_fallthru
          _
        %s292 = smul.u32 %s30, 8
        %s293 = smul.u32 %s31, 2
        %s294 = sadd.s32 %s292, %s293
        %s295 = sld [smem:[#allocation10 + %s294]]
        %v296 = vld [vmem:[%s241] sm:$0xff]
        %v297 = vld [vmem:[%s241 + $0x10] sm:$0xff]
        %v298 = vld [vmem:[%s241 + $0x20] sm:$0xff]
        %v299 = vld [vmem:[%s241 + $0x30] sm:$0xff]
        $region49: #{tpu_custom_call.1} parent=31
          #allocation12 [shape = 'u8[4096]{0}', space=vmem, size = 0x1000, scoped, tag = 'scoped memory for tpu_custom_call.1']
          %300 = vst [vmem:[#allocation12] sm:$0xff] %v296
          %v301 = vld [vmem:[#allocation12] sm:$0x3]
          %v302 = vunpack.c.0.f8e4m3b11 %v301
          %v303 = vunpack.c.1.f8e4m3b11 %v301
          %v304 = vunpack.c.2.f8e4m3b11 %v301
          %v305 = vunpack.c.3.f8e4m3b11 %v301
          %v306 = vand.u32 2147483647, %v302
          %vm307 = vcmp.gt.f32.partialorder %v306, 29.0
          %vm308 = vcmp.ne.f32.partialorder %v302, %v302
          %v309 = vmul.f32 %v302, 16.0
          %v310 = vsel %vm308, -0.0, %v309
          %v311 = vsel %vm307, nan, %v310
          %v312 = vand.u32 2147483647, %v303
          %vm313 = vcmp.gt.f32.partialorder %v312, 29.0
          %vm314 = vcmp.ne.f32.partialorder %v303, %v303
          %v315 = vmul.f32 %v303, 16.0
          %v316 = vsel %vm314, -0.0, %v315
          %v317 = vsel %vm313, nan, %v316
          %v318 = vand.u32 2147483647, %v304
          %vm319 = vcmp.gt.f32.partialorder %v318, 29.0
          %vm320 = vcmp.ne.f32.partialorder %v304, %v304
          %v321 = vmul.f32 %v304, 16.0
          %v322 = vsel %vm320, -0.0, %v321
          %v323 = vsel %vm319, nan, %v322
          %v324 = vand.u32 2147483647, %v305
          %vm325 = vcmp.gt.f32.partialorder %v324, 29.0
          %vm326 = vcmp.ne.f32.partialorder %v305, %v305
          %v327 = vmul.f32 %v305, 16.0
          %v328 = vsel %vm326, -0.0, %v327
          %v329 = vsel %vm325, nan, %v328
        $region50: #{tpu_custom_call.1} parent=31
          #allocation13 [shape = 'u8[4096]{0}', space=vmem, size = 0x1000, scoped, tag = 'scoped memory for tpu_custom_call.1']
          %330 = vst [vmem:[#allocation13] sm:$0xff] %v296
          %s331 = scalar_lea.vmem [#allocation13], 2
          %v332 = vld [vmem:[%s331] sm:$0x3]
          %v333 = vunpack.c.0.f8e4m3b11 %v332
          %v334 = vunpack.c.1.f8e4m3b11 %v332
          %v335 = vunpack.c.2.f8e4m3b11 %v332
          %v336 = vunpack.c.3.f8e4m3b11 %v332
          %v337 = vand.u32 2147483647, %v333
          %vm338 = vcmp.gt.f32.partialorder %v337, 29.0
          %vm339 = vcmp.ne.f32.partialorder %v333, %v333
          %v340 = vmul.f32 %v333, 16.0
          %v341 = vsel %vm339, -0.0, %v340
          %v342 = vsel %vm338, nan, %v341
          %v343 = vand.u32 2147483647, %v334
          %vm344 = vcmp.gt.f32.partialorder %v343, 29.0
          %vm345 = vcmp.ne.f32.partialorder %v334, %v334
          %v346 = vmul.f32 %v334, 16.0
          %v347 = vsel %vm345, -0.0, %v346
          %v348 = vsel %vm344, nan, %v347
          %v349 = vand.u32 2147483647, %v335
          %vm350 = vcmp.gt.f32.partialorder %v349, 29.0
          %vm351 = vcmp.ne.f32.partialorder %v335, %v335
          %v352 = vmul.f32 %v335, 16.0
          %v353 = vsel %vm351, -0.0, %v352
          %v354 = vsel %vm350, nan, %v353
          %v355 = vand.u32 2147483647, %v336
          %vm356 = vcmp.gt.f32.partialorder %v355, 29.0
          %vm357 = vcmp.ne.f32.partialorder %v336, %v336
          %v358 = vmul.f32 %v336, 16.0
          %v359 = vsel %vm357, -0.0, %v358
          %v360 = vsel %vm356, nan, %v359
        $region51: #{tpu_custom_call.1} parent=31
          #allocation14 [shape = 'u8[4096]{0}', space=vmem, size = 0x1000, scoped, tag = 'scoped memory for tpu_custom_call.1']
          %361 = vst [vmem:[#allocation14] sm:$0xff] %v296
          %s362 = scalar_lea.vmem [#allocation14], 4
          %v363 = vld [vmem:[%s362] sm:$0x3]
          %v364 = vunpack.c.0.f8e4m3b11 %v363
          %v365 = vunpack.c.1.f8e4m3b11 %v363
          %v366 = vunpack.c.2.f8e4m3b11 %v363
          %v367 = vunpack.c.3.f8e4m3b11 %v363
          %v368 = vand.u32 2147483647, %v364
          %vm369 = vcmp.gt.f32.partialorder %v368, 29.0
          %vm370 = vcmp.ne.f32.partialorder %v364, %v364
          %v371 = vmul.f32 %v364, 16.0
          %v372 = vsel %vm370, -0.0, %v371
          %v373 = vsel %vm369, nan, %v372
          %v374 = vand.u32 2147483647, %v365
          %vm375 = vcmp.gt.f32.partialorder %v374, 29.0
          %vm376 = vcmp.ne.f32.partialorder %v365, %v365
          %v377 = vmul.f32 %v365, 16.0
          %v378 = vsel %vm376, -0.0, %v377
          %v379 = vsel %vm375, nan, %v378
          %v380 = vand.u32 2147483647, %v366
          %vm381 = vcmp.gt.f32.partialorder %v380, 29.0
          %vm382 = vcmp.ne.f32.partialorder %v366, %v366
          %v383 = vmul.f32 %v366, 16.0
          %v384 = vsel %vm382, -0.0, %v383
          %v385 = vsel %vm381, nan, %v384
          %v386 = vand.u32 2147483647, %v367
          %vm387 = vcmp.gt.f32.partialorder %v386, 29.0
          %vm388 = vcmp.ne.f32.partialorder %v367, %v367
          %v389 = vmul.f32 %v367, 16.0
          %v390 = vsel %vm388, -0.0, %v389
          %v391 = vsel %vm387, nan, %v390
        $region52: #{tpu_custom_call.1} parent=31
          #allocation15 [shape = 'u8[4096]{0}', space=vmem, size = 0x1000, scoped, tag = 'scoped memory for tpu_custom_call.1']
          %392 = vst [vmem:[#allocation15] sm:$0xff] %v296
          %s393 = scalar_lea.vmem [#allocation15], 6
          %v394 = vld [vmem:[%s393] sm:$0x3]
          %v395 = vunpack.c.0.f8e4m3b11 %v394
          %v396 = vunpack.c.1.f8e4m3b11 %v394
          %v397 = vunpack.c.2.f8e4m3b11 %v394
          %v398 = vunpack.c.3.f8e4m3b11 %v394
          %v399 = vand.u32 2147483647, %v395
          %vm400 = vcmp.gt.f32.partialorder %v399, 29.0
          %vm401 = vcmp.ne.f32.partialorder %v395, %v395
          %v402 = vmul.f32 %v395, 16.0
          %v403 = vsel %vm401, -0.0, %v402
          %v404 = vsel %vm400, nan, %v403
          %v405 = vand.u32 2147483647, %v396
          %vm406 = vcmp.gt.f32.partialorder %v405, 29.0
          %vm407 = vcmp.ne.f32.partialorder %v396, %v396
          %v408 = vmul.f32 %v396, 16.0
          %v409 = vsel %vm407, -0.0, %v408
          %v410 = vsel %vm406, nan, %v409
          %v411 = vand.u32 2147483647, %v397
          %vm412 = vcmp.gt.f32.partialorder %v411, 29.0
          %vm413 = vcmp.ne.f32.partialorder %v397, %v397
          %v414 = vmul.f32 %v397, 16.0
          %v415 = vsel %vm413, -0.0, %v414
          %v416 = vsel %vm412, nan, %v415
          %v417 = vand.u32 2147483647, %v398
          %vm418 = vcmp.gt.f32.partialorder %v417, 29.0
          %vm419 = vcmp.ne.f32.partialorder %v398, %v398
          %v420 = vmul.f32 %v398, 16.0
          %v421 = vsel %vm419, -0.0, %v420
          %v422 = vsel %vm418, nan, %v421
        $region53: #{tpu_custom_call.1} parent=31
          #allocation16 [shape = 'u8[4096]{0}', space=vmem, size = 0x1000, scoped, tag = 'scoped memory for tpu_custom_call.1']
          %423 = vst [vmem:[#allocation16] sm:$0xff] %v297
          %v424 = vld [vmem:[#allocation16] sm:$0x3]
          %v425 = vunpack.c.0.f8e4m3b11 %v424
          %v426 = vunpack.c.1.f8e4m3b11 %v424
          %v427 = vunpack.c.2.f8e4m3b11 %v424
          %v428 = vunpack.c.3.f8e4m3b11 %v424
          %v429 = vand.u32 2147483647, %v425
          %vm430 = vcmp.gt.f32.partialorder %v429, 29.0
          %vm431 = vcmp.ne.f32.partialorder %v425, %v425
          %v432 = vmul.f32 %v425, 16.0
          %v433 = vsel %vm431, -0.0, %v432
          %v434 = vsel %vm430, nan, %v433
          %v435 = vand.u32 2147483647, %v426
          %vm436 = vcmp.gt.f32.partialorder %v435, 29.0
          %vm437 = vcmp.ne.f32.partialorder %v426, %v426
          %v438 = vmul.f32 %v426, 16.0
          %v439 = vsel %vm437, -0.0, %v438
          %v440 = vsel %vm436, nan, %v439
          %v441 = vand.u32 2147483647, %v427
          %vm442 = vcmp.gt.f32.partialorder %v441, 29.0
          %vm443 = vcmp.ne.f32.partialorder %v427, %v427
          %v444 = vmul.f32 %v427, 16.0
          %v445 = vsel %vm443, -0.0, %v444
          %v446 = vsel %vm442, nan, %v445
          %v447 = vand.u32 2147483647, %v428
          %vm448 = vcmp.gt.f32.partialorder %v447, 29.0
          %vm449 = vcmp.ne.f32.partialorder %v428, %v428
          %v450 = vmul.f32 %v428, 16.0
          %v451 = vsel %vm449, -0.0, %v450
          %v452 = vsel %vm448, nan, %v451
        $region54: #{tpu_custom_call.1} parent=31
          #allocation17 [shape = 'u8[4096]{0}', space=vmem, size = 0x1000, scoped, tag = 'scoped memory for tpu_custom_call.1']
          %453 = vst [vmem:[#allocation17] sm:$0xff] %v297
          %s454 = scalar_lea.vmem [#allocation17], 2
          %v455 = vld [vmem:[%s454] sm:$0x3]
          %v456 = vunpack.c.0.f8e4m3b11 %v455
          %v457 = vunpack.c.1.f8e4m3b11 %v455
          %v458 = vunpack.c.2.f8e4m3b11 %v455
          %v459 = vunpack.c.3.f8e4m3b11 %v455
          %v460 = vand.u32 2147483647, %v456
          %vm461 = vcmp.gt.f32.partialorder %v460, 29.0
          %vm462 = vcmp.ne.f32.partialorder %v456, %v456
          %v463 = vmul.f32 %v456, 16.0
          %v464 = vsel %vm462, -0.0, %v463
          %v465 = vsel %vm461, nan, %v464
          %v466 = vand.u32 2147483647, %v457
          %vm467 = vcmp.gt.f32.partialorder %v466, 29.0
          %vm468 = vcmp.ne.f32.partialorder %v457, %v457
          %v469 = vmul.f32 %v457, 16.0
          %v470 = vsel %vm468, -0.0, %v469
          %v471 = vsel %vm467, nan, %v470
          %v472 = vand.u32 2147483647, %v458
          %vm473 = vcmp.gt.f32.partialorder %v472, 29.0
          %vm474 = vcmp.ne.f32.partialorder %v458, %v458
          %v475 = vmul.f32 %v458, 16.0
          %v476 = vsel %vm474, -0.0, %v475
          %v477 = vsel %vm473, nan, %v476
          %v478 = vand.u32 2147483647, %v459
          %vm479 = vcmp.gt.f32.partialorder %v478, 29.0
          %vm480 = vcmp.ne.f32.partialorder %v459, %v459
          %v481 = vmul.f32 %v459, 16.0
          %v482 = vsel %vm480, -0.0, %v481
          %v483 = vsel %vm479, nan, %v482
        $region55: #{tpu_custom_call.1} parent=31
          #allocation18 [shape = 'u8[4096]{0}', space=vmem, size = 0x1000, scoped, tag = 'scoped memory for tpu_custom_call.1']
          %484 = vst [vmem:[#allocation18] sm:$0xff] %v297
          %s485 = scalar_lea.vmem [#allocation18], 4
          %v486 = vld [vmem:[%s485] sm:$0x3]
          %v487 = vunpack.c.0.f8e4m3b11 %v486
          %v488 = vunpack.c.1.f8e4m3b11 %v486
          %v489 = vunpack.c.2.f8e4m3b11 %v486
          %v490 = vunpack.c.3.f8e4m3b11 %v486
          %v491 = vand.u32 2147483647, %v487
          %vm492 = vcmp.gt.f32.partialorder %v491, 29.0
          %vm493 = vcmp.ne.f32.partialorder %v487, %v487
          %v494 = vmul.f32 %v487, 16.0
          %v495 = vsel %vm493, -0.0, %v494
          %v496 = vsel %vm492, nan, %v495
          %v497 = vand.u32 2147483647, %v488
          %vm498 = vcmp.gt.f32.partialorder %v497, 29.0
          %vm499 = vcmp.ne.f32.partialorder %v488, %v488
          %v500 = vmul.f32 %v488, 16.0
          %v501 = vsel %vm499, -0.0, %v500
          %v502 = vsel %vm498, nan, %v501
          %v503 = vand.u32 2147483647, %v489
          %vm504 = vcmp.gt.f32.partialorder %v503, 29.0
          %vm505 = vcmp.ne.f32.partialorder %v489, %v489
          %v506 = vmul.f32 %v489, 16.0
          %v507 = vsel %vm505, -0.0, %v506
          %v508 = vsel %vm504, nan, %v507
          %v509 = vand.u32 2147483647, %v490
          %vm510 = vcmp.gt.f32.partialorder %v509, 29.0
          %vm511 = vcmp.ne.f32.partialorder %v490, %v490
          %v512 = vmul.f32 %v490, 16.0
          %v513 = vsel %vm511, -0.0, %v512
          %v514 = vsel %vm510, nan, %v513
        $region56: #{tpu_custom_call.1} parent=31
          #allocation19 [shape = 'u8[4096]{0}', space=vmem, size = 0x1000, scoped, tag = 'scoped memory for tpu_custom_call.1']
          %515 = vst [vmem:[#allocation19] sm:$0xff] %v297
          %s516 = scalar_lea.vmem [#allocation19], 6
          %v517 = vld [vmem:[%s516] sm:$0x3]
          %v518 = vunpack.c.0.f8e4m3b11 %v517
          %v519 = vunpack.c.1.f8e4m3b11 %v517
          %v520 = vunpack.c.2.f8e4m3b11 %v517
          %v521 = vunpack.c.3.f8e4m3b11 %v517
          %v522 = vand.u32 2147483647, %v518
          %vm523 = vcmp.gt.f32.partialorder %v522, 29.0
          %vm524 = vcmp.ne.f32.partialorder %v518, %v518
          %v525 = vmul.f32 %v518, 16.0
          %v526 = vsel %vm524, -0.0, %v525
          %v527 = vsel %vm523, nan, %v526
          %v528 = vand.u32 2147483647, %v519
          %vm529 = vcmp.gt.f32.partialorder %v528, 29.0
          %vm530 = vcmp.ne.f32.partialorder %v519, %v519
          %v531 = vmul.f32 %v519, 16.0
          %v532 = vsel %vm530, -0.0, %v531
          %v533 = vsel %vm529, nan, %v532
          %v534 = vand.u32 2147483647, %v520
          %vm535 = vcmp.gt.f32.partialorder %v534, 29.0
          %vm536 = vcmp.ne.f32.partialorder %v520, %v520
          %v537 = vmul.f32 %v520, 16.0
          %v538 = vsel %vm536, -0.0, %v537
          %v539 = vsel %vm535, nan, %v538
          %v540 = vand.u32 2147483647, %v521
          %vm541 = vcmp.gt.f32.partialorder %v540, 29.0
          %vm542 = vcmp.ne.f32.partialorder %v521, %v521
          %v543 = vmul.f32 %v521, 16.0
          %v544 = vsel %vm542, -0.0, %v543
          %v545 = vsel %vm541, nan, %v544
        $region57: #{tpu_custom_call.1} parent=31
          #allocation20 [shape = 'u8[4096]{0}', space=vmem, size = 0x1000, scoped, tag = 'scoped memory for tpu_custom_call.1']
          %546 = vst [vmem:[#allocation20] sm:$0xff] %v298
          %v547 = vld [vmem:[#allocation20] sm:$0x3]
          %v548 = vunpack.c.0.f8e4m3b11 %v547
          %v549 = vunpack.c.1.f8e4m3b11 %v547
          %v550 = vunpack.c.2.f8e4m3b11 %v547
          %v551 = vunpack.c.3.f8e4m3b11 %v547
          %v552 = vand.u32 2147483647, %v548
          %vm553 = vcmp.gt.f32.partialorder %v552, 29.0
          %vm554 = vcmp.ne.f32.partialorder %v548, %v548
          %v555 = vmul.f32 %v548, 16.0
          %v556 = vsel %vm554, -0.0, %v555
          %v557 = vsel %vm553, nan, %v556
          %v558 = vand.u32 2147483647, %v549
          %vm559 = vcmp.gt.f32.partialorder %v558, 29.0
          %vm560 = vcmp.ne.f32.partialorder %v549, %v549
          %v561 = vmul.f32 %v549, 16.0
          %v562 = vsel %vm560, -0.0, %v561
          %v563 = vsel %vm559, nan, %v562
          %v564 = vand.u32 2147483647, %v550
          %vm565 = vcmp.gt.f32.partialorder %v564, 29.0
          %vm566 = vcmp.ne.f32.partialorder %v550, %v550
          %v567 = vmul.f32 %v550, 16.0
          %v568 = vsel %vm566, -0.0, %v567
          %v569 = vsel %vm565, nan, %v568
          %v570 = vand.u32 2147483647, %v551
          %vm571 = vcmp.gt.f32.partialorder %v570, 29.0
          %vm572 = vcmp.ne.f32.partialorder %v551, %v551
          %v573 = vmul.f32 %v551, 16.0
          %v574 = vsel %vm572, -0.0, %v573
          %v575 = vsel %vm571, nan, %v574
        $region58: #{tpu_custom_call.1} parent=31
          #allocation21 [shape = 'u8[4096]{0}', space=vmem, size = 0x1000, scoped, tag = 'scoped memory for tpu_custom_call.1']
          %576 = vst [vmem:[#allocation21] sm:$0xff] %v298
          %s577 = scalar_lea.vmem [#allocation21], 2
          %v578 = vld [vmem:[%s577] sm:$0x3]
          %v579 = vunpack.c.0.f8e4m3b11 %v578
          %v580 = vunpack.c.1.f8e4m3b11 %v578
          %v581 = vunpack.c.2.f8e4m3b11 %v578
          %v582 = vunpack.c.3.f8e4m3b11 %v578
          %v583 = vand.u32 2147483647, %v579
          %vm584 = vcmp.gt.f32.partialorder %v583, 29.0
          %vm585 = vcmp.ne.f32.partialorder %v579, %v579
          %v586 = vmul.f32 %v579, 16.0
          %v587 = vsel %vm585, -0.0, %v586
          %v588 = vsel %vm584, nan, %v587
          %v589 = vand.u32 2147483647, %v580
          %vm590 = vcmp.gt.f32.partialorder %v589, 29.0
          %vm591 = vcmp.ne.f32.partialorder %v580, %v580
          %v592 = vmul.f32 %v580, 16.0
          %v593 = vsel %vm591, -0.0, %v592
          %v594 = vsel %vm590, nan, %v593
          %v595 = vand.u32 2147483647, %v581
          %vm596 = vcmp.gt.f32.partialorder %v595, 29.0
          %vm597 = vcmp.ne.f32.partialorder %v581, %v581
          %v598 = vmul.f32 %v581, 16.0
          %v599 = vsel %vm597, -0.0, %v598
          %v600 = vsel %vm596, nan, %v599
          %v601 = vand.u32 2147483647, %v582
          %vm602 = vcmp.gt.f32.partialorder %v601, 29.0
          %vm603 = vcmp.ne.f32.partialorder %v582, %v582
          %v604 = vmul.f32 %v582, 16.0
          %v605 = vsel %vm603, -0.0, %v604
          %v606 = vsel %vm602, nan, %v605
        $region59: #{tpu_custom_call.1} parent=31
          #allocation22 [shape = 'u8[4096]{0}', space=vmem, size = 0x1000, scoped, tag = 'scoped memory for tpu_custom_call.1']
          %607 = vst [vmem:[#allocation22] sm:$0xff] %v298
          %s608 = scalar_lea.vmem [#allocation22], 4
          %v609 = vld [vmem:[%s608] sm:$0x3]
          %v610 = vunpack.c.0.f8e4m3b11 %v609
          %v611 = vunpack.c.1.f8e4m3b11 %v609
          %v612 = vunpack.c.2.f8e4m3b11 %v609
          %v613 = vunpack.c.3.f8e4m3b11 %v609
          %v614 = vand.u32 2147483647, %v610
          %vm615 = vcmp.gt.f32.partialorder %v614, 29.0
          %vm616 = vcmp.ne.f32.partialorder %v610, %v610
          %v617 = vmul.f32 %v610, 16.0
          %v618 = vsel %vm616, -0.0, %v617
          %v619 = vsel %vm615, nan, %v618
          %v620 = vand.u32 2147483647, %v611
          %vm621 = vcmp.gt.f32.partialorder %v620, 29.0
          %vm622 = vcmp.ne.f32.partialorder %v611, %v611
          %v623 = vmul.f32 %v611, 16.0
          %v624 = vsel %vm622, -0.0, %v623
          %v625 = vsel %vm621, nan, %v624
          %v626 = vand.u32 2147483647, %v612
          %vm627 = vcmp.gt.f32.partialorder %v626, 29.0
          %vm628 = vcmp.ne.f32.partialorder %v612, %v612
          %v629 = vmul.f32 %v612, 16.0
          %v630 = vsel %vm628, -0.0, %v629
          %v631 = vsel %vm627, nan, %v630
          %v632 = vand.u32 2147483647, %v613
          %vm633 = vcmp.gt.f32.partialorder %v632, 29.0
          %vm634 = vcmp.ne.f32.partialorder %v613, %v613
          %v635 = vmul.f32 %v613, 16.0
          %v636 = vsel %vm634, -0.0, %v635
          %v637 = vsel %vm633, nan, %v636
        $region60: #{tpu_custom_call.1} parent=31
          #allocation23 [shape = 'u8[4096]{0}', space=vmem, size = 0x1000, scoped, tag = 'scoped memory for tpu_custom_call.1']
          %638 = vst [vmem:[#allocation23] sm:$0xff] %v298
          %s639 = scalar_lea.vmem [#allocation23], 6
          %v640 = vld [vmem:[%s639] sm:$0x3]
          %v641 = vunpack.c.0.f8e4m3b11 %v640
          %v642 = vunpack.c.1.f8e4m3b11 %v640
          %v643 = vunpack.c.2.f8e4m3b11 %v640
          %v644 = vunpack.c.3.f8e4m3b11 %v640
          %v645 = vand.u32 2147483647, %v641
          %vm646 = vcmp.gt.f32.partialorder %v645, 29.0
          %vm647 = vcmp.ne.f32.partialorder %v641, %v641
          %v648 = vmul.f32 %v641, 16.0
          %v649 = vsel %vm647, -0.0, %v648
          %v650 = vsel %vm646, nan, %v649
          %v651 = vand.u32 2147483647, %v642
          %vm652 = vcmp.gt.f32.partialorder %v651, 29.0
          %vm653 = vcmp.ne.f32.partialorder %v642, %v642
          %v654 = vmul.f32 %v642, 16.0
          %v655 = vsel %vm653, -0.0, %v654
          %v656 = vsel %vm652, nan, %v655
          %v657 = vand.u32 2147483647, %v643
          %vm658 = vcmp.gt.f32.partialorder %v657, 29.0
          %vm659 = vcmp.ne.f32.partialorder %v643, %v643
          %v660 = vmul.f32 %v643, 16.0
          %v661 = vsel %vm659, -0.0, %v660
          %v662 = vsel %vm658, nan, %v661
          %v663 = vand.u32 2147483647, %v644
          %vm664 = vcmp.gt.f32.partialorder %v663, 29.0
          %vm665 = vcmp.ne.f32.partialorder %v644, %v644
          %v666 = vmul.f32 %v644, 16.0
          %v667 = vsel %vm665, -0.0, %v666
          %v668 = vsel %vm664, nan, %v667
        $region61: #{tpu_custom_call.1} parent=31
          #allocation24 [shape = 'u8[4096]{0}', space=vmem, size = 0x1000, scoped, tag = 'scoped memory for tpu_custom_call.1']
          %669 = vst [vmem:[#allocation24] sm:$0xff] %v299
          %v670 = vld [vmem:[#allocation24] sm:$0x3]
          %v671 = vunpack.c.0.f8e4m3b11 %v670
          %v672 = vunpack.c.1.f8e4m3b11 %v670
          %v673 = vunpack.c.2.f8e4m3b11 %v670
          %v674 = vunpack.c.3.f8e4m3b11 %v670
          %v675 = vand.u32 2147483647, %v671
          %vm676 = vcmp.gt.f32.partialorder %v675, 29.0
          %vm677 = vcmp.ne.f32.partialorder %v671, %v671
          %v678 = vmul.f32 %v671, 16.0
          %v679 = vsel %vm677, -0.0, %v678
          %v680 = vsel %vm676, nan, %v679
          %v681 = vand.u32 2147483647, %v672
          %vm682 = vcmp.gt.f32.partialorder %v681, 29.0
          %vm683 = vcmp.ne.f32.partialorder %v672, %v672
          %v684 = vmul.f32 %v672, 16.0
          %v685 = vsel %vm683, -0.0, %v684
          %v686 = vsel %vm682, nan, %v685
          %v687 = vand.u32 2147483647, %v673
          %vm688 = vcmp.gt.f32.partialorder %v687, 29.0
          %vm689 = vcmp.ne.f32.partialorder %v673, %v673
          %v690 = vmul.f32 %v673, 16.0
          %v691 = vsel %vm689, -0.0, %v690
          %v692 = vsel %vm688, nan, %v691
          %v693 = vand.u32 2147483647, %v674
          %vm694 = vcmp.gt.f32.partialorder %v693, 29.0
          %vm695 = vcmp.ne.f32.partialorder %v674, %v674
          %v696 = vmul.f32 %v674, 16.0
          %v697 = vsel %vm695, -0.0, %v696
          %v698 = vsel %vm694, nan, %v697
        $region62: #{tpu_custom_call.1} parent=31
          #allocation25 [shape = 'u8[4096]{0}', space=vmem, size = 0x1000, scoped, tag = 'scoped memory for tpu_custom_call.1']
          %699 = vst [vmem:[#allocation25] sm:$0xff] %v299
          %s700 = scalar_lea.vmem [#allocation25], 2
          %v701 = vld [vmem:[%s700] sm:$0x3]
          %v702 = vunpack.c.0.f8e4m3b11 %v701
          %v703 = vunpack.c.1.f8e4m3b11 %v701
          %v704 = vunpack.c.2.f8e4m3b11 %v701
          %v705 = vunpack.c.3.f8e4m3b11 %v701
          %v706 = vand.u32 2147483647, %v702
          %vm707 = vcmp.gt.f32.partialorder %v706, 29.0
          %vm708 = vcmp.ne.f32.partialorder %v702, %v702
          %v709 = vmul.f32 %v702, 16.0
          %v710 = vsel %vm708, -0.0, %v709
          %v711 = vsel %vm707, nan, %v710
          %v712 = vand.u32 2147483647, %v703
          %vm713 = vcmp.gt.f32.partialorder %v712, 29.0
          %vm714 = vcmp.ne.f32.partialorder %v703, %v703
          %v715 = vmul.f32 %v703, 16.0
          %v716 = vsel %vm714, -0.0, %v715
          %v717 = vsel %vm713, nan, %v716
          %v718 = vand.u32 2147483647, %v704
          %vm719 = vcmp.gt.f32.partialorder %v718, 29.0
          %vm720 = vcmp.ne.f32.partialorder %v704, %v704
          %v721 = vmul.f32 %v704, 16.0
          %v722 = vsel %vm720, -0.0, %v721
          %v723 = vsel %vm719, nan, %v722
          %v724 = vand.u32 2147483647, %v705
          %vm725 = vcmp.gt.f32.partialorder %v724, 29.0
          %vm726 = vcmp.ne.f32.partialorder %v705, %v705
          %v727 = vmul.f32 %v705, 16.0
          %v728 = vsel %vm726, -0.0, %v727
          %v729 = vsel %vm725, nan, %v728
        $region63: #{tpu_custom_call.1} parent=31
          #allocation26 [shape = 'u8[4096]{0}', space=vmem, size = 0x1000, scoped, tag = 'scoped memory for tpu_custom_call.1']
          %730 = vst [vmem:[#allocation26] sm:$0xff] %v299
          %s731 = scalar_lea.vmem [#allocation26], 4
          %v732 = vld [vmem:[%s731] sm:$0x3]
          %v733 = vunpack.c.0.f8e4m3b11 %v732
          %v734 = vunpack.c.1.f8e4m3b11 %v732
          %v735 = vunpack.c.2.f8e4m3b11 %v732
          %v736 = vunpack.c.3.f8e4m3b11 %v732
          %v737 = vand.u32 2147483647, %v733
          %vm738 = vcmp.gt.f32.partialorder %v737, 29.0
          %vm739 = vcmp.ne.f32.partialorder %v733, %v733
          %v740 = vmul.f32 %v733, 16.0
          %v741 = vsel %vm739, -0.0, %v740
          %v742 = vsel %vm738, nan, %v741
          %v743 = vand.u32 2147483647, %v734
          %vm744 = vcmp.gt.f32.partialorder %v743, 29.0
          %vm745 = vcmp.ne.f32.partialorder %v734, %v734
          %v746 = vmul.f32 %v734, 16.0
          %v747 = vsel %vm745, -0.0, %v746
          %v748 = vsel %vm744, nan, %v747
          %v749 = vand.u32 2147483647, %v735
          %vm750 = vcmp.gt.f32.partialorder %v749, 29.0
          %vm751 = vcmp.ne.f32.partialorder %v735, %v735
          %v752 = vmul.f32 %v735, 16.0
          %v753 = vsel %vm751, -0.0, %v752
          %v754 = vsel %vm750, nan, %v753
          %v755 = vand.u32 2147483647, %v736
          %vm756 = vcmp.gt.f32.partialorder %v755, 29.0
          %vm757 = vcmp.ne.f32.partialorder %v736, %v736
          %v758 = vmul.f32 %v736, 16.0
          %v759 = vsel %vm757, -0.0, %v758
          %v760 = vsel %vm756, nan, %v759
        $region64: #{tpu_custom_call.1} parent=31
          #allocation27 [shape = 'u8[4096]{0}', space=vmem, size = 0x1000, scoped, tag = 'scoped memory for tpu_custom_call.1']
          %761 = vst [vmem:[#allocation27] sm:$0xff] %v299
          %s762 = scalar_lea.vmem [#allocation27], 6
          %v763 = vld [vmem:[%s762] sm:$0x3]
          %v764 = vunpack.c.0.f8e4m3b11 %v763
          %v765 = vunpack.c.1.f8e4m3b11 %v763
          %v766 = vunpack.c.2.f8e4m3b11 %v763
          %v767 = vunpack.c.3.f8e4m3b11 %v763
          %v768 = vand.u32 2147483647, %v764
          %vm769 = vcmp.gt.f32.partialorder %v768, 29.0
          %vm770 = vcmp.ne.f32.partialorder %v764, %v764
          %v771 = vmul.f32 %v764, 16.0
          %v772 = vsel %vm770, -0.0, %v771
          %v773 = vsel %vm769, nan, %v772
          %v774 = vand.u32 2147483647, %v765
          %vm775 = vcmp.gt.f32.partialorder %v774, 29.0
          %vm776 = vcmp.ne.f32.partialorder %v765, %v765
          %v777 = vmul.f32 %v765, 16.0
          %v778 = vsel %vm776, -0.0, %v777
          %v779 = vsel %vm775, nan, %v778
          %v780 = vand.u32 2147483647, %v766
          %vm781 = vcmp.gt.f32.partialorder %v780, 29.0
          %vm782 = vcmp.ne.f32.partialorder %v766, %v766
          %v783 = vmul.f32 %v766, 16.0
          %v784 = vsel %vm782, -0.0, %v783
          %v785 = vsel %vm781, nan, %v784
          %v786 = vand.u32 2147483647, %v767
          %vm787 = vcmp.gt.f32.partialorder %v786, 29.0
          %vm788 = vcmp.ne.f32.partialorder %v767, %v767
          %v789 = vmul.f32 %v767, 16.0
          %v790 = vsel %vm788, -0.0, %v789
          %v791 = vsel %vm787, nan, %v790
        %v792 = vstv %s295
        %v793 = vmul.f32 %v311, %v792
        %v794 = vmul.f32 %v342, %v792
        %v795 = vmul.f32 %v373, %v792
        %v796 = vmul.f32 %v404, %v792
        %v797 = vmul.f32 %v434, %v792
        %v798 = vmul.f32 %v465, %v792
        %v799 = vmul.f32 %v496, %v792
        %v800 = vmul.f32 %v527, %v792
        %v801 = vmul.f32 %v557, %v792
        %v802 = vmul.f32 %v588, %v792
        %v803 = vmul.f32 %v619, %v792
        %v804 = vmul.f32 %v650, %v792
        %v805 = vmul.f32 %v680, %v792
        %v806 = vmul.f32 %v711, %v792
        %v807 = vmul.f32 %v742, %v792
        %v808 = vmul.f32 %v773, %v792
        %v809 = vpack.c.bf16 %v794, %v793
        %v810 = vpack.c.bf16 %v796, %v795
        %v811 = vpack.c.bf16 %v798, %v797
        %v812 = vpack.c.bf16 %v800, %v799
        %v813 = vpack.c.bf16 %v802, %v801
        %v814 = vpack.c.bf16 %v804, %v803
        %v815 = vpack.c.bf16 %v806, %v805
        %v816 = vpack.c.bf16 %v808, %v807
        %v825 = vunpack.c.l.b16 %v809
        %v826 = vunpack.c.h.b16 %v809
        %v827 = vunpack.c.l.b16 %v810
        %v828 = vunpack.c.h.b16 %v810
        %v829 = vunpack.c.l.b16 %v811
        %v830 = vunpack.c.h.b16 %v811
        %v831 = vunpack.c.l.b16 %v812
        %v832 = vunpack.c.h.b16 %v812
        %v833 = vunpack.c.l.b16 %v813
        %v834 = vunpack.c.h.b16 %v813
        %v835 = vunpack.c.l.b16 %v814
        %v836 = vunpack.c.h.b16 %v814
        %v837 = vunpack.c.l.b16 %v815
        %v838 = vunpack.c.h.b16 %v815
        %v839 = vunpack.c.l.b16 %v816
        %v840 = vunpack.c.h.b16 %v816
        %v841 = vpack.c.b16 %v825, %v825
        %v842 = vpack.c.b16 %v826, %v826
        %v843 = vpack.c.b16 %v827, %v827
        %v844 = vpack.c.b16 %v828, %v828
        %v845 = vpack.c.b16 %v829, %v829
        %v846 = vpack.c.b16 %v830, %v830
        %v847 = vpack.c.b16 %v831, %v831
        %v848 = vpack.c.b16 %v832, %v832
        %v849 = vpack.c.b16 %v833, %v833
        %v850 = vpack.c.b16 %v834, %v834
        %v851 = vpack.c.b16 %v835, %v835
        %v852 = vpack.c.b16 %v836, %v836
        %v853 = vpack.c.b16 %v837, %v837
        %v854 = vpack.c.b16 %v838, %v838
        %v855 = vpack.c.b16 %v839, %v839
        %v856 = vpack.c.b16 %v840, %v840
        %873 = vst [vmem:[#allocation3] sm:$0xf] %v841
        %874 = vst [vmem:[#allocation3 + $0x8] sm:$0xf] %v842
        %875 = vst [vmem:[#allocation3 + $0x10] sm:$0xf] %v843
        %876 = vst [vmem:[#allocation3 + $0x18] sm:$0xf] %v844
        %877 = vst [vmem:[#allocation3 + $0x20] sm:$0xf] %v845
        %878 = vst [vmem:[#allocation3 + $0x28] sm:$0xf] %v846
        %879 = vst [vmem:[#allocation3 + $0x30] sm:$0xf] %v847
        %880 = vst [vmem:[#allocation3 + $0x38] sm:$0xf] %v848
        %881 = vst [vmem:[#allocation3 + $0x40] sm:$0xf] %v849
        %882 = vst [vmem:[#allocation3 + $0x48] sm:$0xf] %v850
        %883 = vst [vmem:[#allocation3 + $0x50] sm:$0xf] %v851
        %884 = vst [vmem:[#allocation3 + $0x58] sm:$0xf] %v852
        %885 = vst [vmem:[#allocation3 + $0x60] sm:$0xf] %v853
        %886 = vst [vmem:[#allocation3 + $0x68] sm:$0xf] %v854
        %887 = vst [vmem:[#allocation3 + $0x70] sm:$0xf] %v855
        %888 = vst [vmem:[#allocation3 + $0x78] sm:$0xf] %v856
        %s889 = sadd.s32 %s293, 1
        %s890 = sadd.s32 %s292, %s889
        %s891 = sld [smem:[#allocation10 + %s890]]
        %v892 = vld [vmem:[%s241 + $0x8] sm:$0xff]
        %v893 = vld [vmem:[%s241 + $0x18] sm:$0xff]
        %v894 = vld [vmem:[%s241 + $0x28] sm:$0xff]
        %v895 = vld [vmem:[%s241 + $0x38] sm:$0xff]
        $region65: #{tpu_custom_call.1} parent=31
          #allocation28 [shape = 'u8[4096]{0}', space=vmem, size = 0x1000, scoped, tag = 'scoped memory for tpu_custom_call.1']
          %896 = vst [vmem:[#allocation28] sm:$0xff] %v892
          %v897 = vld [vmem:[#allocation28] sm:$0x3]
          %v898 = vunpack.c.0.f8e4m3b11 %v897
          %v899 = vunpack.c.1.f8e4m3b11 %v897
          %v900 = vunpack.c.2.f8e4m3b11 %v897
          %v901 = vunpack.c.3.f8e4m3b11 %v897
          %v902 = vand.u32 2147483647, %v898
          %vm903 = vcmp.gt.f32.partialorder %v902, 29.0
          %vm904 = vcmp.ne.f32.partialorder %v898, %v898
          %v905 = vmul.f32 %v898, 16.0
          %v906 = vsel %vm904, -0.0, %v905
          %v907 = vsel %vm903, nan, %v906
          %v908 = vand.u32 2147483647, %v899
          %vm909 = vcmp.gt.f32.partialorder %v908, 29.0
          %vm910 = vcmp.ne.f32.partialorder %v899, %v899
          %v911 = vmul.f32 %v899, 16.0
          %v912 = vsel %vm910, -0.0, %v911
          %v913 = vsel %vm909, nan, %v912
          %v914 = vand.u32 2147483647, %v900
          %vm915 = vcmp.gt.f32.partialorder %v914, 29.0
          %vm916 = vcmp.ne.f32.partialorder %v900, %v900
          %v917 = vmul.f32 %v900, 16.0
          %v918 = vsel %vm916, -0.0, %v917
          %v919 = vsel %vm915, nan, %v918
          %v920 = vand.u32 2147483647, %v901
          %vm921 = vcmp.gt.f32.partialorder %v920, 29.0
          %vm922 = vcmp.ne.f32.partialorder %v901, %v901
          %v923 = vmul.f32 %v901, 16.0
          %v924 = vsel %vm922, -0.0, %v923
          %v925 = vsel %vm921, nan, %v924
        $region66: #{tpu_custom_call.1} parent=31
          #allocation29 [shape = 'u8[4096]{0}', space=vmem, size = 0x1000, scoped, tag = 'scoped memory for tpu_custom_call.1']
          %926 = vst [vmem:[#allocation29] sm:$0xff] %v892
          %s927 = scalar_lea.vmem [#allocation29], 2
          %v928 = vld [vmem:[%s927] sm:$0x3]
          %v929 = vunpack.c.0.f8e4m3b11 %v928
          %v930 = vunpack.c.1.f8e4m3b11 %v928
          %v931 = vunpack.c.2.f8e4m3b11 %v928
          %v932 = vunpack.c.3.f8e4m3b11 %v928
          %v933 = vand.u32 2147483647, %v929
          %vm934 = vcmp.gt.f32.partialorder %v933, 29.0
          %vm935 = vcmp.ne.f32.partialorder %v929, %v929
          %v936 = vmul.f32 %v929, 16.0
          %v937 = vsel %vm935, -0.0, %v936
          %v938 = vsel %vm934, nan, %v937
          %v939 = vand.u32 2147483647, %v930
          %vm940 = vcmp.gt.f32.partialorder %v939, 29.0
          %vm941 = vcmp.ne.f32.partialorder %v930, %v930
          %v942 = vmul.f32 %v930, 16.0
          %v943 = vsel %vm941, -0.0, %v942
          %v944 = vsel %vm940, nan, %v943
          %v945 = vand.u32 2147483647, %v931
          %vm946 = vcmp.gt.f32.partialorder %v945, 29.0
          %vm947 = vcmp.ne.f32.partialorder %v931, %v931
          %v948 = vmul.f32 %v931, 16.0
          %v949 = vsel %vm947, -0.0, %v948
          %v950 = vsel %vm946, nan, %v949
          %v951 = vand.u32 2147483647, %v932
          %vm952 = vcmp.gt.f32.partialorder %v951, 29.0
          %vm953 = vcmp.ne.f32.partialorder %v932, %v932
          %v954 = vmul.f32 %v932, 16.0
          %v955 = vsel %vm953, -0.0, %v954
          %v956 = vsel %vm952, nan, %v955
        $region67: #{tpu_custom_call.1} parent=31
          #allocation30 [shape = 'u8[4096]{0}', space=vmem, size = 0x1000, scoped, tag = 'scoped memory for tpu_custom_call.1']
          %957 = vst [vmem:[#allocation30] sm:$0xff] %v892
          %s958 = scalar_lea.vmem [#allocation30], 4
          %v959 = vld [vmem:[%s958] sm:$0x3]
          %v960 = vunpack.c.0.f8e4m3b11 %v959
          %v961 = vunpack.c.1.f8e4m3b11 %v959
          %v962 = vunpack.c.2.f8e4m3b11 %v959
          %v963 = vunpack.c.3.f8e4m3b11 %v959
          %v964 = vand.u32 2147483647, %v960
          %vm965 = vcmp.gt.f32.partialorder %v964, 29.0
          %vm966 = vcmp.ne.f32.partialorder %v960, %v960
          %v967 = vmul.f32 %v960, 16.0
          %v968 = vsel %vm966, -0.0, %v967
          %v969 = vsel %vm965, nan, %v968
          %v970 = vand.u32 2147483647, %v961
          %vm971 = vcmp.gt.f32.partialorder %v970, 29.0
          %vm972 = vcmp.ne.f32.partialorder %v961, %v961
          %v973 = vmul.f32 %v961, 16.0
          %v974 = vsel %vm972, -0.0, %v973
          %v975 = vsel %vm971, nan, %v974
          %v976 = vand.u32 2147483647, %v962
          %vm977 = vcmp.gt.f32.partialorder %v976, 29.0
          %vm978 = vcmp.ne.f32.partialorder %v962, %v962
          %v979 = vmul.f32 %v962, 16.0
          %v980 = vsel %vm978, -0.0, %v979
          %v981 = vsel %vm977, nan, %v980
          %v982 = vand.u32 2147483647, %v963
          %vm983 = vcmp.gt.f32.partialorder %v982, 29.0
          %vm984 = vcmp.ne.f32.partialorder %v963, %v963
          %v985 = vmul.f32 %v963, 16.0
          %v986 = vsel %vm984, -0.0, %v985
          %v987 = vsel %vm983, nan, %v986
        $region68: #{tpu_custom_call.1} parent=31
          #allocation31 [shape = 'u8[4096]{0}', space=vmem, size = 0x1000, scoped, tag = 'scoped memory for tpu_custom_call.1']
          %988 = vst [vmem:[#allocation31] sm:$0xff] %v892
          %s989 = scalar_lea.vmem [#allocation31], 6
          %v990 = vld [vmem:[%s989] sm:$0x3]
          %v991 = vunpack.c.0.f8e4m3b11 %v990
          %v992 = vunpack.c.1.f8e4m3b11 %v990
          %v993 = vunpack.c.2.f8e4m3b11 %v990
          %v994 = vunpack.c.3.f8e4m3b11 %v990
          %v995 = vand.u32 2147483647, %v991
          %vm996 = vcmp.gt.f32.partialorder %v995, 29.0
          %vm997 = vcmp.ne.f32.partialorder %v991, %v991
          %v998 = vmul.f32 %v991, 16.0
          %v999 = vsel %vm997, -0.0, %v998
          %v1000 = vsel %vm996, nan, %v999
          %v1001 = vand.u32 2147483647, %v992
          %vm1002 = vcmp.gt.f32.partialorder %v1001, 29.0
          %vm1003 = vcmp.ne.f32.partialorder %v992, %v992
          %v1004 = vmul.f32 %v992, 16.0
          %v1005 = vsel %vm1003, -0.0, %v1004
          %v1006 = vsel %vm1002, nan, %v1005
          %v1007 = vand.u32 2147483647, %v993
          %vm1008 = vcmp.gt.f32.partialorder %v1007, 29.0
          %vm1009 = vcmp.ne.f32.partialorder %v993, %v993
          %v1010 = vmul.f32 %v993, 16.0
          %v1011 = vsel %vm1009, -0.0, %v1010
          %v1012 = vsel %vm1008, nan, %v1011
          %v1013 = vand.u32 2147483647, %v994
          %vm1014 = vcmp.gt.f32.partialorder %v1013, 29.0
          %vm1015 = vcmp.ne.f32.partialorder %v994, %v994
          %v1016 = vmul.f32 %v994, 16.0
          %v1017 = vsel %vm1015, -0.0, %v1016
          %v1018 = vsel %vm1014, nan, %v1017
        $region69: #{tpu_custom_call.1} parent=31
          #allocation32 [shape = 'u8[4096]{0}', space=vmem, size = 0x1000, scoped, tag = 'scoped memory for tpu_custom_call.1']
          %1019 = vst [vmem:[#allocation32] sm:$0xff] %v893
          %v1020 = vld [vmem:[#allocation32] sm:$0x3]
          %v1021 = vunpack.c.0.f8e4m3b11 %v1020
          %v1022 = vunpack.c.1.f8e4m3b11 %v1020
          %v1023 = vunpack.c.2.f8e4m3b11 %v1020
          %v1024 = vunpack.c.3.f8e4m3b11 %v1020
          %v1025 = vand.u32 2147483647, %v1021
          %vm1026 = vcmp.gt.f32.partialorder %v1025, 29.0
          %vm1027 = vcmp.ne.f32.partialorder %v1021, %v1021
          %v1028 = vmul.f32 %v1021, 16.0
          %v1029 = vsel %vm1027, -0.0, %v1028
          %v1030 = vsel %vm1026, nan, %v1029
          %v1031 = vand.u32 2147483647, %v1022
          %vm1032 = vcmp.gt.f32.partialorder %v1031, 29.0
          %vm1033 = vcmp.ne.f32.partialorder %v1022, %v1022
          %v1034 = vmul.f32 %v1022, 16.0
          %v1035 = vsel %vm1033, -0.0, %v1034
          %v1036 = vsel %vm1032, nan, %v1035
          %v1037 = vand.u32 2147483647, %v1023
          %vm1038 = vcmp.gt.f32.partialorder %v1037, 29.0
          %vm1039 = vcmp.ne.f32.partialorder %v1023, %v1023
          %v1040 = vmul.f32 %v1023, 16.0
          %v1041 = vsel %vm1039, -0.0, %v1040
          %v1042 = vsel %vm1038, nan, %v1041
          %v1043 = vand.u32 2147483647, %v1024
          %vm1044 = vcmp.gt.f32.partialorder %v1043, 29.0
          %vm1045 = vcmp.ne.f32.partialorder %v1024, %v1024
          %v1046 = vmul.f32 %v1024, 16.0
          %v1047 = vsel %vm1045, -0.0, %v1046
          %v1048 = vsel %vm1044, nan, %v1047
        $region70: #{tpu_custom_call.1} parent=31
          #allocation33 [shape = 'u8[4096]{0}', space=vmem, size = 0x1000, scoped, tag = 'scoped memory for tpu_custom_call.1']
          %1049 = vst [vmem:[#allocation33] sm:$0xff] %v893
          %s1050 = scalar_lea.vmem [#allocation33], 2
          %v1051 = vld [vmem:[%s1050] sm:$0x3]
          %v1052 = vunpack.c.0.f8e4m3b11 %v1051
          %v1053 = vunpack.c.1.f8e4m3b11 %v1051
          %v1054 = vunpack.c.2.f8e4m3b11 %v1051
          %v1055 = vunpack.c.3.f8e4m3b11 %v1051
          %v1056 = vand.u32 2147483647, %v1052
          %vm1057 = vcmp.gt.f32.partialorder %v1056, 29.0
          %vm1058 = vcmp.ne.f32.partialorder %v1052, %v1052
          %v1059 = vmul.f32 %v1052, 16.0
          %v1060 = vsel %vm1058, -0.0, %v1059
          %v1061 = vsel %vm1057, nan, %v1060
          %v1062 = vand.u32 2147483647, %v1053
          %vm1063 = vcmp.gt.f32.partialorder %v1062, 29.0
          %vm1064 = vcmp.ne.f32.partialorder %v1053, %v1053
          %v1065 = vmul.f32 %v1053, 16.0
          %v1066 = vsel %vm1064, -0.0, %v1065
          %v1067 = vsel %vm1063, nan, %v1066
          %v1068 = vand.u32 2147483647, %v1054
          %vm1069 = vcmp.gt.f32.partialorder %v1068, 29.0
          %vm1070 = vcmp.ne.f32.partialorder %v1054, %v1054
          %v1071 = vmul.f32 %v1054, 16.0
          %v1072 = vsel %vm1070, -0.0, %v1071
          %v1073 = vsel %vm1069, nan, %v1072
          %v1074 = vand.u32 2147483647, %v1055
          %vm1075 = vcmp.gt.f32.partialorder %v1074, 29.0
          %vm1076 = vcmp.ne.f32.partialorder %v1055, %v1055
          %v1077 = vmul.f32 %v1055, 16.0
          %v1078 = vsel %vm1076, -0.0, %v1077
          %v1079 = vsel %vm1075, nan, %v1078
        $region71: #{tpu_custom_call.1} parent=31
          #allocation34 [shape = 'u8[4096]{0}', space=vmem, size = 0x1000, scoped, tag = 'scoped memory for tpu_custom_call.1']
          %1080 = vst [vmem:[#allocation34] sm:$0xff] %v893
          %s1081 = scalar_lea.vmem [#allocation34], 4
          %v1082 = vld [vmem:[%s1081] sm:$0x3]
          %v1083 = vunpack.c.0.f8e4m3b11 %v1082
          %v1084 = vunpack.c.1.f8e4m3b11 %v1082
          %v1085 = vunpack.c.2.f8e4m3b11 %v1082
          %v1086 = vunpack.c.3.f8e4m3b11 %v1082
          %v1087 = vand.u32 2147483647, %v1083
          %vm1088 = vcmp.gt.f32.partialorder %v1087, 29.0
          %vm1089 = vcmp.ne.f32.partialorder %v1083, %v1083
          %v1090 = vmul.f32 %v1083, 16.0
          %v1091 = vsel %vm1089, -0.0, %v1090
          %v1092 = vsel %vm1088, nan, %v1091
          %v1093 = vand.u32 2147483647, %v1084
          %vm1094 = vcmp.gt.f32.partialorder %v1093, 29.0
          %vm1095 = vcmp.ne.f32.partialorder %v1084, %v1084
          %v1096 = vmul.f32 %v1084, 16.0
          %v1097 = vsel %vm1095, -0.0, %v1096
          %v1098 = vsel %vm1094, nan, %v1097
          %v1099 = vand.u32 2147483647, %v1085
          %vm1100 = vcmp.gt.f32.partialorder %v1099, 29.0
          %vm1101 = vcmp.ne.f32.partialorder %v1085, %v1085
          %v1102 = vmul.f32 %v1085, 16.0
          %v1103 = vsel %vm1101, -0.0, %v1102
          %v1104 = vsel %vm1100, nan, %v1103
          %v1105 = vand.u32 2147483647, %v1086
          %vm1106 = vcmp.gt.f32.partialorder %v1105, 29.0
          %vm1107 = vcmp.ne.f32.partialorder %v1086, %v1086
          %v1108 = vmul.f32 %v1086, 16.0
          %v1109 = vsel %vm1107, -0.0, %v1108
          %v1110 = vsel %vm1106, nan, %v1109
        $region72: #{tpu_custom_call.1} parent=31
          #allocation35 [shape = 'u8[4096]{0}', space=vmem, size = 0x1000, scoped, tag = 'scoped memory for tpu_custom_call.1']
          %1111 = vst [vmem:[#allocation35] sm:$0xff] %v893
          %s1112 = scalar_lea.vmem [#allocation35], 6
          %v1113 = vld [vmem:[%s1112] sm:$0x3]
          %v1114 = vunpack.c.0.f8e4m3b11 %v1113
          %v1115 = vunpack.c.1.f8e4m3b11 %v1113
          %v1116 = vunpack.c.2.f8e4m3b11 %v1113
          %v1117 = vunpack.c.3.f8e4m3b11 %v1113
          %v1118 = vand.u32 2147483647, %v1114
          %vm1119 = vcmp.gt.f32.partialorder %v1118, 29.0
          %vm1120 = vcmp.ne.f32.partialorder %v1114, %v1114
          %v1121 = vmul.f32 %v1114, 16.0
          %v1122 = vsel %vm1120, -0.0, %v1121
          %v1123 = vsel %vm1119, nan, %v1122
          %v1124 = vand.u32 2147483647, %v1115
          %vm1125 = vcmp.gt.f32.partialorder %v1124, 29.0
          %vm1126 = vcmp.ne.f32.partialorder %v1115, %v1115
          %v1127 = vmul.f32 %v1115, 16.0
          %v1128 = vsel %vm1126, -0.0, %v1127
          %v1129 = vsel %vm1125, nan, %v1128
          %v1130 = vand.u32 2147483647, %v1116
          %vm1131 = vcmp.gt.f32.partialorder %v1130, 29.0
          %vm1132 = vcmp.ne.f32.partialorder %v1116, %v1116
          %v1133 = vmul.f32 %v1116, 16.0
          %v1134 = vsel %vm1132, -0.0, %v1133
          %v1135 = vsel %vm1131, nan, %v1134
          %v1136 = vand.u32 2147483647, %v1117
          %vm1137 = vcmp.gt.f32.partialorder %v1136, 29.0
          %vm1138 = vcmp.ne.f32.partialorder %v1117, %v1117
          %v1139 = vmul.f32 %v1117, 16.0
          %v1140 = vsel %vm1138, -0.0, %v1139
          %v1141 = vsel %vm1137, nan, %v1140
        $region73: #{tpu_custom_call.1} parent=31
          #allocation36 [shape = 'u8[4096]{0}', space=vmem, size = 0x1000, scoped, tag = 'scoped memory for tpu_custom_call.1']
          %1142 = vst [vmem:[#allocation36] sm:$0xff] %v894
          %v1143 = vld [vmem:[#allocation36] sm:$0x3]
          %v1144 = vunpack.c.0.f8e4m3b11 %v1143
          %v1145 = vunpack.c.1.f8e4m3b11 %v1143
          %v1146 = vunpack.c.2.f8e4m3b11 %v1143
          %v1147 = vunpack.c.3.f8e4m3b11 %v1143
          %v1148 = vand.u32 2147483647, %v1144
          %vm1149 = vcmp.gt.f32.partialorder %v1148, 29.0
          %vm1150 = vcmp.ne.f32.partialorder %v1144, %v1144
          %v1151 = vmul.f32 %v1144, 16.0
          %v1152 = vsel %vm1150, -0.0, %v1151
          %v1153 = vsel %vm1149, nan, %v1152
          %v1154 = vand.u32 2147483647, %v1145
          %vm1155 = vcmp.gt.f32.partialorder %v1154, 29.0
          %vm1156 = vcmp.ne.f32.partialorder %v1145, %v1145
          %v1157 = vmul.f32 %v1145, 16.0
          %v1158 = vsel %vm1156, -0.0, %v1157
          %v1159 = vsel %vm1155, nan, %v1158
          %v1160 = vand.u32 2147483647, %v1146
          %vm1161 = vcmp.gt.f32.partialorder %v1160, 29.0
          %vm1162 = vcmp.ne.f32.partialorder %v1146, %v1146
          %v1163 = vmul.f32 %v1146, 16.0
          %v1164 = vsel %vm1162, -0.0, %v1163
          %v1165 = vsel %vm1161, nan, %v1164
          %v1166 = vand.u32 2147483647, %v1147
          %vm1167 = vcmp.gt.f32.partialorder %v1166, 29.0
          %vm1168 = vcmp.ne.f32.partialorder %v1147, %v1147
          %v1169 = vmul.f32 %v1147, 16.0
          %v1170 = vsel %vm1168, -0.0, %v1169
          %v1171 = vsel %vm1167, nan, %v1170
        $region74: #{tpu_custom_call.1} parent=31
          #allocation37 [shape = 'u8[4096]{0}', space=vmem, size = 0x1000, scoped, tag = 'scoped memory for tpu_custom_call.1']
          %1172 = vst [vmem:[#allocation37] sm:$0xff] %v894
          %s1173 = scalar_lea.vmem [#allocation37], 2
          %v1174 = vld [vmem:[%s1173] sm:$0x3]
          %v1175 = vunpack.c.0.f8e4m3b11 %v1174
          %v1176 = vunpack.c.1.f8e4m3b11 %v1174
          %v1177 = vunpack.c.2.f8e4m3b11 %v1174
          %v1178 = vunpack.c.3.f8e4m3b11 %v1174
          %v1179 = vand.u32 2147483647, %v1175
          %vm1180 = vcmp.gt.f32.partialorder %v1179, 29.0
          %vm1181 = vcmp.ne.f32.partialorder %v1175, %v1175
          %v1182 = vmul.f32 %v1175, 16.0
          %v1183 = vsel %vm1181, -0.0, %v1182
          %v1184 = vsel %vm1180, nan, %v1183
          %v1185 = vand.u32 2147483647, %v1176
          %vm1186 = vcmp.gt.f32.partialorder %v1185, 29.0
          %vm1187 = vcmp.ne.f32.partialorder %v1176, %v1176
          %v1188 = vmul.f32 %v1176, 16.0
          %v1189 = vsel %vm1187, -0.0, %v1188
          %v1190 = vsel %vm1186, nan, %v1189
          %v1191 = vand.u32 2147483647, %v1177
          %vm1192 = vcmp.gt.f32.partialorder %v1191, 29.0
          %vm1193 = vcmp.ne.f32.partialorder %v1177, %v1177
          %v1194 = vmul.f32 %v1177, 16.0
          %v1195 = vsel %vm1193, -0.0, %v1194
          %v1196 = vsel %vm1192, nan, %v1195
          %v1197 = vand.u32 2147483647, %v1178
          %vm1198 = vcmp.gt.f32.partialorder %v1197, 29.0
          %vm1199 = vcmp.ne.f32.partialorder %v1178, %v1178
          %v1200 = vmul.f32 %v1178, 16.0
          %v1201 = vsel %vm1199, -0.0, %v1200
          %v1202 = vsel %vm1198, nan, %v1201
        $region75: #{tpu_custom_call.1} parent=31
          #allocation38 [shape = 'u8[4096]{0}', space=vmem, size = 0x1000, scoped, tag = 'scoped memory for tpu_custom_call.1']
          %1203 = vst [vmem:[#allocation38] sm:$0xff] %v894
          %s1204 = scalar_lea.vmem [#allocation38], 4
          %v1205 = vld [vmem:[%s1204] sm:$0x3]
          %v1206 = vunpack.c.0.f8e4m3b11 %v1205
          %v1207 = vunpack.c.1.f8e4m3b11 %v1205
          %v1208 = vunpack.c.2.f8e4m3b11 %v1205
          %v1209 = vunpack.c.3.f8e4m3b11 %v1205
          %v1210 = vand.u32 2147483647, %v1206
          %vm1211 = vcmp.gt.f32.partialorder %v1210, 29.0
          %vm1212 = vcmp.ne.f32.partialorder %v1206, %v1206
          %v1213 = vmul.f32 %v1206, 16.0
          %v1214 = vsel %vm1212, -0.0, %v1213
          %v1215 = vsel %vm1211, nan, %v1214
          %v1216 = vand.u32 2147483647, %v1207
          %vm1217 = vcmp.gt.f32.partialorder %v1216, 29.0
          %vm1218 = vcmp.ne.f32.partialorder %v1207, %v1207
          %v1219 = vmul.f32 %v1207, 16.0
          %v1220 = vsel %vm1218, -0.0, %v1219
          %v1221 = vsel %vm1217, nan, %v1220
          %v1222 = vand.u32 2147483647, %v1208
          %vm1223 = vcmp.gt.f32.partialorder %v1222, 29.0
          %vm1224 = vcmp.ne.f32.partialorder %v1208, %v1208
          %v1225 = vmul.f32 %v1208, 16.0
          %v1226 = vsel %vm1224, -0.0, %v1225
          %v1227 = vsel %vm1223, nan, %v1226
          %v1228 = vand.u32 2147483647, %v1209
          %vm1229 = vcmp.gt.f32.partialorder %v1228, 29.0
          %vm1230 = vcmp.ne.f32.partialorder %v1209, %v1209
          %v1231 = vmul.f32 %v1209, 16.0
          %v1232 = vsel %vm1230, -0.0, %v1231
          %v1233 = vsel %vm1229, nan, %v1232
        $region76: #{tpu_custom_call.1} parent=31
          #allocation39 [shape = 'u8[4096]{0}', space=vmem, size = 0x1000, scoped, tag = 'scoped memory for tpu_custom_call.1']
          %1234 = vst [vmem:[#allocation39] sm:$0xff] %v894
          %s1235 = scalar_lea.vmem [#allocation39], 6
          %v1236 = vld [vmem:[%s1235] sm:$0x3]
          %v1237 = vunpack.c.0.f8e4m3b11 %v1236
          %v1238 = vunpack.c.1.f8e4m3b11 %v1236
          %v1239 = vunpack.c.2.f8e4m3b11 %v1236
          %v1240 = vunpack.c.3.f8e4m3b11 %v1236
          %v1241 = vand.u32 2147483647, %v1237
          %vm1242 = vcmp.gt.f32.partialorder %v1241, 29.0
          %vm1243 = vcmp.ne.f32.partialorder %v1237, %v1237
          %v1244 = vmul.f32 %v1237, 16.0
          %v1245 = vsel %vm1243, -0.0, %v1244
          %v1246 = vsel %vm1242, nan, %v1245
          %v1247 = vand.u32 2147483647, %v1238
          %vm1248 = vcmp.gt.f32.partialorder %v1247, 29.0
          %vm1249 = vcmp.ne.f32.partialorder %v1238, %v1238
          %v1250 = vmul.f32 %v1238, 16.0
          %v1251 = vsel %vm1249, -0.0, %v1250
          %v1252 = vsel %vm1248, nan, %v1251
          %v1253 = vand.u32 2147483647, %v1239
          %vm1254 = vcmp.gt.f32.partialorder %v1253, 29.0
          %vm1255 = vcmp.ne.f32.partialorder %v1239, %v1239
          %v1256 = vmul.f32 %v1239, 16.0
          %v1257 = vsel %vm1255, -0.0, %v1256
          %v1258 = vsel %vm1254, nan, %v1257
          %v1259 = vand.u32 2147483647, %v1240
          %vm1260 = vcmp.gt.f32.partialorder %v1259, 29.0
          %vm1261 = vcmp.ne.f32.partialorder %v1240, %v1240
          %v1262 = vmul.f32 %v1240, 16.0
          %v1263 = vsel %vm1261, -0.0, %v1262
          %v1264 = vsel %vm1260, nan, %v1263
        $region77: #{tpu_custom_call.1} parent=31
          #allocation40 [shape = 'u8[4096]{0}', space=vmem, size = 0x1000, scoped, tag = 'scoped memory for tpu_custom_call.1']
          %1265 = vst [vmem:[#allocation40] sm:$0xff] %v895
          %v1266 = vld [vmem:[#allocation40] sm:$0x3]
          %v1267 = vunpack.c.0.f8e4m3b11 %v1266
          %v1268 = vunpack.c.1.f8e4m3b11 %v1266
          %v1269 = vunpack.c.2.f8e4m3b11 %v1266
          %v1270 = vunpack.c.3.f8e4m3b11 %v1266
          %v1271 = vand.u32 2147483647, %v1267
          %vm1272 = vcmp.gt.f32.partialorder %v1271, 29.0
          %vm1273 = vcmp.ne.f32.partialorder %v1267, %v1267
          %v1274 = vmul.f32 %v1267, 16.0
          %v1275 = vsel %vm1273, -0.0, %v1274
          %v1276 = vsel %vm1272, nan, %v1275
          %v1277 = vand.u32 2147483647, %v1268
          %vm1278 = vcmp.gt.f32.partialorder %v1277, 29.0
          %vm1279 = vcmp.ne.f32.partialorder %v1268, %v1268
          %v1280 = vmul.f32 %v1268, 16.0
          %v1281 = vsel %vm1279, -0.0, %v1280
          %v1282 = vsel %vm1278, nan, %v1281
          %v1283 = vand.u32 2147483647, %v1269
          %vm1284 = vcmp.gt.f32.partialorder %v1283, 29.0
          %vm1285 = vcmp.ne.f32.partialorder %v1269, %v1269
          %v1286 = vmul.f32 %v1269, 16.0
          %v1287 = vsel %vm1285, -0.0, %v1286
          %v1288 = vsel %vm1284, nan, %v1287
          %v1289 = vand.u32 2147483647, %v1270
          %vm1290 = vcmp.gt.f32.partialorder %v1289, 29.0
          %vm1291 = vcmp.ne.f32.partialorder %v1270, %v1270
          %v1292 = vmul.f32 %v1270, 16.0
          %v1293 = vsel %vm1291, -0.0, %v1292
          %v1294 = vsel %vm1290, nan, %v1293
        $region78: #{tpu_custom_call.1} parent=31
          #allocation41 [shape = 'u8[4096]{0}', space=vmem, size = 0x1000, scoped, tag = 'scoped memory for tpu_custom_call.1']
          %1295 = vst [vmem:[#allocation41] sm:$0xff] %v895
          %s1296 = scalar_lea.vmem [#allocation41], 2
          %v1297 = vld [vmem:[%s1296] sm:$0x3]
          %v1298 = vunpack.c.0.f8e4m3b11 %v1297
          %v1299 = vunpack.c.1.f8e4m3b11 %v1297
          %v1300 = vunpack.c.2.f8e4m3b11 %v1297
          %v1301 = vunpack.c.3.f8e4m3b11 %v1297
          %v1302 = vand.u32 2147483647, %v1298
          %vm1303 = vcmp.gt.f32.partialorder %v1302, 29.0
          %vm1304 = vcmp.ne.f32.partialorder %v1298, %v1298
          %v1305 = vmul.f32 %v1298, 16.0
          %v1306 = vsel %vm1304, -0.0, %v1305
          %v1307 = vsel %vm1303, nan, %v1306
          %v1308 = vand.u32 2147483647, %v1299
          %vm1309 = vcmp.gt.f32.partialorder %v1308, 29.0
          %vm1310 = vcmp.ne.f32.partialorder %v1299, %v1299
          %v1311 = vmul.f32 %v1299, 16.0
          %v1312 = vsel %vm1310, -0.0, %v1311
          %v1313 = vsel %vm1309, nan, %v1312
          %v1314 = vand.u32 2147483647, %v1300
          %vm1315 = vcmp.gt.f32.partialorder %v1314, 29.0
          %vm1316 = vcmp.ne.f32.partialorder %v1300, %v1300
          %v1317 = vmul.f32 %v1300, 16.0
          %v1318 = vsel %vm1316, -0.0, %v1317
          %v1319 = vsel %vm1315, nan, %v1318
          %v1320 = vand.u32 2147483647, %v1301
          %vm1321 = vcmp.gt.f32.partialorder %v1320, 29.0
          %vm1322 = vcmp.ne.f32.partialorder %v1301, %v1301
          %v1323 = vmul.f32 %v1301, 16.0
          %v1324 = vsel %vm1322, -0.0, %v1323
          %v1325 = vsel %vm1321, nan, %v1324
        $region79: #{tpu_custom_call.1} parent=31
          #allocation42 [shape = 'u8[4096]{0}', space=vmem, size = 0x1000, scoped, tag = 'scoped memory for tpu_custom_call.1']
          %1326 = vst [vmem:[#allocation42] sm:$0xff] %v895
          %s1327 = scalar_lea.vmem [#allocation42], 4
          %v1328 = vld [vmem:[%s1327] sm:$0x3]
          %v1329 = vunpack.c.0.f8e4m3b11 %v1328
          %v1330 = vunpack.c.1.f8e4m3b11 %v1328
          %v1331 = vunpack.c.2.f8e4m3b11 %v1328
          %v1332 = vunpack.c.3.f8e4m3b11 %v1328
          %v1333 = vand.u32 2147483647, %v1329
          %vm1334 = vcmp.gt.f32.partialorder %v1333, 29.0
          %vm1335 = vcmp.ne.f32.partialorder %v1329, %v1329
          %v1336 = vmul.f32 %v1329, 16.0
          %v1337 = vsel %vm1335, -0.0, %v1336
          %v1338 = vsel %vm1334, nan, %v1337
          %v1339 = vand.u32 2147483647, %v1330
          %vm1340 = vcmp.gt.f32.partialorder %v1339, 29.0
          %vm1341 = vcmp.ne.f32.partialorder %v1330, %v1330
          %v1342 = vmul.f32 %v1330, 16.0
          %v1343 = vsel %vm1341, -0.0, %v1342
          %v1344 = vsel %vm1340, nan, %v1343
          %v1345 = vand.u32 2147483647, %v1331
          %vm1346 = vcmp.gt.f32.partialorder %v1345, 29.0
          %vm1347 = vcmp.ne.f32.partialorder %v1331, %v1331
          %v1348 = vmul.f32 %v1331, 16.0
          %v1349 = vsel %vm1347, -0.0, %v1348
          %v1350 = vsel %vm1346, nan, %v1349
          %v1351 = vand.u32 2147483647, %v1332
          %vm1352 = vcmp.gt.f32.partialorder %v1351, 29.0
          %vm1353 = vcmp.ne.f32.partialorder %v1332, %v1332
          %v1354 = vmul.f32 %v1332, 16.0
          %v1355 = vsel %vm1353, -0.0, %v1354
          %v1356 = vsel %vm1352, nan, %v1355
        $region80: #{tpu_custom_call.1} parent=31
          #allocation43 [shape = 'u8[4096]{0}', space=vmem, size = 0x1000, scoped, tag = 'scoped memory for tpu_custom_call.1']
          %1357 = vst [vmem:[#allocation43] sm:$0xff] %v895
          %s1358 = scalar_lea.vmem [#allocation43], 6
          %v1359 = vld [vmem:[%s1358] sm:$0x3]
          %v1360 = vunpack.c.0.f8e4m3b11 %v1359
          %v1361 = vunpack.c.1.f8e4m3b11 %v1359
          %v1362 = vunpack.c.2.f8e4m3b11 %v1359
          %v1363 = vunpack.c.3.f8e4m3b11 %v1359
          %v1364 = vand.u32 2147483647, %v1360
          %vm1365 = vcmp.gt.f32.partialorder %v1364, 29.0
          %vm1366 = vcmp.ne.f32.partialorder %v1360, %v1360
          %v1367 = vmul.f32 %v1360, 16.0
          %v1368 = vsel %vm1366, -0.0, %v1367
          %v1369 = vsel %vm1365, nan, %v1368
          %v1370 = vand.u32 2147483647, %v1361
          %vm1371 = vcmp.gt.f32.partialorder %v1370, 29.0
          %vm1372 = vcmp.ne.f32.partialorder %v1361, %v1361
          %v1373 = vmul.f32 %v1361, 16.0
          %v1374 = vsel %vm1372, -0.0, %v1373
          %v1375 = vsel %vm1371, nan, %v1374
          %v1376 = vand.u32 2147483647, %v1362
          %vm1377 = vcmp.gt.f32.partialorder %v1376, 29.0
          %vm1378 = vcmp.ne.f32.partialorder %v1362, %v1362
          %v1379 = vmul.f32 %v1362, 16.0
          %v1380 = vsel %vm1378, -0.0, %v1379
          %v1381 = vsel %vm1377, nan, %v1380
          %v1382 = vand.u32 2147483647, %v1363
          %vm1383 = vcmp.gt.f32.partialorder %v1382, 29.0
          %vm1384 = vcmp.ne.f32.partialorder %v1363, %v1363
          %v1385 = vmul.f32 %v1363, 16.0
          %v1386 = vsel %vm1384, -0.0, %v1385
          %v1387 = vsel %vm1383, nan, %v1386
        %v1388 = vstv %s891
        %v1389 = vmul.f32 %v907, %v1388
        %v1390 = vmul.f32 %v938, %v1388
        %v1391 = vmul.f32 %v969, %v1388
        %v1392 = vmul.f32 %v1000, %v1388
        %v1393 = vmul.f32 %v1030, %v1388
        %v1394 = vmul.f32 %v1061, %v1388
        %v1395 = vmul.f32 %v1092, %v1388
        %v1396 = vmul.f32 %v1123, %v1388
        %v1397 = vmul.f32 %v1153, %v1388
        %v1398 = vmul.f32 %v1184, %v1388
        %v1399 = vmul.f32 %v1215, %v1388
        %v1400 = vmul.f32 %v1246, %v1388
        %v1401 = vmul.f32 %v1276, %v1388
        %v1402 = vmul.f32 %v1307, %v1388
        %v1403 = vmul.f32 %v1338, %v1388
        %v1404 = vmul.f32 %v1369, %v1388
        %v1405 = vpack.c.bf16 %v1390, %v1389
        %v1406 = vpack.c.bf16 %v1392, %v1391
        %v1407 = vpack.c.bf16 %v1394, %v1393
        %v1408 = vpack.c.bf16 %v1396, %v1395
        %v1409 = vpack.c.bf16 %v1398, %v1397
        %v1410 = vpack.c.bf16 %v1400, %v1399
        %v1411 = vpack.c.bf16 %v1402, %v1401
        %v1412 = vpack.c.bf16 %v1404, %v1403
        %v1421 = vunpack.c.l.b16 %v1405
        %v1422 = vunpack.c.h.b16 %v1405
        %v1423 = vunpack.c.l.b16 %v1406
        %v1424 = vunpack.c.h.b16 %v1406
        %v1425 = vunpack.c.l.b16 %v1407
        %v1426 = vunpack.c.h.b16 %v1407
        %v1427 = vunpack.c.l.b16 %v1408
        %v1428 = vunpack.c.h.b16 %v1408
        %v1429 = vunpack.c.l.b16 %v1409
        %v1430 = vunpack.c.h.b16 %v1409
        %v1431 = vunpack.c.l.b16 %v1410
        %v1432 = vunpack.c.h.b16 %v1410
        %v1433 = vunpack.c.l.b16 %v1411
        %v1434 = vunpack.c.h.b16 %v1411
        %v1435 = vunpack.c.l.b16 %v1412
        %v1436 = vunpack.c.h.b16 %v1412
        %v1437 = vpack.c.b16 %v1421, %v1421
        %v1438 = vpack.c.b16 %v1422, %v1422
        %v1439 = vpack.c.b16 %v1423, %v1423
        %v1440 = vpack.c.b16 %v1424, %v1424
        %v1441 = vpack.c.b16 %v1425, %v1425
        %v1442 = vpack.c.b16 %v1426, %v1426
        %v1443 = vpack.c.b16 %v1427, %v1427
        %v1444 = vpack.c.b16 %v1428, %v1428
        %v1445 = vpack.c.b16 %v1429, %v1429
        %v1446 = vpack.c.b16 %v1430, %v1430
        %v1447 = vpack.c.b16 %v1431, %v1431
        %v1448 = vpack.c.b16 %v1432, %v1432
        %v1449 = vpack.c.b16 %v1433, %v1433
        %v1450 = vpack.c.b16 %v1434, %v1434
        %v1451 = vpack.c.b16 %v1435, %v1435
        %v1452 = vpack.c.b16 %v1436, %v1436
        %1469 = vst [vmem:[#allocation3 + $0x4] sm:$0xf] %v1437
        %1470 = vst [vmem:[#allocation3 + $0xc] sm:$0xf] %v1438
        %1471 = vst [vmem:[#allocation3 + $0x14] sm:$0xf] %v1439
        %1472 = vst [vmem:[#allocation3 + $0x1c] sm:$0xf] %v1440
        %1473 = vst [vmem:[#allocation3 + $0x24] sm:$0xf] %v1441
        %1474 = vst [vmem:[#allocation3 + $0x2c] sm:$0xf] %v1442
        %1475 = vst [vmem:[#allocation3 + $0x34] sm:$0xf] %v1443
        %1476 = vst [vmem:[#allocation3 + $0x3c] sm:$0xf] %v1444
        %1477 = vst [vmem:[#allocation3 + $0x44] sm:$0xf] %v1445
        %1478 = vst [vmem:[#allocation3 + $0x4c] sm:$0xf] %v1446
        %1479 = vst [vmem:[#allocation3 + $0x54] sm:$0xf] %v1447
        %1480 = vst [vmem:[#allocation3 + $0x5c] sm:$0xf] %v1448
        %1481 = vst [vmem:[#allocation3 + $0x64] sm:$0xf] %v1449
        %1482 = vst [vmem:[#allocation3 + $0x6c] sm:$0xf] %v1450
        %1483 = vst [vmem:[#allocation3 + $0x74] sm:$0xf] %v1451
        %1484 = vst [vmem:[#allocation3 + $0x7c] sm:$0xf] %v1452
        %s1485 = smul.u32 %s30, 2
        %s1486 = sadd.s32 %s1485, 1
        %s1487 = smul.u32 %s1486, 4
        %s1488 = sadd.s32 %s1487, %s293
        %s1489 = sld [smem:[#allocation10 + %s1488]]
        %v1490 = vld [vmem:[%s241 + $0x40] sm:$0xff]
        %v1491 = vld [vmem:[%s241 + $0x50] sm:$0xff]
        %v1492 = vld [vmem:[%s241 + $0x60] sm:$0xff]
        %v1493 = vld [vmem:[%s241 + $0x70] sm:$0xff]
        $region81: #{tpu_custom_call.1} parent=31
          #allocation44 [shape = 'u8[4096]{0}', space=vmem, size = 0x1000, scoped, tag = 'scoped memory for tpu_custom_call.1']
          %1494 = vst [vmem:[#allocation44] sm:$0xff] %v1490
          %v1495 = vld [vmem:[#allocation44] sm:$0x3]
          %v1496 = vunpack.c.0.f8e4m3b11 %v1495
          %v1497 = vunpack.c.1.f8e4m3b11 %v1495
          %v1498 = vunpack.c.2.f8e4m3b11 %v1495
          %v1499 = vunpack.c.3.f8e4m3b11 %v1495
          %v1500 = vand.u32 2147483647, %v1496
          %vm1501 = vcmp.gt.f32.partialorder %v1500, 29.0
          %vm1502 = vcmp.ne.f32.partialorder %v1496, %v1496
          %v1503 = vmul.f32 %v1496, 16.0
          %v1504 = vsel %vm1502, -0.0, %v1503
          %v1505 = vsel %vm1501, nan, %v1504
          %v1506 = vand.u32 2147483647, %v1497
          %vm1507 = vcmp.gt.f32.partialorder %v1506, 29.0
          %vm1508 = vcmp.ne.f32.partialorder %v1497, %v1497
          %v1509 = vmul.f32 %v1497, 16.0
          %v1510 = vsel %vm1508, -0.0, %v1509
          %v1511 = vsel %vm1507, nan, %v1510
          %v1512 = vand.u32 2147483647, %v1498
          %vm1513 = vcmp.gt.f32.partialorder %v1512, 29.0
          %vm1514 = vcmp.ne.f32.partialorder %v1498, %v1498
          %v1515 = vmul.f32 %v1498, 16.0
          %v1516 = vsel %vm1514, -0.0, %v1515
          %v1517 = vsel %vm1513, nan, %v1516
          %v1518 = vand.u32 2147483647, %v1499
          %vm1519 = vcmp.gt.f32.partialorder %v1518, 29.0
          %vm1520 = vcmp.ne.f32.partialorder %v1499, %v1499
          %v1521 = vmul.f32 %v1499, 16.0
          %v1522 = vsel %vm1520, -0.0, %v1521
          %v1523 = vsel %vm1519, nan, %v1522
        $region82: #{tpu_custom_call.1} parent=31
          #allocation45 [shape = 'u8[4096]{0}', space=vmem, size = 0x1000, scoped, tag = 'scoped memory for tpu_custom_call.1']
          %1524 = vst [vmem:[#allocation45] sm:$0xff] %v1490
          %s1525 = scalar_lea.vmem [#allocation45], 2
          %v1526 = vld [vmem:[%s1525] sm:$0x3]
          %v1527 = vunpack.c.0.f8e4m3b11 %v1526
          %v1528 = vunpack.c.1.f8e4m3b11 %v1526
          %v1529 = vunpack.c.2.f8e4m3b11 %v1526
          %v1530 = vunpack.c.3.f8e4m3b11 %v1526
          %v1531 = vand.u32 2147483647, %v1527
          %vm1532 = vcmp.gt.f32.partialorder %v1531, 29.0
          %vm1533 = vcmp.ne.f32.partialorder %v1527, %v1527
          %v1534 = vmul.f32 %v1527, 16.0
          %v1535 = vsel %vm1533, -0.0, %v1534
          %v1536 = vsel %vm1532, nan, %v1535
          %v1537 = vand.u32 2147483647, %v1528
          %vm1538 = vcmp.gt.f32.partialorder %v1537, 29.0
          %vm1539 = vcmp.ne.f32.partialorder %v1528, %v1528
          %v1540 = vmul.f32 %v1528, 16.0
          %v1541 = vsel %vm1539, -0.0, %v1540
          %v1542 = vsel %vm1538, nan, %v1541
          %v1543 = vand.u32 2147483647, %v1529
          %vm1544 = vcmp.gt.f32.partialorder %v1543, 29.0
          %vm1545 = vcmp.ne.f32.partialorder %v1529, %v1529
          %v1546 = vmul.f32 %v1529, 16.0
          %v1547 = vsel %vm1545, -0.0, %v1546
          %v1548 = vsel %vm1544, nan, %v1547
          %v1549 = vand.u32 2147483647, %v1530
          %vm1550 = vcmp.gt.f32.partialorder %v1549, 29.0
          %vm1551 = vcmp.ne.f32.partialorder %v1530, %v1530
          %v1552 = vmul.f32 %v1530, 16.0
          %v1553 = vsel %vm1551, -0.0, %v1552
          %v1554 = vsel %vm1550, nan, %v1553
        $region83: #{tpu_custom_call.1} parent=31
          #allocation46 [shape = 'u8[4096]{0}', space=vmem, size = 0x1000, scoped, tag = 'scoped memory for tpu_custom_call.1']
          %1555 = vst [vmem:[#allocation46] sm:$0xff] %v1490
          %s1556 = scalar_lea.vmem [#allocation46], 4
          %v1557 = vld [vmem:[%s1556] sm:$0x3]
          %v1558 = vunpack.c.0.f8e4m3b11 %v1557
          %v1559 = vunpack.c.1.f8e4m3b11 %v1557
          %v1560 = vunpack.c.2.f8e4m3b11 %v1557
          %v1561 = vunpack.c.3.f8e4m3b11 %v1557
          %v1562 = vand.u32 2147483647, %v1558
          %vm1563 = vcmp.gt.f32.partialorder %v1562, 29.0
          %vm1564 = vcmp.ne.f32.partialorder %v1558, %v1558
          %v1565 = vmul.f32 %v1558, 16.0
          %v1566 = vsel %vm1564, -0.0, %v1565
          %v1567 = vsel %vm1563, nan, %v1566
          %v1568 = vand.u32 2147483647, %v1559
          %vm1569 = vcmp.gt.f32.partialorder %v1568, 29.0
          %vm1570 = vcmp.ne.f32.partialorder %v1559, %v1559
          %v1571 = vmul.f32 %v1559, 16.0
          %v1572 = vsel %vm1570, -0.0, %v1571
          %v1573 = vsel %vm1569, nan, %v1572
          %v1574 = vand.u32 2147483647, %v1560
          %vm1575 = vcmp.gt.f32.partialorder %v1574, 29.0
          %vm1576 = vcmp.ne.f32.partialorder %v1560, %v1560
          %v1577 = vmul.f32 %v1560, 16.0
          %v1578 = vsel %vm1576, -0.0, %v1577
          %v1579 = vsel %vm1575, nan, %v1578
          %v1580 = vand.u32 2147483647, %v1561
          %vm1581 = vcmp.gt.f32.partialorder %v1580, 29.0
          %vm1582 = vcmp.ne.f32.partialorder %v1561, %v1561
          %v1583 = vmul.f32 %v1561, 16.0
          %v1584 = vsel %vm1582, -0.0, %v1583
          %v1585 = vsel %vm1581, nan, %v1584
        $region84: #{tpu_custom_call.1} parent=31
          #allocation47 [shape = 'u8[4096]{0}', space=vmem, size = 0x1000, scoped, tag = 'scoped memory for tpu_custom_call.1']
          %1586 = vst [vmem:[#allocation47] sm:$0xff] %v1490
          %s1587 = scalar_lea.vmem [#allocation47], 6
          %v1588 = vld [vmem:[%s1587] sm:$0x3]
          %v1589 = vunpack.c.0.f8e4m3b11 %v1588
          %v1590 = vunpack.c.1.f8e4m3b11 %v1588
          %v1591 = vunpack.c.2.f8e4m3b11 %v1588
          %v1592 = vunpack.c.3.f8e4m3b11 %v1588
          %v1593 = vand.u32 2147483647, %v1589
          %vm1594 = vcmp.gt.f32.partialorder %v1593, 29.0
          %vm1595 = vcmp.ne.f32.partialorder %v1589, %v1589
          %v1596 = vmul.f32 %v1589, 16.0
          %v1597 = vsel %vm1595, -0.0, %v1596
          %v1598 = vsel %vm1594, nan, %v1597
          %v1599 = vand.u32 2147483647, %v1590
          %vm1600 = vcmp.gt.f32.partialorder %v1599, 29.0
          %vm1601 = vcmp.ne.f32.partialorder %v1590, %v1590
          %v1602 = vmul.f32 %v1590, 16.0
          %v1603 = vsel %vm1601, -0.0, %v1602
          %v1604 = vsel %vm1600, nan, %v1603
          %v1605 = vand.u32 2147483647, %v1591
          %vm1606 = vcmp.gt.f32.partialorder %v1605, 29.0
          %vm1607 = vcmp.ne.f32.partialorder %v1591, %v1591
          %v1608 = vmul.f32 %v1591, 16.0
          %v1609 = vsel %vm1607, -0.0, %v1608
          %v1610 = vsel %vm1606, nan, %v1609
          %v1611 = vand.u32 2147483647, %v1592
          %vm1612 = vcmp.gt.f32.partialorder %v1611, 29.0
          %vm1613 = vcmp.ne.f32.partialorder %v1592, %v1592
          %v1614 = vmul.f32 %v1592, 16.0
          %v1615 = vsel %vm1613, -0.0, %v1614
          %v1616 = vsel %vm1612, nan, %v1615
        $region85: #{tpu_custom_call.1} parent=31
          #allocation48 [shape = 'u8[4096]{0}', space=vmem, size = 0x1000, scoped, tag = 'scoped memory for tpu_custom_call.1']
          %1617 = vst [vmem:[#allocation48] sm:$0xff] %v1491
          %v1618 = vld [vmem:[#allocation48] sm:$0x3]
          %v1619 = vunpack.c.0.f8e4m3b11 %v1618
          %v1620 = vunpack.c.1.f8e4m3b11 %v1618
          %v1621 = vunpack.c.2.f8e4m3b11 %v1618
          %v1622 = vunpack.c.3.f8e4m3b11 %v1618
          %v1623 = vand.u32 2147483647, %v1619
          %vm1624 = vcmp.gt.f32.partialorder %v1623, 29.0
          %vm1625 = vcmp.ne.f32.partialorder %v1619, %v1619
          %v1626 = vmul.f32 %v1619, 16.0
          %v1627 = vsel %vm1625, -0.0, %v1626
          %v1628 = vsel %vm1624, nan, %v1627
          %v1629 = vand.u32 2147483647, %v1620
          %vm1630 = vcmp.gt.f32.partialorder %v1629, 29.0
          %vm1631 = vcmp.ne.f32.partialorder %v1620, %v1620
          %v1632 = vmul.f32 %v1620, 16.0
          %v1633 = vsel %vm1631, -0.0, %v1632
          %v1634 = vsel %vm1630, nan, %v1633
          %v1635 = vand.u32 2147483647, %v1621
          %vm1636 = vcmp.gt.f32.partialorder %v1635, 29.0
          %vm1637 = vcmp.ne.f32.partialorder %v1621, %v1621
          %v1638 = vmul.f32 %v1621, 16.0
          %v1639 = vsel %vm1637, -0.0, %v1638
          %v1640 = vsel %vm1636, nan, %v1639
          %v1641 = vand.u32 2147483647, %v1622
          %vm1642 = vcmp.gt.f32.partialorder %v1641, 29.0
          %vm1643 = vcmp.ne.f32.partialorder %v1622, %v1622
          %v1644 = vmul.f32 %v1622, 16.0
          %v1645 = vsel %vm1643, -0.0, %v1644
          %v1646 = vsel %vm1642, nan, %v1645
        $region86: #{tpu_custom_call.1} parent=31
          #allocation49 [shape = 'u8[4096]{0}', space=vmem, size = 0x1000, scoped, tag = 'scoped memory for tpu_custom_call.1']
          %1647 = vst [vmem:[#allocation49] sm:$0xff] %v1491
          %s1648 = scalar_lea.vmem [#allocation49], 2
          %v1649 = vld [vmem:[%s1648] sm:$0x3]
          %v1650 = vunpack.c.0.f8e4m3b11 %v1649
          %v1651 = vunpack.c.1.f8e4m3b11 %v1649
          %v1652 = vunpack.c.2.f8e4m3b11 %v1649
          %v1653 = vunpack.c.3.f8e4m3b11 %v1649
          %v1654 = vand.u32 2147483647, %v1650
          %vm1655 = vcmp.gt.f32.partialorder %v1654, 29.0
          %vm1656 = vcmp.ne.f32.partialorder %v1650, %v1650
          %v1657 = vmul.f32 %v1650, 16.0
          %v1658 = vsel %vm1656, -0.0, %v1657
          %v1659 = vsel %vm1655, nan, %v1658
          %v1660 = vand.u32 2147483647, %v1651
          %vm1661 = vcmp.gt.f32.partialorder %v1660, 29.0
          %vm1662 = vcmp.ne.f32.partialorder %v1651, %v1651
          %v1663 = vmul.f32 %v1651, 16.0
          %v1664 = vsel %vm1662, -0.0, %v1663
          %v1665 = vsel %vm1661, nan, %v1664
          %v1666 = vand.u32 2147483647, %v1652
          %vm1667 = vcmp.gt.f32.partialorder %v1666, 29.0
          %vm1668 = vcmp.ne.f32.partialorder %v1652, %v1652
          %v1669 = vmul.f32 %v1652, 16.0
          %v1670 = vsel %vm1668, -0.0, %v1669
          %v1671 = vsel %vm1667, nan, %v1670
          %v1672 = vand.u32 2147483647, %v1653
          %vm1673 = vcmp.gt.f32.partialorder %v1672, 29.0
          %vm1674 = vcmp.ne.f32.partialorder %v1653, %v1653
          %v1675 = vmul.f32 %v1653, 16.0
          %v1676 = vsel %vm1674, -0.0, %v1675
          %v1677 = vsel %vm1673, nan, %v1676
        $region87: #{tpu_custom_call.1} parent=31
          #allocation50 [shape = 'u8[4096]{0}', space=vmem, size = 0x1000, scoped, tag = 'scoped memory for tpu_custom_call.1']
          %1678 = vst [vmem:[#allocation50] sm:$0xff] %v1491
          %s1679 = scalar_lea.vmem [#allocation50], 4
          %v1680 = vld [vmem:[%s1679] sm:$0x3]
          %v1681 = vunpack.c.0.f8e4m3b11 %v1680
          %v1682 = vunpack.c.1.f8e4m3b11 %v1680
          %v1683 = vunpack.c.2.f8e4m3b11 %v1680
          %v1684 = vunpack.c.3.f8e4m3b11 %v1680
          %v1685 = vand.u32 2147483647, %v1681
          %vm1686 = vcmp.gt.f32.partialorder %v1685, 29.0
          %vm1687 = vcmp.ne.f32.partialorder %v1681, %v1681
          %v1688 = vmul.f32 %v1681, 16.0
          %v1689 = vsel %vm1687, -0.0, %v1688
          %v1690 = vsel %vm1686, nan, %v1689
          %v1691 = vand.u32 2147483647, %v1682
          %vm1692 = vcmp.gt.f32.partialorder %v1691, 29.0
          %vm1693 = vcmp.ne.f32.partialorder %v1682, %v1682
          %v1694 = vmul.f32 %v1682, 16.0
          %v1695 = vsel %vm1693, -0.0, %v1694
          %v1696 = vsel %vm1692, nan, %v1695
          %v1697 = vand.u32 2147483647, %v1683
          %vm1698 = vcmp.gt.f32.partialorder %v1697, 29.0
          %vm1699 = vcmp.ne.f32.partialorder %v1683, %v1683
          %v1700 = vmul.f32 %v1683, 16.0
          %v1701 = vsel %vm1699, -0.0, %v1700
          %v1702 = vsel %vm1698, nan, %v1701
          %v1703 = vand.u32 2147483647, %v1684
          %vm1704 = vcmp.gt.f32.partialorder %v1703, 29.0
          %vm1705 = vcmp.ne.f32.partialorder %v1684, %v1684
          %v1706 = vmul.f32 %v1684, 16.0
          %v1707 = vsel %vm1705, -0.0, %v1706
          %v1708 = vsel %vm1704, nan, %v1707
        $region88: #{tpu_custom_call.1} parent=31
          #allocation51 [shape = 'u8[4096]{0}', space=vmem, size = 0x1000, scoped, tag = 'scoped memory for tpu_custom_call.1']
          %1709 = vst [vmem:[#allocation51] sm:$0xff] %v1491
          %s1710 = scalar_lea.vmem [#allocation51], 6
          %v1711 = vld [vmem:[%s1710] sm:$0x3]
          %v1712 = vunpack.c.0.f8e4m3b11 %v1711
          %v1713 = vunpack.c.1.f8e4m3b11 %v1711
          %v1714 = vunpack.c.2.f8e4m3b11 %v1711
          %v1715 = vunpack.c.3.f8e4m3b11 %v1711
          %v1716 = vand.u32 2147483647, %v1712
          %vm1717 = vcmp.gt.f32.partialorder %v1716, 29.0
          %vm1718 = vcmp.ne.f32.partialorder %v1712, %v1712
          %v1719 = vmul.f32 %v1712, 16.0
          %v1720 = vsel %vm1718, -0.0, %v1719
          %v1721 = vsel %vm1717, nan, %v1720
          %v1722 = vand.u32 2147483647, %v1713
          %vm1723 = vcmp.gt.f32.partialorder %v1722, 29.0
          %vm1724 = vcmp.ne.f32.partialorder %v1713, %v1713
          %v1725 = vmul.f32 %v1713, 16.0
          %v1726 = vsel %vm1724, -0.0, %v1725
          %v1727 = vsel %vm1723, nan, %v1726
          %v1728 = vand.u32 2147483647, %v1714
          %vm1729 = vcmp.gt.f32.partialorder %v1728, 29.0
          %vm1730 = vcmp.ne.f32.partialorder %v1714, %v1714
          %v1731 = vmul.f32 %v1714, 16.0
          %v1732 = vsel %vm1730, -0.0, %v1731
          %v1733 = vsel %vm1729, nan, %v1732
          %v1734 = vand.u32 2147483647, %v1715
          %vm1735 = vcmp.gt.f32.partialorder %v1734, 29.0
          %vm1736 = vcmp.ne.f32.partialorder %v1715, %v1715
          %v1737 = vmul.f32 %v1715, 16.0
          %v1738 = vsel %vm1736, -0.0, %v1737
          %v1739 = vsel %vm1735, nan, %v1738
        $region89: #{tpu_custom_call.1} parent=31
          #allocation52 [shape = 'u8[4096]{0}', space=vmem, size = 0x1000, scoped, tag = 'scoped memory for tpu_custom_call.1']
          %1740 = vst [vmem:[#allocation52] sm:$0xff] %v1492
          %v1741 = vld [vmem:[#allocation52] sm:$0x3]
          %v1742 = vunpack.c.0.f8e4m3b11 %v1741
          %v1743 = vunpack.c.1.f8e4m3b11 %v1741
          %v1744 = vunpack.c.2.f8e4m3b11 %v1741
          %v1745 = vunpack.c.3.f8e4m3b11 %v1741
          %v1746 = vand.u32 2147483647, %v1742
          %vm1747 = vcmp.gt.f32.partialorder %v1746, 29.0
          %vm1748 = vcmp.ne.f32.partialorder %v1742, %v1742
          %v1749 = vmul.f32 %v1742, 16.0
          %v1750 = vsel %vm1748, -0.0, %v1749
          %v1751 = vsel %vm1747, nan, %v1750
          %v1752 = vand.u32 2147483647, %v1743
          %vm1753 = vcmp.gt.f32.partialorder %v1752, 29.0
          %vm1754 = vcmp.ne.f32.partialorder %v1743, %v1743
          %v1755 = vmul.f32 %v1743, 16.0
          %v1756 = vsel %vm1754, -0.0, %v1755
          %v1757 = vsel %vm1753, nan, %v1756
          %v1758 = vand.u32 2147483647, %v1744
          %vm1759 = vcmp.gt.f32.partialorder %v1758, 29.0
          %vm1760 = vcmp.ne.f32.partialorder %v1744, %v1744
          %v1761 = vmul.f32 %v1744, 16.0
          %v1762 = vsel %vm1760, -0.0, %v1761
          %v1763 = vsel %vm1759, nan, %v1762
          %v1764 = vand.u32 2147483647, %v1745
          %vm1765 = vcmp.gt.f32.partialorder %v1764, 29.0
          %vm1766 = vcmp.ne.f32.partialorder %v1745, %v1745
          %v1767 = vmul.f32 %v1745, 16.0
          %v1768 = vsel %vm1766, -0.0, %v1767
          %v1769 = vsel %vm1765, nan, %v1768
        $region90: #{tpu_custom_call.1} parent=31
          #allocation53 [shape = 'u8[4096]{0}', space=vmem, size = 0x1000, scoped, tag = 'scoped memory for tpu_custom_call.1']
          %1770 = vst [vmem:[#allocation53] sm:$0xff] %v1492
          %s1771 = scalar_lea.vmem [#allocation53], 2
          %v1772 = vld [vmem:[%s1771] sm:$0x3]
          %v1773 = vunpack.c.0.f8e4m3b11 %v1772
          %v1774 = vunpack.c.1.f8e4m3b11 %v1772
          %v1775 = vunpack.c.2.f8e4m3b11 %v1772
          %v1776 = vunpack.c.3.f8e4m3b11 %v1772
          %v1777 = vand.u32 2147483647, %v1773
          %vm1778 = vcmp.gt.f32.partialorder %v1777, 29.0
          %vm1779 = vcmp.ne.f32.partialorder %v1773, %v1773
          %v1780 = vmul.f32 %v1773, 16.0
          %v1781 = vsel %vm1779, -0.0, %v1780
          %v1782 = vsel %vm1778, nan, %v1781
          %v1783 = vand.u32 2147483647, %v1774
          %vm1784 = vcmp.gt.f32.partialorder %v1783, 29.0
          %vm1785 = vcmp.ne.f32.partialorder %v1774, %v1774
          %v1786 = vmul.f32 %v1774, 16.0
          %v1787 = vsel %vm1785, -0.0, %v1786
          %v1788 = vsel %vm1784, nan, %v1787
          %v1789 = vand.u32 2147483647, %v1775
          %vm1790 = vcmp.gt.f32.partialorder %v1789, 29.0
          %vm1791 = vcmp.ne.f32.partialorder %v1775, %v1775
          %v1792 = vmul.f32 %v1775, 16.0
          %v1793 = vsel %vm1791, -0.0, %v1792
          %v1794 = vsel %vm1790, nan, %v1793
          %v1795 = vand.u32 2147483647, %v1776
          %vm1796 = vcmp.gt.f32.partialorder %v1795, 29.0
          %vm1797 = vcmp.ne.f32.partialorder %v1776, %v1776
          %v1798 = vmul.f32 %v1776, 16.0
          %v1799 = vsel %vm1797, -0.0, %v1798
          %v1800 = vsel %vm1796, nan, %v1799
        $region91: #{tpu_custom_call.1} parent=31
          #allocation54 [shape = 'u8[4096]{0}', space=vmem, size = 0x1000, scoped, tag = 'scoped memory for tpu_custom_call.1']
          %1801 = vst [vmem:[#allocation54] sm:$0xff] %v1492
          %s1802 = scalar_lea.vmem [#allocation54], 4
          %v1803 = vld [vmem:[%s1802] sm:$0x3]
          %v1804 = vunpack.c.0.f8e4m3b11 %v1803
          %v1805 = vunpack.c.1.f8e4m3b11 %v1803
          %v1806 = vunpack.c.2.f8e4m3b11 %v1803
          %v1807 = vunpack.c.3.f8e4m3b11 %v1803
          %v1808 = vand.u32 2147483647, %v1804
          %vm1809 = vcmp.gt.f32.partialorder %v1808, 29.0
          %vm1810 = vcmp.ne.f32.partialorder %v1804, %v1804
          %v1811 = vmul.f32 %v1804, 16.0
          %v1812 = vsel %vm1810, -0.0, %v1811
          %v1813 = vsel %vm1809, nan, %v1812
          %v1814 = vand.u32 2147483647, %v1805
          %vm1815 = vcmp.gt.f32.partialorder %v1814, 29.0
          %vm1816 = vcmp.ne.f32.partialorder %v1805, %v1805
          %v1817 = vmul.f32 %v1805, 16.0
          %v1818 = vsel %vm1816, -0.0, %v1817
          %v1819 = vsel %vm1815, nan, %v1818
          %v1820 = vand.u32 2147483647, %v1806
          %vm1821 = vcmp.gt.f32.partialorder %v1820, 29.0
          %vm1822 = vcmp.ne.f32.partialorder %v1806, %v1806
          %v1823 = vmul.f32 %v1806, 16.0
          %v1824 = vsel %vm1822, -0.0, %v1823
          %v1825 = vsel %vm1821, nan, %v1824
          %v1826 = vand.u32 2147483647, %v1807
          %vm1827 = vcmp.gt.f32.partialorder %v1826, 29.0
          %vm1828 = vcmp.ne.f32.partialorder %v1807, %v1807
          %v1829 = vmul.f32 %v1807, 16.0
          %v1830 = vsel %vm1828, -0.0, %v1829
          %v1831 = vsel %vm1827, nan, %v1830
        $region92: #{tpu_custom_call.1} parent=31
          #allocation55 [shape = 'u8[4096]{0}', space=vmem, size = 0x1000, scoped, tag = 'scoped memory for tpu_custom_call.1']
          %1832 = vst [vmem:[#allocation55] sm:$0xff] %v1492
          %s1833 = scalar_lea.vmem [#allocation55], 6
          %v1834 = vld [vmem:[%s1833] sm:$0x3]
          %v1835 = vunpack.c.0.f8e4m3b11 %v1834
          %v1836 = vunpack.c.1.f8e4m3b11 %v1834
          %v1837 = vunpack.c.2.f8e4m3b11 %v1834
          %v1838 = vunpack.c.3.f8e4m3b11 %v1834
          %v1839 = vand.u32 2147483647, %v1835
          %vm1840 = vcmp.gt.f32.partialorder %v1839, 29.0
          %vm1841 = vcmp.ne.f32.partialorder %v1835, %v1835
          %v1842 = vmul.f32 %v1835, 16.0
          %v1843 = vsel %vm1841, -0.0, %v1842
          %v1844 = vsel %vm1840, nan, %v1843
          %v1845 = vand.u32 2147483647, %v1836
          %vm1846 = vcmp.gt.f32.partialorder %v1845, 29.0
          %vm1847 = vcmp.ne.f32.partialorder %v1836, %v1836
          %v1848 = vmul.f32 %v1836, 16.0
          %v1849 = vsel %vm1847, -0.0, %v1848
          %v1850 = vsel %vm1846, nan, %v1849
          %v1851 = vand.u32 2147483647, %v1837
          %vm1852 = vcmp.gt.f32.partialorder %v1851, 29.0
          %vm1853 = vcmp.ne.f32.partialorder %v1837, %v1837
          %v1854 = vmul.f32 %v1837, 16.0
          %v1855 = vsel %vm1853, -0.0, %v1854
          %v1856 = vsel %vm1852, nan, %v1855
          %v1857 = vand.u32 2147483647, %v1838
          %vm1858 = vcmp.gt.f32.partialorder %v1857, 29.0
          %vm1859 = vcmp.ne.f32.partialorder %v1838, %v1838
          %v1860 = vmul.f32 %v1838, 16.0
          %v1861 = vsel %vm1859, -0.0, %v1860
          %v1862 = vsel %vm1858, nan, %v1861
        $region93: #{tpu_custom_call.1} parent=31
          #allocation56 [shape = 'u8[4096]{0}', space=vmem, size = 0x1000, scoped, tag = 'scoped memory for tpu_custom_call.1']
          %1863 = vst [vmem:[#allocation56] sm:$0xff] %v1493
          %v1864 = vld [vmem:[#allocation56] sm:$0x3]
          %v1865 = vunpack.c.0.f8e4m3b11 %v1864
          %v1866 = vunpack.c.1.f8e4m3b11 %v1864
          %v1867 = vunpack.c.2.f8e4m3b11 %v1864
          %v1868 = vunpack.c.3.f8e4m3b11 %v1864
          %v1869 = vand.u32 2147483647, %v1865
          %vm1870 = vcmp.gt.f32.partialorder %v1869, 29.0
          %vm1871 = vcmp.ne.f32.partialorder %v1865, %v1865
          %v1872 = vmul.f32 %v1865, 16.0
          %v1873 = vsel %vm1871, -0.0, %v1872
          %v1874 = vsel %vm1870, nan, %v1873
          %v1875 = vand.u32 2147483647, %v1866
          %vm1876 = vcmp.gt.f32.partialorder %v1875, 29.0
          %vm1877 = vcmp.ne.f32.partialorder %v1866, %v1866
          %v1878 = vmul.f32 %v1866, 16.0
          %v1879 = vsel %vm1877, -0.0, %v1878
          %v1880 = vsel %vm1876, nan, %v1879
          %v1881 = vand.u32 2147483647, %v1867
          %vm1882 = vcmp.gt.f32.partialorder %v1881, 29.0
          %vm1883 = vcmp.ne.f32.partialorder %v1867, %v1867
          %v1884 = vmul.f32 %v1867, 16.0
          %v1885 = vsel %vm1883, -0.0, %v1884
          %v1886 = vsel %vm1882, nan, %v1885
          %v1887 = vand.u32 2147483647, %v1868
          %vm1888 = vcmp.gt.f32.partialorder %v1887, 29.0
          %vm1889 = vcmp.ne.f32.partialorder %v1868, %v1868
          %v1890 = vmul.f32 %v1868, 16.0
          %v1891 = vsel %vm1889, -0.0, %v1890
          %v1892 = vsel %vm1888, nan, %v1891
        $region94: #{tpu_custom_call.1} parent=31
          #allocation57 [shape = 'u8[4096]{0}', space=vmem, size = 0x1000, scoped, tag = 'scoped memory for tpu_custom_call.1']
          %1893 = vst [vmem:[#allocation57] sm:$0xff] %v1493
          %s1894 = scalar_lea.vmem [#allocation57], 2
          %v1895 = vld [vmem:[%s1894] sm:$0x3]
          %v1896 = vunpack.c.0.f8e4m3b11 %v1895
          %v1897 = vunpack.c.1.f8e4m3b11 %v1895
          %v1898 = vunpack.c.2.f8e4m3b11 %v1895
          %v1899 = vunpack.c.3.f8e4m3b11 %v1895
          %v1900 = vand.u32 2147483647, %v1896
          %vm1901 = vcmp.gt.f32.partialorder %v1900, 29.0
          %vm1902 = vcmp.ne.f32.partialorder %v1896, %v1896
          %v1903 = vmul.f32 %v1896, 16.0
          %v1904 = vsel %vm1902, -0.0, %v1903
          %v1905 = vsel %vm1901, nan, %v1904
          %v1906 = vand.u32 2147483647, %v1897
          %vm1907 = vcmp.gt.f32.partialorder %v1906, 29.0
          %vm1908 = vcmp.ne.f32.partialorder %v1897, %v1897
          %v1909 = vmul.f32 %v1897, 16.0
          %v1910 = vsel %vm1908, -0.0, %v1909
          %v1911 = vsel %vm1907, nan, %v1910
          %v1912 = vand.u32 2147483647, %v1898
          %vm1913 = vcmp.gt.f32.partialorder %v1912, 29.0
          %vm1914 = vcmp.ne.f32.partialorder %v1898, %v1898
          %v1915 = vmul.f32 %v1898, 16.0
          %v1916 = vsel %vm1914, -0.0, %v1915
          %v1917 = vsel %vm1913, nan, %v1916
          %v1918 = vand.u32 2147483647, %v1899
          %vm1919 = vcmp.gt.f32.partialorder %v1918, 29.0
          %vm1920 = vcmp.ne.f32.partialorder %v1899, %v1899
          %v1921 = vmul.f32 %v1899, 16.0
          %v1922 = vsel %vm1920, -0.0, %v1921
          %v1923 = vsel %vm1919, nan, %v1922
        $region95: #{tpu_custom_call.1} parent=31
          #allocation58 [shape = 'u8[4096]{0}', space=vmem, size = 0x1000, scoped, tag = 'scoped memory for tpu_custom_call.1']
          %1924 = vst [vmem:[#allocation58] sm:$0xff] %v1493
          %s1925 = scalar_lea.vmem [#allocation58], 4
          %v1926 = vld [vmem:[%s1925] sm:$0x3]
          %v1927 = vunpack.c.0.f8e4m3b11 %v1926
          %v1928 = vunpack.c.1.f8e4m3b11 %v1926
          %v1929 = vunpack.c.2.f8e4m3b11 %v1926
          %v1930 = vunpack.c.3.f8e4m3b11 %v1926
          %v1931 = vand.u32 2147483647, %v1927
          %vm1932 = vcmp.gt.f32.partialorder %v1931, 29.0
          %vm1933 = vcmp.ne.f32.partialorder %v1927, %v1927
          %v1934 = vmul.f32 %v1927, 16.0
          %v1935 = vsel %vm1933, -0.0, %v1934
          %v1936 = vsel %vm1932, nan, %v1935
          %v1937 = vand.u32 2147483647, %v1928
          %vm1938 = vcmp.gt.f32.partialorder %v1937, 29.0
          %vm1939 = vcmp.ne.f32.partialorder %v1928, %v1928
          %v1940 = vmul.f32 %v1928, 16.0
          %v1941 = vsel %vm1939, -0.0, %v1940
          %v1942 = vsel %vm1938, nan, %v1941
          %v1943 = vand.u32 2147483647, %v1929
          %vm1944 = vcmp.gt.f32.partialorder %v1943, 29.0
          %vm1945 = vcmp.ne.f32.partialorder %v1929, %v1929
          %v1946 = vmul.f32 %v1929, 16.0
          %v1947 = vsel %vm1945, -0.0, %v1946
          %v1948 = vsel %vm1944, nan, %v1947
          %v1949 = vand.u32 2147483647, %v1930
          %vm1950 = vcmp.gt.f32.partialorder %v1949, 29.0
          %vm1951 = vcmp.ne.f32.partialorder %v1930, %v1930
          %v1952 = vmul.f32 %v1930, 16.0
          %v1953 = vsel %vm1951, -0.0, %v1952
          %v1954 = vsel %vm1950, nan, %v1953
        $region96: #{tpu_custom_call.1} parent=31
          #allocation59 [shape = 'u8[4096]{0}', space=vmem, size = 0x1000, scoped, tag = 'scoped memory for tpu_custom_call.1']
          %1955 = vst [vmem:[#allocation59] sm:$0xff] %v1493
          %s1956 = scalar_lea.vmem [#allocation59], 6
          %v1957 = vld [vmem:[%s1956] sm:$0x3]
          %v1958 = vunpack.c.0.f8e4m3b11 %v1957
          %v1959 = vunpack.c.1.f8e4m3b11 %v1957
          %v1960 = vunpack.c.2.f8e4m3b11 %v1957
          %v1961 = vunpack.c.3.f8e4m3b11 %v1957
          %v1962 = vand.u32 2147483647, %v1958
          %vm1963 = vcmp.gt.f32.partialorder %v1962, 29.0
          %vm1964 = vcmp.ne.f32.partialorder %v1958, %v1958
          %v1965 = vmul.f32 %v1958, 16.0
          %v1966 = vsel %vm1964, -0.0, %v1965
          %v1967 = vsel %vm1963, nan, %v1966
          %v1968 = vand.u32 2147483647, %v1959
          %vm1969 = vcmp.gt.f32.partialorder %v1968, 29.0
          %vm1970 = vcmp.ne.f32.partialorder %v1959, %v1959
          %v1971 = vmul.f32 %v1959, 16.0
          %v1972 = vsel %vm1970, -0.0, %v1971
          %v1973 = vsel %vm1969, nan, %v1972
          %v1974 = vand.u32 2147483647, %v1960
          %vm1975 = vcmp.gt.f32.partialorder %v1974, 29.0
          %vm1976 = vcmp.ne.f32.partialorder %v1960, %v1960
          %v1977 = vmul.f32 %v1960, 16.0
          %v1978 = vsel %vm1976, -0.0, %v1977
          %v1979 = vsel %vm1975, nan, %v1978
          %v1980 = vand.u32 2147483647, %v1961
          %vm1981 = vcmp.gt.f32.partialorder %v1980, 29.0
          %vm1982 = vcmp.ne.f32.partialorder %v1961, %v1961
          %v1983 = vmul.f32 %v1961, 16.0
          %v1984 = vsel %vm1982, -0.0, %v1983
          %v1985 = vsel %vm1981, nan, %v1984
        %v1986 = vstv %s1489
        %v1987 = vmul.f32 %v1505, %v1986
        %v1988 = vmul.f32 %v1536, %v1986
        %v1989 = vmul.f32 %v1567, %v1986
        %v1990 = vmul.f32 %v1598, %v1986
        %v1991 = vmul.f32 %v1628, %v1986
        %v1992 = vmul.f32 %v1659, %v1986
        %v1993 = vmul.f32 %v1690, %v1986
        %v1994 = vmul.f32 %v1721, %v1986
        %v1995 = vmul.f32 %v1751, %v1986
        %v1996 = vmul.f32 %v1782, %v1986
        %v1997 = vmul.f32 %v1813, %v1986
        %v1998 = vmul.f32 %v1844, %v1986
        %v1999 = vmul.f32 %v1874, %v1986
        %v2000 = vmul.f32 %v1905, %v1986
        %v2001 = vmul.f32 %v1936, %v1986
        %v2002 = vmul.f32 %v1967, %v1986
        %v2003 = vpack.c.bf16 %v1988, %v1987
        %v2004 = vpack.c.bf16 %v1990, %v1989
        %v2005 = vpack.c.bf16 %v1992, %v1991
        %v2006 = vpack.c.bf16 %v1994, %v1993
        %v2007 = vpack.c.bf16 %v1996, %v1995
        %v2008 = vpack.c.bf16 %v1998, %v1997
        %v2009 = vpack.c.bf16 %v2000, %v1999
        %v2010 = vpack.c.bf16 %v2002, %v2001
        %v2019 = vunpack.c.l.b16 %v2003
        %v2020 = vunpack.c.h.b16 %v2003
        %v2021 = vunpack.c.l.b16 %v2004
        %v2022 = vunpack.c.h.b16 %v2004
        %v2023 = vunpack.c.l.b16 %v2005
        %v2024 = vunpack.c.h.b16 %v2005
        %v2025 = vunpack.c.l.b16 %v2006
        %v2026 = vunpack.c.h.b16 %v2006
        %v2027 = vunpack.c.l.b16 %v2007
        %v2028 = vunpack.c.h.b16 %v2007
        %v2029 = vunpack.c.l.b16 %v2008
        %v2030 = vunpack.c.h.b16 %v2008
        %v2031 = vunpack.c.l.b16 %v2009
        %v2032 = vunpack.c.h.b16 %v2009
        %v2033 = vunpack.c.l.b16 %v2010
        %v2034 = vunpack.c.h.b16 %v2010
        %v2035 = vpack.c.b16 %v2019, %v2019
        %v2036 = vpack.c.b16 %v2020, %v2020
        %v2037 = vpack.c.b16 %v2021, %v2021
        %v2038 = vpack.c.b16 %v2022, %v2022
        %v2039 = vpack.c.b16 %v2023, %v2023
        %v2040 = vpack.c.b16 %v2024, %v2024
        %v2041 = vpack.c.b16 %v2025, %v2025
        %v2042 = vpack.c.b16 %v2026, %v2026
        %v2043 = vpack.c.b16 %v2027, %v2027
        %v2044 = vpack.c.b16 %v2028, %v2028
        %v2045 = vpack.c.b16 %v2029, %v2029
        %v2046 = vpack.c.b16 %v2030, %v2030
        %v2047 = vpack.c.b16 %v2031, %v2031
        %v2048 = vpack.c.b16 %v2032, %v2032
        %v2049 = vpack.c.b16 %v2033, %v2033
        %v2050 = vpack.c.b16 %v2034, %v2034
        %2067 = vst [vmem:[#allocation3 + $0x80] sm:$0xf] %v2035
        %2068 = vst [vmem:[#allocation3 + $0x88] sm:$0xf] %v2036
        %2069 = vst [vmem:[#allocation3 + $0x90] sm:$0xf] %v2037
        %2070 = vst [vmem:[#allocation3 + $0x98] sm:$0xf] %v2038
        %2071 = vst [vmem:[#allocation3 + $0xa0] sm:$0xf] %v2039
        %2072 = vst [vmem:[#allocation3 + $0xa8] sm:$0xf] %v2040
        %2073 = vst [vmem:[#allocation3 + $0xb0] sm:$0xf] %v2041
        %2074 = vst [vmem:[#allocation3 + $0xb8] sm:$0xf] %v2042
        %2075 = vst [vmem:[#allocation3 + $0xc0] sm:$0xf] %v2043
        %2076 = vst [vmem:[#allocation3 + $0xc8] sm:$0xf] %v2044
        %2077 = vst [vmem:[#allocation3 + $0xd0] sm:$0xf] %v2045
        %2078 = vst [vmem:[#allocation3 + $0xd8] sm:$0xf] %v2046
        %2079 = vst [vmem:[#allocation3 + $0xe0] sm:$0xf] %v2047
        %2080 = vst [vmem:[#allocation3 + $0xe8] sm:$0xf] %v2048
        %2081 = vst [vmem:[#allocation3 + $0xf0] sm:$0xf] %v2049
        %2082 = vst [vmem:[#allocation3 + $0xf8] sm:$0xf] %v2050
        %s2083 = sadd.s32 %s1487, %s889
        %s2084 = sld [smem:[#allocation10 + %s2083]]
        %v2085 = vld [vmem:[%s241 + $0x48] sm:$0xff]
        %v2086 = vld [vmem:[%s241 + $0x58] sm:$0xff]
        %v2087 = vld [vmem:[%s241 + $0x68] sm:$0xff]
        %v2088 = vld [vmem:[%s241 + $0x78] sm:$0xff]
        $region97: #{tpu_custom_call.1} parent=31
          #allocation60 [shape = 'u8[4096]{0}', space=vmem, size = 0x1000, scoped, tag = 'scoped memory for tpu_custom_call.1']
          %2089 = vst [vmem:[#allocation60] sm:$0xff] %v2085
          %v2090 = vld [vmem:[#allocation60] sm:$0x3]
          %v2091 = vunpack.c.0.f8e4m3b11 %v2090
          %v2092 = vunpack.c.1.f8e4m3b11 %v2090
          %v2093 = vunpack.c.2.f8e4m3b11 %v2090
          %v2094 = vunpack.c.3.f8e4m3b11 %v2090
          %v2095 = vand.u32 2147483647, %v2091
          %vm2096 = vcmp.gt.f32.partialorder %v2095, 29.0
          %vm2097 = vcmp.ne.f32.partialorder %v2091, %v2091
          %v2098 = vmul.f32 %v2091, 16.0
          %v2099 = vsel %vm2097, -0.0, %v2098
          %v2100 = vsel %vm2096, nan, %v2099
          %v2101 = vand.u32 2147483647, %v2092
          %vm2102 = vcmp.gt.f32.partialorder %v2101, 29.0
          %vm2103 = vcmp.ne.f32.partialorder %v2092, %v2092
          %v2104 = vmul.f32 %v2092, 16.0
          %v2105 = vsel %vm2103, -0.0, %v2104
          %v2106 = vsel %vm2102, nan, %v2105
          %v2107 = vand.u32 2147483647, %v2093
          %vm2108 = vcmp.gt.f32.partialorder %v2107, 29.0
          %vm2109 = vcmp.ne.f32.partialorder %v2093, %v2093
          %v2110 = vmul.f32 %v2093, 16.0
          %v2111 = vsel %vm2109, -0.0, %v2110
          %v2112 = vsel %vm2108, nan, %v2111
          %v2113 = vand.u32 2147483647, %v2094
          %vm2114 = vcmp.gt.f32.partialorder %v2113, 29.0
          %vm2115 = vcmp.ne.f32.partialorder %v2094, %v2094
          %v2116 = vmul.f32 %v2094, 16.0
          %v2117 = vsel %vm2115, -0.0, %v2116
          %v2118 = vsel %vm2114, nan, %v2117
        $region98: #{tpu_custom_call.1} parent=31
          #allocation61 [shape = 'u8[4096]{0}', space=vmem, size = 0x1000, scoped, tag = 'scoped memory for tpu_custom_call.1']
          %2119 = vst [vmem:[#allocation61] sm:$0xff] %v2085
          %s2120 = scalar_lea.vmem [#allocation61], 2
          %v2121 = vld [vmem:[%s2120] sm:$0x3]
          %v2122 = vunpack.c.0.f8e4m3b11 %v2121
          %v2123 = vunpack.c.1.f8e4m3b11 %v2121
          %v2124 = vunpack.c.2.f8e4m3b11 %v2121
          %v2125 = vunpack.c.3.f8e4m3b11 %v2121
          %v2126 = vand.u32 2147483647, %v2122
          %vm2127 = vcmp.gt.f32.partialorder %v2126, 29.0
          %vm2128 = vcmp.ne.f32.partialorder %v2122, %v2122
          %v2129 = vmul.f32 %v2122, 16.0
          %v2130 = vsel %vm2128, -0.0, %v2129
          %v2131 = vsel %vm2127, nan, %v2130
          %v2132 = vand.u32 2147483647, %v2123
          %vm2133 = vcmp.gt.f32.partialorder %v2132, 29.0
          %vm2134 = vcmp.ne.f32.partialorder %v2123, %v2123
          %v2135 = vmul.f32 %v2123, 16.0
          %v2136 = vsel %vm2134, -0.0, %v2135
          %v2137 = vsel %vm2133, nan, %v2136
          %v2138 = vand.u32 2147483647, %v2124
          %vm2139 = vcmp.gt.f32.partialorder %v2138, 29.0
          %vm2140 = vcmp.ne.f32.partialorder %v2124, %v2124
          %v2141 = vmul.f32 %v2124, 16.0
          %v2142 = vsel %vm2140, -0.0, %v2141
          %v2143 = vsel %vm2139, nan, %v2142
          %v2144 = vand.u32 2147483647, %v2125
          %vm2145 = vcmp.gt.f32.partialorder %v2144, 29.0
          %vm2146 = vcmp.ne.f32.partialorder %v2125, %v2125
          %v2147 = vmul.f32 %v2125, 16.0
          %v2148 = vsel %vm2146, -0.0, %v2147
          %v2149 = vsel %vm2145, nan, %v2148
        $region99: #{tpu_custom_call.1} parent=31
          #allocation62 [shape = 'u8[4096]{0}', space=vmem, size = 0x1000, scoped, tag = 'scoped memory for tpu_custom_call.1']
          %2150 = vst [vmem:[#allocation62] sm:$0xff] %v2085
          %s2151 = scalar_lea.vmem [#allocation62], 4
          %v2152 = vld [vmem:[%s2151] sm:$0x3]
          %v2153 = vunpack.c.0.f8e4m3b11 %v2152
          %v2154 = vunpack.c.1.f8e4m3b11 %v2152
          %v2155 = vunpack.c.2.f8e4m3b11 %v2152
          %v2156 = vunpack.c.3.f8e4m3b11 %v2152
          %v2157 = vand.u32 2147483647, %v2153
          %vm2158 = vcmp.gt.f32.partialorder %v2157, 29.0
          %vm2159 = vcmp.ne.f32.partialorder %v2153, %v2153
          %v2160 = vmul.f32 %v2153, 16.0
          %v2161 = vsel %vm2159, -0.0, %v2160
          %v2162 = vsel %vm2158, nan, %v2161
          %v2163 = vand.u32 2147483647, %v2154
          %vm2164 = vcmp.gt.f32.partialorder %v2163, 29.0
          %vm2165 = vcmp.ne.f32.partialorder %v2154, %v2154
          %v2166 = vmul.f32 %v2154, 16.0
          %v2167 = vsel %vm2165, -0.0, %v2166
          %v2168 = vsel %vm2164, nan, %v2167
          %v2169 = vand.u32 2147483647, %v2155
          %vm2170 = vcmp.gt.f32.partialorder %v2169, 29.0
          %vm2171 = vcmp.ne.f32.partialorder %v2155, %v2155
          %v2172 = vmul.f32 %v2155, 16.0
          %v2173 = vsel %vm2171, -0.0, %v2172
          %v2174 = vsel %vm2170, nan, %v2173
          %v2175 = vand.u32 2147483647, %v2156
          %vm2176 = vcmp.gt.f32.partialorder %v2175, 29.0
          %vm2177 = vcmp.ne.f32.partialorder %v2156, %v2156
          %v2178 = vmul.f32 %v2156, 16.0
          %v2179 = vsel %vm2177, -0.0, %v2178
          %v2180 = vsel %vm2176, nan, %v2179
        $region100: #{tpu_custom_call.1} parent=31
          #allocation63 [shape = 'u8[4096]{0}', space=vmem, size = 0x1000, scoped, tag = 'scoped memory for tpu_custom_call.1']
          %2181 = vst [vmem:[#allocation63] sm:$0xff] %v2085
          %s2182 = scalar_lea.vmem [#allocation63], 6
          %v2183 = vld [vmem:[%s2182] sm:$0x3]
          %v2184 = vunpack.c.0.f8e4m3b11 %v2183
          %v2185 = vunpack.c.1.f8e4m3b11 %v2183
          %v2186 = vunpack.c.2.f8e4m3b11 %v2183
          %v2187 = vunpack.c.3.f8e4m3b11 %v2183
          %v2188 = vand.u32 2147483647, %v2184
          %vm2189 = vcmp.gt.f32.partialorder %v2188, 29.0
          %vm2190 = vcmp.ne.f32.partialorder %v2184, %v2184
          %v2191 = vmul.f32 %v2184, 16.0
          %v2192 = vsel %vm2190, -0.0, %v2191
          %v2193 = vsel %vm2189, nan, %v2192
          %v2194 = vand.u32 2147483647, %v2185
          %vm2195 = vcmp.gt.f32.partialorder %v2194, 29.0
          %vm2196 = vcmp.ne.f32.partialorder %v2185, %v2185
          %v2197 = vmul.f32 %v2185, 16.0
          %v2198 = vsel %vm2196, -0.0, %v2197
          %v2199 = vsel %vm2195, nan, %v2198
          %v2200 = vand.u32 2147483647, %v2186
          %vm2201 = vcmp.gt.f32.partialorder %v2200, 29.0
          %vm2202 = vcmp.ne.f32.partialorder %v2186, %v2186
          %v2203 = vmul.f32 %v2186, 16.0
          %v2204 = vsel %vm2202, -0.0, %v2203
          %v2205 = vsel %vm2201, nan, %v2204
          %v2206 = vand.u32 2147483647, %v2187
          %vm2207 = vcmp.gt.f32.partialorder %v2206, 29.0
          %vm2208 = vcmp.ne.f32.partialorder %v2187, %v2187
          %v2209 = vmul.f32 %v2187, 16.0
          %v2210 = vsel %vm2208, -0.0, %v2209
          %v2211 = vsel %vm2207, nan, %v2210
        $region101: #{tpu_custom_call.1} parent=31
          #allocation64 [shape = 'u8[4096]{0}', space=vmem, size = 0x1000, scoped, tag = 'scoped memory for tpu_custom_call.1']
          %2212 = vst [vmem:[#allocation64] sm:$0xff] %v2086
          %v2213 = vld [vmem:[#allocation64] sm:$0x3]
          %v2214 = vunpack.c.0.f8e4m3b11 %v2213
          %v2215 = vunpack.c.1.f8e4m3b11 %v2213
          %v2216 = vunpack.c.2.f8e4m3b11 %v2213
          %v2217 = vunpack.c.3.f8e4m3b11 %v2213
          %v2218 = vand.u32 2147483647, %v2214
          %vm2219 = vcmp.gt.f32.partialorder %v2218, 29.0
          %vm2220 = vcmp.ne.f32.partialorder %v2214, %v2214
          %v2221 = vmul.f32 %v2214, 16.0
          %v2222 = vsel %vm2220, -0.0, %v2221
          %v2223 = vsel %vm2219, nan, %v2222
          %v2224 = vand.u32 2147483647, %v2215
          %vm2225 = vcmp.gt.f32.partialorder %v2224, 29.0
          %vm2226 = vcmp.ne.f32.partialorder %v2215, %v2215
          %v2227 = vmul.f32 %v2215, 16.0
          %v2228 = vsel %vm2226, -0.0, %v2227
          %v2229 = vsel %vm2225, nan, %v2228
          %v2230 = vand.u32 2147483647, %v2216
          %vm2231 = vcmp.gt.f32.partialorder %v2230, 29.0
          %vm2232 = vcmp.ne.f32.partialorder %v2216, %v2216
          %v2233 = vmul.f32 %v2216, 16.0
          %v2234 = vsel %vm2232, -0.0, %v2233
          %v2235 = vsel %vm2231, nan, %v2234
          %v2236 = vand.u32 2147483647, %v2217
          %vm2237 = vcmp.gt.f32.partialorder %v2236, 29.0
          %vm2238 = vcmp.ne.f32.partialorder %v2217, %v2217
          %v2239 = vmul.f32 %v2217, 16.0
          %v2240 = vsel %vm2238, -0.0, %v2239
          %v2241 = vsel %vm2237, nan, %v2240
        $region102: #{tpu_custom_call.1} parent=31
          #allocation65 [shape = 'u8[4096]{0}', space=vmem, size = 0x1000, scoped, tag = 'scoped memory for tpu_custom_call.1']
          %2242 = vst [vmem:[#allocation65] sm:$0xff] %v2086
          %s2243 = scalar_lea.vmem [#allocation65], 2
          %v2244 = vld [vmem:[%s2243] sm:$0x3]
          %v2245 = vunpack.c.0.f8e4m3b11 %v2244
          %v2246 = vunpack.c.1.f8e4m3b11 %v2244
          %v2247 = vunpack.c.2.f8e4m3b11 %v2244
          %v2248 = vunpack.c.3.f8e4m3b11 %v2244
          %v2249 = vand.u32 2147483647, %v2245
          %vm2250 = vcmp.gt.f32.partialorder %v2249, 29.0
          %vm2251 = vcmp.ne.f32.partialorder %v2245, %v2245
          %v2252 = vmul.f32 %v2245, 16.0
          %v2253 = vsel %vm2251, -0.0, %v2252
          %v2254 = vsel %vm2250, nan, %v2253
          %v2255 = vand.u32 2147483647, %v2246
          %vm2256 = vcmp.gt.f32.partialorder %v2255, 29.0
          %vm2257 = vcmp.ne.f32.partialorder %v2246, %v2246
          %v2258 = vmul.f32 %v2246, 16.0
          %v2259 = vsel %vm2257, -0.0, %v2258
          %v2260 = vsel %vm2256, nan, %v2259
          %v2261 = vand.u32 2147483647, %v2247
          %vm2262 = vcmp.gt.f32.partialorder %v2261, 29.0
          %vm2263 = vcmp.ne.f32.partialorder %v2247, %v2247
          %v2264 = vmul.f32 %v2247, 16.0
          %v2265 = vsel %vm2263, -0.0, %v2264
          %v2266 = vsel %vm2262, nan, %v2265
          %v2267 = vand.u32 2147483647, %v2248
          %vm2268 = vcmp.gt.f32.partialorder %v2267, 29.0
          %vm2269 = vcmp.ne.f32.partialorder %v2248, %v2248
          %v2270 = vmul.f32 %v2248, 16.0
          %v2271 = vsel %vm2269, -0.0, %v2270
          %v2272 = vsel %vm2268, nan, %v2271
        $region103: #{tpu_custom_call.1} parent=31
          #allocation66 [shape = 'u8[4096]{0}', space=vmem, size = 0x1000, scoped, tag = 'scoped memory for tpu_custom_call.1']
          %2273 = vst [vmem:[#allocation66] sm:$0xff] %v2086
          %s2274 = scalar_lea.vmem [#allocation66], 4
          %v2275 = vld [vmem:[%s2274] sm:$0x3]
          %v2276 = vunpack.c.0.f8e4m3b11 %v2275
          %v2277 = vunpack.c.1.f8e4m3b11 %v2275
          %v2278 = vunpack.c.2.f8e4m3b11 %v2275
          %v2279 = vunpack.c.3.f8e4m3b11 %v2275
          %v2280 = vand.u32 2147483647, %v2276
          %vm2281 = vcmp.gt.f32.partialorder %v2280, 29.0
          %vm2282 = vcmp.ne.f32.partialorder %v2276, %v2276
          %v2283 = vmul.f32 %v2276, 16.0
          %v2284 = vsel %vm2282, -0.0, %v2283
          %v2285 = vsel %vm2281, nan, %v2284
          %v2286 = vand.u32 2147483647, %v2277
          %vm2287 = vcmp.gt.f32.partialorder %v2286, 29.0
          %vm2288 = vcmp.ne.f32.partialorder %v2277, %v2277
          %v2289 = vmul.f32 %v2277, 16.0
          %v2290 = vsel %vm2288, -0.0, %v2289
          %v2291 = vsel %vm2287, nan, %v2290
          %v2292 = vand.u32 2147483647, %v2278
          %vm2293 = vcmp.gt.f32.partialorder %v2292, 29.0
          %vm2294 = vcmp.ne.f32.partialorder %v2278, %v2278
          %v2295 = vmul.f32 %v2278, 16.0
          %v2296 = vsel %vm2294, -0.0, %v2295
          %v2297 = vsel %vm2293, nan, %v2296
          %v2298 = vand.u32 2147483647, %v2279
          %vm2299 = vcmp.gt.f32.partialorder %v2298, 29.0
          %vm2300 = vcmp.ne.f32.partialorder %v2279, %v2279
          %v2301 = vmul.f32 %v2279, 16.0
          %v2302 = vsel %vm2300, -0.0, %v2301
          %v2303 = vsel %vm2299, nan, %v2302
        $region104: #{tpu_custom_call.1} parent=31
          #allocation67 [shape = 'u8[4096]{0}', space=vmem, size = 0x1000, scoped, tag = 'scoped memory for tpu_custom_call.1']
          %2304 = vst [vmem:[#allocation67] sm:$0xff] %v2086
          %s2305 = scalar_lea.vmem [#allocation67], 6
          %v2306 = vld [vmem:[%s2305] sm:$0x3]
          %v2307 = vunpack.c.0.f8e4m3b11 %v2306
          %v2308 = vunpack.c.1.f8e4m3b11 %v2306
          %v2309 = vunpack.c.2.f8e4m3b11 %v2306
          %v2310 = vunpack.c.3.f8e4m3b11 %v2306
          %v2311 = vand.u32 2147483647, %v2307
          %vm2312 = vcmp.gt.f32.partialorder %v2311, 29.0
          %vm2313 = vcmp.ne.f32.partialorder %v2307, %v2307
          %v2314 = vmul.f32 %v2307, 16.0
          %v2315 = vsel %vm2313, -0.0, %v2314
          %v2316 = vsel %vm2312, nan, %v2315
          %v2317 = vand.u32 2147483647, %v2308
          %vm2318 = vcmp.gt.f32.partialorder %v2317, 29.0
          %vm2319 = vcmp.ne.f32.partialorder %v2308, %v2308
          %v2320 = vmul.f32 %v2308, 16.0
          %v2321 = vsel %vm2319, -0.0, %v2320
          %v2322 = vsel %vm2318, nan, %v2321
          %v2323 = vand.u32 2147483647, %v2309
          %vm2324 = vcmp.gt.f32.partialorder %v2323, 29.0
          %vm2325 = vcmp.ne.f32.partialorder %v2309, %v2309
          %v2326 = vmul.f32 %v2309, 16.0
          %v2327 = vsel %vm2325, -0.0, %v2326
          %v2328 = vsel %vm2324, nan, %v2327
          %v2329 = vand.u32 2147483647, %v2310
          %vm2330 = vcmp.gt.f32.partialorder %v2329, 29.0
          %vm2331 = vcmp.ne.f32.partialorder %v2310, %v2310
          %v2332 = vmul.f32 %v2310, 16.0
          %v2333 = vsel %vm2331, -0.0, %v2332
          %v2334 = vsel %vm2330, nan, %v2333
        $region105: #{tpu_custom_call.1} parent=31
          #allocation68 [shape = 'u8[4096]{0}', space=vmem, size = 0x1000, scoped, tag = 'scoped memory for tpu_custom_call.1']
          %2335 = vst [vmem:[#allocation68] sm:$0xff] %v2087
          %v2336 = vld [vmem:[#allocation68] sm:$0x3]
          %v2337 = vunpack.c.0.f8e4m3b11 %v2336
          %v2338 = vunpack.c.1.f8e4m3b11 %v2336
          %v2339 = vunpack.c.2.f8e4m3b11 %v2336
          %v2340 = vunpack.c.3.f8e4m3b11 %v2336
          %v2341 = vand.u32 2147483647, %v2337
          %vm2342 = vcmp.gt.f32.partialorder %v2341, 29.0
          %vm2343 = vcmp.ne.f32.partialorder %v2337, %v2337
          %v2344 = vmul.f32 %v2337, 16.0
          %v2345 = vsel %vm2343, -0.0, %v2344
          %v2346 = vsel %vm2342, nan, %v2345
          %v2347 = vand.u32 2147483647, %v2338
          %vm2348 = vcmp.gt.f32.partialorder %v2347, 29.0
          %vm2349 = vcmp.ne.f32.partialorder %v2338, %v2338
          %v2350 = vmul.f32 %v2338, 16.0
          %v2351 = vsel %vm2349, -0.0, %v2350
          %v2352 = vsel %vm2348, nan, %v2351
          %v2353 = vand.u32 2147483647, %v2339
          %vm2354 = vcmp.gt.f32.partialorder %v2353, 29.0
          %vm2355 = vcmp.ne.f32.partialorder %v2339, %v2339
          %v2356 = vmul.f32 %v2339, 16.0
          %v2357 = vsel %vm2355, -0.0, %v2356
          %v2358 = vsel %vm2354, nan, %v2357
          %v2359 = vand.u32 2147483647, %v2340
          %vm2360 = vcmp.gt.f32.partialorder %v2359, 29.0
          %vm2361 = vcmp.ne.f32.partialorder %v2340, %v2340
          %v2362 = vmul.f32 %v2340, 16.0
          %v2363 = vsel %vm2361, -0.0, %v2362
          %v2364 = vsel %vm2360, nan, %v2363
        $region106: #{tpu_custom_call.1} parent=31
          #allocation69 [shape = 'u8[4096]{0}', space=vmem, size = 0x1000, scoped, tag = 'scoped memory for tpu_custom_call.1']
          %2365 = vst [vmem:[#allocation69] sm:$0xff] %v2087
          %s2366 = scalar_lea.vmem [#allocation69], 2
          %v2367 = vld [vmem:[%s2366] sm:$0x3]
          %v2368 = vunpack.c.0.f8e4m3b11 %v2367
          %v2369 = vunpack.c.1.f8e4m3b11 %v2367
          %v2370 = vunpack.c.2.f8e4m3b11 %v2367
          %v2371 = vunpack.c.3.f8e4m3b11 %v2367
          %v2372 = vand.u32 2147483647, %v2368
          %vm2373 = vcmp.gt.f32.partialorder %v2372, 29.0
          %vm2374 = vcmp.ne.f32.partialorder %v2368, %v2368
          %v2375 = vmul.f32 %v2368, 16.0
          %v2376 = vsel %vm2374, -0.0, %v2375
          %v2377 = vsel %vm2373, nan, %v2376
          %v2378 = vand.u32 2147483647, %v2369
          %vm2379 = vcmp.gt.f32.partialorder %v2378, 29.0
          %vm2380 = vcmp.ne.f32.partialorder %v2369, %v2369
          %v2381 = vmul.f32 %v2369, 16.0
          %v2382 = vsel %vm2380, -0.0, %v2381
          %v2383 = vsel %vm2379, nan, %v2382
          %v2384 = vand.u32 2147483647, %v2370
          %vm2385 = vcmp.gt.f32.partialorder %v2384, 29.0
          %vm2386 = vcmp.ne.f32.partialorder %v2370, %v2370
          %v2387 = vmul.f32 %v2370, 16.0
          %v2388 = vsel %vm2386, -0.0, %v2387
          %v2389 = vsel %vm2385, nan, %v2388
          %v2390 = vand.u32 2147483647, %v2371
          %vm2391 = vcmp.gt.f32.partialorder %v2390, 29.0
          %vm2392 = vcmp.ne.f32.partialorder %v2371, %v2371
          %v2393 = vmul.f32 %v2371, 16.0
          %v2394 = vsel %vm2392, -0.0, %v2393
          %v2395 = vsel %vm2391, nan, %v2394
        $region107: #{tpu_custom_call.1} parent=31
          #allocation70 [shape = 'u8[4096]{0}', space=vmem, size = 0x1000, scoped, tag = 'scoped memory for tpu_custom_call.1']
          %2396 = vst [vmem:[#allocation70] sm:$0xff] %v2087
          %s2397 = scalar_lea.vmem [#allocation70], 4
          %v2398 = vld [vmem:[%s2397] sm:$0x3]
          %v2399 = vunpack.c.0.f8e4m3b11 %v2398
          %v2400 = vunpack.c.1.f8e4m3b11 %v2398
          %v2401 = vunpack.c.2.f8e4m3b11 %v2398
          %v2402 = vunpack.c.3.f8e4m3b11 %v2398
          %v2403 = vand.u32 2147483647, %v2399
          %vm2404 = vcmp.gt.f32.partialorder %v2403, 29.0
          %vm2405 = vcmp.ne.f32.partialorder %v2399, %v2399
          %v2406 = vmul.f32 %v2399, 16.0
          %v2407 = vsel %vm2405, -0.0, %v2406
          %v2408 = vsel %vm2404, nan, %v2407
          %v2409 = vand.u32 2147483647, %v2400
          %vm2410 = vcmp.gt.f32.partialorder %v2409, 29.0
          %vm2411 = vcmp.ne.f32.partialorder %v2400, %v2400
          %v2412 = vmul.f32 %v2400, 16.0
          %v2413 = vsel %vm2411, -0.0, %v2412
          %v2414 = vsel %vm2410, nan, %v2413
          %v2415 = vand.u32 2147483647, %v2401
          %vm2416 = vcmp.gt.f32.partialorder %v2415, 29.0
          %vm2417 = vcmp.ne.f32.partialorder %v2401, %v2401
          %v2418 = vmul.f32 %v2401, 16.0
          %v2419 = vsel %vm2417, -0.0, %v2418
          %v2420 = vsel %vm2416, nan, %v2419
          %v2421 = vand.u32 2147483647, %v2402
          %vm2422 = vcmp.gt.f32.partialorder %v2421, 29.0
          %vm2423 = vcmp.ne.f32.partialorder %v2402, %v2402
          %v2424 = vmul.f32 %v2402, 16.0
          %v2425 = vsel %vm2423, -0.0, %v2424
          %v2426 = vsel %vm2422, nan, %v2425
        $region108: #{tpu_custom_call.1} parent=31
          #allocation71 [shape = 'u8[4096]{0}', space=vmem, size = 0x1000, scoped, tag = 'scoped memory for tpu_custom_call.1']
          %2427 = vst [vmem:[#allocation71] sm:$0xff] %v2087
          %s2428 = scalar_lea.vmem [#allocation71], 6
          %v2429 = vld [vmem:[%s2428] sm:$0x3]
          %v2430 = vunpack.c.0.f8e4m3b11 %v2429
          %v2431 = vunpack.c.1.f8e4m3b11 %v2429
          %v2432 = vunpack.c.2.f8e4m3b11 %v2429
          %v2433 = vunpack.c.3.f8e4m3b11 %v2429
          %v2434 = vand.u32 2147483647, %v2430
          %vm2435 = vcmp.gt.f32.partialorder %v2434, 29.0
          %vm2436 = vcmp.ne.f32.partialorder %v2430, %v2430
          %v2437 = vmul.f32 %v2430, 16.0
          %v2438 = vsel %vm2436, -0.0, %v2437
          %v2439 = vsel %vm2435, nan, %v2438
          %v2440 = vand.u32 2147483647, %v2431
          %vm2441 = vcmp.gt.f32.partialorder %v2440, 29.0
          %vm2442 = vcmp.ne.f32.partialorder %v2431, %v2431
          %v2443 = vmul.f32 %v2431, 16.0
          %v2444 = vsel %vm2442, -0.0, %v2443
          %v2445 = vsel %vm2441, nan, %v2444
          %v2446 = vand.u32 2147483647, %v2432
          %vm2447 = vcmp.gt.f32.partialorder %v2446, 29.0
          %vm2448 = vcmp.ne.f32.partialorder %v2432, %v2432
          %v2449 = vmul.f32 %v2432, 16.0
          %v2450 = vsel %vm2448, -0.0, %v2449
          %v2451 = vsel %vm2447, nan, %v2450
          %v2452 = vand.u32 2147483647, %v2433
          %vm2453 = vcmp.gt.f32.partialorder %v2452, 29.0
          %vm2454 = vcmp.ne.f32.partialorder %v2433, %v2433
          %v2455 = vmul.f32 %v2433, 16.0
          %v2456 = vsel %vm2454, -0.0, %v2455
          %v2457 = vsel %vm2453, nan, %v2456
        $region109: #{tpu_custom_call.1} parent=31
          #allocation72 [shape = 'u8[4096]{0}', space=vmem, size = 0x1000, scoped, tag = 'scoped memory for tpu_custom_call.1']
          %2458 = vst [vmem:[#allocation72] sm:$0xff] %v2088
          %v2459 = vld [vmem:[#allocation72] sm:$0x3]
          %v2460 = vunpack.c.0.f8e4m3b11 %v2459
          %v2461 = vunpack.c.1.f8e4m3b11 %v2459
          %v2462 = vunpack.c.2.f8e4m3b11 %v2459
          %v2463 = vunpack.c.3.f8e4m3b11 %v2459
          %v2464 = vand.u32 2147483647, %v2460
          %vm2465 = vcmp.gt.f32.partialorder %v2464, 29.0
          %vm2466 = vcmp.ne.f32.partialorder %v2460, %v2460
          %v2467 = vmul.f32 %v2460, 16.0
          %v2468 = vsel %vm2466, -0.0, %v2467
          %v2469 = vsel %vm2465, nan, %v2468
          %v2470 = vand.u32 2147483647, %v2461
          %vm2471 = vcmp.gt.f32.partialorder %v2470, 29.0
          %vm2472 = vcmp.ne.f32.partialorder %v2461, %v2461
          %v2473 = vmul.f32 %v2461, 16.0
          %v2474 = vsel %vm2472, -0.0, %v2473
          %v2475 = vsel %vm2471, nan, %v2474
          %v2476 = vand.u32 2147483647, %v2462
          %vm2477 = vcmp.gt.f32.partialorder %v2476, 29.0
          %vm2478 = vcmp.ne.f32.partialorder %v2462, %v2462
          %v2479 = vmul.f32 %v2462, 16.0
          %v2480 = vsel %vm2478, -0.0, %v2479
          %v2481 = vsel %vm2477, nan, %v2480
          %v2482 = vand.u32 2147483647, %v2463
          %vm2483 = vcmp.gt.f32.partialorder %v2482, 29.0
          %vm2484 = vcmp.ne.f32.partialorder %v2463, %v2463
          %v2485 = vmul.f32 %v2463, 16.0
          %v2486 = vsel %vm2484, -0.0, %v2485
          %v2487 = vsel %vm2483, nan, %v2486
        $region110: #{tpu_custom_call.1} parent=31
          #allocation73 [shape = 'u8[4096]{0}', space=vmem, size = 0x1000, scoped, tag = 'scoped memory for tpu_custom_call.1']
          %2488 = vst [vmem:[#allocation73] sm:$0xff] %v2088
          %s2489 = scalar_lea.vmem [#allocation73], 2
          %v2490 = vld [vmem:[%s2489] sm:$0x3]
          %v2491 = vunpack.c.0.f8e4m3b11 %v2490
          %v2492 = vunpack.c.1.f8e4m3b11 %v2490
          %v2493 = vunpack.c.2.f8e4m3b11 %v2490
          %v2494 = vunpack.c.3.f8e4m3b11 %v2490
          %v2495 = vand.u32 2147483647, %v2491
          %vm2496 = vcmp.gt.f32.partialorder %v2495, 29.0
          %vm2497 = vcmp.ne.f32.partialorder %v2491, %v2491
          %v2498 = vmul.f32 %v2491, 16.0
          %v2499 = vsel %vm2497, -0.0, %v2498
          %v2500 = vsel %vm2496, nan, %v2499
          %v2501 = vand.u32 2147483647, %v2492
          %vm2502 = vcmp.gt.f32.partialorder %v2501, 29.0
          %vm2503 = vcmp.ne.f32.partialorder %v2492, %v2492
          %v2504 = vmul.f32 %v2492, 16.0
          %v2505 = vsel %vm2503, -0.0, %v2504
          %v2506 = vsel %vm2502, nan, %v2505
          %v2507 = vand.u32 2147483647, %v2493
          %vm2508 = vcmp.gt.f32.partialorder %v2507, 29.0
          %vm2509 = vcmp.ne.f32.partialorder %v2493, %v2493
          %v2510 = vmul.f32 %v2493, 16.0
          %v2511 = vsel %vm2509, -0.0, %v2510
          %v2512 = vsel %vm2508, nan, %v2511
          %v2513 = vand.u32 2147483647, %v2494
          %vm2514 = vcmp.gt.f32.partialorder %v2513, 29.0
          %vm2515 = vcmp.ne.f32.partialorder %v2494, %v2494
          %v2516 = vmul.f32 %v2494, 16.0
          %v2517 = vsel %vm2515, -0.0, %v2516
          %v2518 = vsel %vm2514, nan, %v2517
        $region111: #{tpu_custom_call.1} parent=31
          #allocation74 [shape = 'u8[4096]{0}', space=vmem, size = 0x1000, scoped, tag = 'scoped memory for tpu_custom_call.1']
          %2519 = vst [vmem:[#allocation74] sm:$0xff] %v2088
          %s2520 = scalar_lea.vmem [#allocation74], 4
          %v2521 = vld [vmem:[%s2520] sm:$0x3]
          %v2522 = vunpack.c.0.f8e4m3b11 %v2521
          %v2523 = vunpack.c.1.f8e4m3b11 %v2521
          %v2524 = vunpack.c.2.f8e4m3b11 %v2521
          %v2525 = vunpack.c.3.f8e4m3b11 %v2521
          %v2526 = vand.u32 2147483647, %v2522
          %vm2527 = vcmp.gt.f32.partialorder %v2526, 29.0
          %vm2528 = vcmp.ne.f32.partialorder %v2522, %v2522
          %v2529 = vmul.f32 %v2522, 16.0
          %v2530 = vsel %vm2528, -0.0, %v2529
          %v2531 = vsel %vm2527, nan, %v2530
          %v2532 = vand.u32 2147483647, %v2523
          %vm2533 = vcmp.gt.f32.partialorder %v2532, 29.0
          %vm2534 = vcmp.ne.f32.partialorder %v2523, %v2523
          %v2535 = vmul.f32 %v2523, 16.0
          %v2536 = vsel %vm2534, -0.0, %v2535
          %v2537 = vsel %vm2533, nan, %v2536
          %v2538 = vand.u32 2147483647, %v2524
          %vm2539 = vcmp.gt.f32.partialorder %v2538, 29.0
          %vm2540 = vcmp.ne.f32.partialorder %v2524, %v2524
          %v2541 = vmul.f32 %v2524, 16.0
          %v2542 = vsel %vm2540, -0.0, %v2541
          %v2543 = vsel %vm2539, nan, %v2542
          %v2544 = vand.u32 2147483647, %v2525
          %vm2545 = vcmp.gt.f32.partialorder %v2544, 29.0
          %vm2546 = vcmp.ne.f32.partialorder %v2525, %v2525
          %v2547 = vmul.f32 %v2525, 16.0
          %v2548 = vsel %vm2546, -0.0, %v2547
          %v2549 = vsel %vm2545, nan, %v2548
        $region112: #{tpu_custom_call.1} parent=31
          #allocation75 [shape = 'u8[4096]{0}', space=vmem, size = 0x1000, scoped, tag = 'scoped memory for tpu_custom_call.1']
          %2550 = vst [vmem:[#allocation75] sm:$0xff] %v2088
          %s2551 = scalar_lea.vmem [#allocation75], 6
          %v2552 = vld [vmem:[%s2551] sm:$0x3]
          %v2553 = vunpack.c.0.f8e4m3b11 %v2552
          %v2554 = vunpack.c.1.f8e4m3b11 %v2552
          %v2555 = vunpack.c.2.f8e4m3b11 %v2552
          %v2556 = vunpack.c.3.f8e4m3b11 %v2552
          %v2557 = vand.u32 2147483647, %v2553
          %vm2558 = vcmp.gt.f32.partialorder %v2557, 29.0
          %vm2559 = vcmp.ne.f32.partialorder %v2553, %v2553
          %v2560 = vmul.f32 %v2553, 16.0
          %v2561 = vsel %vm2559, -0.0, %v2560
          %v2562 = vsel %vm2558, nan, %v2561
          %v2563 = vand.u32 2147483647, %v2554
          %vm2564 = vcmp.gt.f32.partialorder %v2563, 29.0
          %vm2565 = vcmp.ne.f32.partialorder %v2554, %v2554
          %v2566 = vmul.f32 %v2554, 16.0
          %v2567 = vsel %vm2565, -0.0, %v2566
          %v2568 = vsel %vm2564, nan, %v2567
          %v2569 = vand.u32 2147483647, %v2555
          %vm2570 = vcmp.gt.f32.partialorder %v2569, 29.0
          %vm2571 = vcmp.ne.f32.partialorder %v2555, %v2555
          %v2572 = vmul.f32 %v2555, 16.0
          %v2573 = vsel %vm2571, -0.0, %v2572
          %v2574 = vsel %vm2570, nan, %v2573
          %v2575 = vand.u32 2147483647, %v2556
          %vm2576 = vcmp.gt.f32.partialorder %v2575, 29.0
          %vm2577 = vcmp.ne.f32.partialorder %v2556, %v2556
          %v2578 = vmul.f32 %v2556, 16.0
          %v2579 = vsel %vm2577, -0.0, %v2578
          %v2580 = vsel %vm2576, nan, %v2579
        %v2581 = vstv %s2084
        %v2582 = vmul.f32 %v2100, %v2581
        %v2583 = vmul.f32 %v2131, %v2581
        %v2584 = vmul.f32 %v2162, %v2581
        %v2585 = vmul.f32 %v2193, %v2581
        %v2586 = vmul.f32 %v2223, %v2581
        %v2587 = vmul.f32 %v2254, %v2581
        %v2588 = vmul.f32 %v2285, %v2581
        %v2589 = vmul.f32 %v2316, %v2581
        %v2590 = vmul.f32 %v2346, %v2581
        %v2591 = vmul.f32 %v2377, %v2581
        %v2592 = vmul.f32 %v2408, %v2581
        %v2593 = vmul.f32 %v2439, %v2581
        %v2594 = vmul.f32 %v2469, %v2581
        %v2595 = vmul.f32 %v2500, %v2581
        %v2596 = vmul.f32 %v2531, %v2581
        %v2597 = vmul.f32 %v2562, %v2581
        %v2598 = vpack.c.bf16 %v2583, %v2582
        %v2599 = vpack.c.bf16 %v2585, %v2584
        %v2600 = vpack.c.bf16 %v2587, %v2586
        %v2601 = vpack.c.bf16 %v2589, %v2588
        %v2602 = vpack.c.bf16 %v2591, %v2590
        %v2603 = vpack.c.bf16 %v2593, %v2592
        %v2604 = vpack.c.bf16 %v2595, %v2594
        %v2605 = vpack.c.bf16 %v2597, %v2596
        %v2614 = vunpack.c.l.b16 %v2598
        %v2615 = vunpack.c.h.b16 %v2598
        %v2616 = vunpack.c.l.b16 %v2599
        %v2617 = vunpack.c.h.b16 %v2599
        %v2618 = vunpack.c.l.b16 %v2600
        %v2619 = vunpack.c.h.b16 %v2600
        %v2620 = vunpack.c.l.b16 %v2601
        %v2621 = vunpack.c.h.b16 %v2601
        %v2622 = vunpack.c.l.b16 %v2602
        %v2623 = vunpack.c.h.b16 %v2602
        %v2624 = vunpack.c.l.b16 %v2603
        %v2625 = vunpack.c.h.b16 %v2603
        %v2626 = vunpack.c.l.b16 %v2604
        %v2627 = vunpack.c.h.b16 %v2604
        %v2628 = vunpack.c.l.b16 %v2605
        %v2629 = vunpack.c.h.b16 %v2605
        %v2630 = vpack.c.b16 %v2614, %v2614
        %v2631 = vpack.c.b16 %v2615, %v2615
        %v2632 = vpack.c.b16 %v2616, %v2616
        %v2633 = vpack.c.b16 %v2617, %v2617
        %v2634 = vpack.c.b16 %v2618, %v2618
        %v2635 = vpack.c.b16 %v2619, %v2619
        %v2636 = vpack.c.b16 %v2620, %v2620
        %v2637 = vpack.c.b16 %v2621, %v2621
        %v2638 = vpack.c.b16 %v2622, %v2622
        %v2639 = vpack.c.b16 %v2623, %v2623
        %v2640 = vpack.c.b16 %v2624, %v2624
        %v2641 = vpack.c.b16 %v2625, %v2625
        %v2642 = vpack.c.b16 %v2626, %v2626
        %v2643 = vpack.c.b16 %v2627, %v2627
        %v2644 = vpack.c.b16 %v2628, %v2628
        %v2645 = vpack.c.b16 %v2629, %v2629
        %2662 = vst [vmem:[#allocation3 + $0x84] sm:$0xf] %v2630
        %2663 = vst [vmem:[#allocation3 + $0x8c] sm:$0xf] %v2631
        %2664 = vst [vmem:[#allocation3 + $0x94] sm:$0xf] %v2632
        %2665 = vst [vmem:[#allocation3 + $0x9c] sm:$0xf] %v2633
        %2666 = vst [vmem:[#allocation3 + $0xa4] sm:$0xf] %v2634
        %2667 = vst [vmem:[#allocation3 + $0xac] sm:$0xf] %v2635
        %2668 = vst [vmem:[#allocation3 + $0xb4] sm:$0xf] %v2636
        %2669 = vst [vmem:[#allocation3 + $0xbc] sm:$0xf] %v2637
        %2670 = vst [vmem:[#allocation3 + $0xc4] sm:$0xf] %v2638
        %2671 = vst [vmem:[#allocation3 + $0xcc] sm:$0xf] %v2639
        %2672 = vst [vmem:[#allocation3 + $0xd4] sm:$0xf] %v2640
        %2673 = vst [vmem:[#allocation3 + $0xdc] sm:$0xf] %v2641
        %2674 = vst [vmem:[#allocation3 + $0xe4] sm:$0xf] %v2642
        %2675 = vst [vmem:[#allocation3 + $0xec] sm:$0xf] %v2643
        %2676 = vst [vmem:[#allocation3 + $0xf4] sm:$0xf] %v2644
        %2677 = vst [vmem:[#allocation3 + $0xfc] sm:$0xf] %v2645
        %v2678 = vld [vmem:[#allocation2] sm:$0xff]
        %v2679 = vld [vmem:[#allocation2 + $0x8] sm:$0xff]
        %v2680 = vld [vmem:[#allocation2 + $0x10] sm:$0xff]
        %v2681 = vld [vmem:[#allocation2 + $0x18] sm:$0xff]
        %v2682 = vld [vmem:[#allocation2 + $0x20] sm:$0xff]
        %v2683 = vld [vmem:[#allocation2 + $0x28] sm:$0xff]
        %v2684 = vld [vmem:[#allocation2 + $0x30] sm:$0xff]
        %v2685 = vld [vmem:[#allocation2 + $0x38] sm:$0xff]
        %v2686 = vld [vmem:[%s232] sm:$0xff]
        %v2687 = vld [vmem:[%s232 + $0x8] sm:$0xff]
        %v2688 = vld [vmem:[%s232 + $0x10] sm:$0xff]
        %v2689 = vld [vmem:[%s232 + $0x18] sm:$0xff]
        %v2690 = vld [vmem:[#allocation3] sm:$0xff]
        %v2691 = vld [vmem:[#allocation3 + $0x8] sm:$0xff]
        %v2692 = vld [vmem:[#allocation3 + $0x10] sm:$0xff]
        %v2693 = vld [vmem:[#allocation3 + $0x18] sm:$0xff]
        %v2694 = vld [vmem:[#allocation3 + $0x20] sm:$0xff]
        %v2695 = vld [vmem:[#allocation3 + $0x28] sm:$0xff]
        %v2696 = vld [vmem:[#allocation3 + $0x30] sm:$0xff]
        %v2697 = vld [vmem:[#allocation3 + $0x38] sm:$0xff]
        %v2698 = vld [vmem:[#allocation3 + $0x40] sm:$0xff]
        %v2699 = vld [vmem:[#allocation3 + $0x48] sm:$0xff]
        %v2700 = vld [vmem:[#allocation3 + $0x50] sm:$0xff]
        %v2701 = vld [vmem:[#allocation3 + $0x58] sm:$0xff]
        %v2702 = vld [vmem:[#allocation3 + $0x60] sm:$0xff]
        %v2703 = vld [vmem:[#allocation3 + $0x68] sm:$0xff]
        %v2704 = vld [vmem:[#allocation3 + $0x70] sm:$0xff]
        %v2705 = vld [vmem:[#allocation3 + $0x78] sm:$0xff]
        %v2706 = vld [vmem:[#allocation3 + $0x80] sm:$0xff]
        %v2707 = vld [vmem:[#allocation3 + $0x88] sm:$0xff]
        %v2708 = vld [vmem:[#allocation3 + $0x90] sm:$0xff]
        %v2709 = vld [vmem:[#allocation3 + $0x98] sm:$0xff]
        %v2710 = vld [vmem:[#allocation3 + $0xa0] sm:$0xff]
        %v2711 = vld [vmem:[#allocation3 + $0xa8] sm:$0xff]
        %v2712 = vld [vmem:[#allocation3 + $0xb0] sm:$0xff]
        %v2713 = vld [vmem:[#allocation3 + $0xb8] sm:$0xff]
        %v2714 = vld [vmem:[#allocation3 + $0xc0] sm:$0xff]
        %v2715 = vld [vmem:[#allocation3 + $0xc8] sm:$0xff]
        %v2716 = vld [vmem:[#allocation3 + $0xd0] sm:$0xff]
        %v2717 = vld [vmem:[#allocation3 + $0xd8] sm:$0xff]
        %v2718 = vld [vmem:[#allocation3 + $0xe0] sm:$0xff]
        %v2719 = vld [vmem:[#allocation3 + $0xe8] sm:$0xff]
        %v2720 = vld [vmem:[#allocation3 + $0xf0] sm:$0xff]
        %v2721 = vld [vmem:[#allocation3 + $0xf8] sm:$0xff]
        %v2726 = vunpack.c.l.b16 %v2686
        %v2727 = vunpack.c.h.b16 %v2686
        %v2728 = vunpack.c.l.b16 %v2687
        %v2729 = vunpack.c.h.b16 %v2687
        %v2730 = vunpack.c.l.b16 %v2688
        %v2731 = vunpack.c.h.b16 %v2688
        %v2732 = vunpack.c.l.b16 %v2689
        %v2733 = vunpack.c.h.b16 %v2689
        %v2734 = vpack.c.b16 %v2728, %v2726
        %v2735 = vpack.c.b16 %v2729, %v2727
        %v2736 = vpack.c.b16 %v2732, %v2730
        %v2737 = vpack.c.b16 %v2733, %v2731
        %v2774 = vunpack.c.l.b16 %v2690
        %v2775 = vunpack.c.h.b16 %v2690
        %v2776 = vunpack.c.l.b16 %v2691
        %v2777 = vunpack.c.h.b16 %v2691
        %v2778 = vunpack.c.l.b16 %v2692
        %v2779 = vunpack.c.h.b16 %v2692
        %v2780 = vunpack.c.l.b16 %v2693
        %v2781 = vunpack.c.h.b16 %v2693
        %v2782 = vunpack.c.l.b16 %v2694
        %v2783 = vunpack.c.h.b16 %v2694
        %v2784 = vunpack.c.l.b16 %v2695
        %v2785 = vunpack.c.h.b16 %v2695
        %v2786 = vunpack.c.l.b16 %v2696
        %v2787 = vunpack.c.h.b16 %v2696
        %v2788 = vunpack.c.l.b16 %v2697
        %v2789 = vunpack.c.h.b16 %v2697
        %v2790 = vunpack.c.l.b16 %v2698
        %v2791 = vunpack.c.h.b16 %v2698
        %v2792 = vunpack.c.l.b16 %v2699
        %v2793 = vunpack.c.h.b16 %v2699
        %v2794 = vunpack.c.l.b16 %v2700
        %v2795 = vunpack.c.h.b16 %v2700
        %v2796 = vunpack.c.l.b16 %v2701
        %v2797 = vunpack.c.h.b16 %v2701
        %v2798 = vunpack.c.l.b16 %v2702
        %v2799 = vunpack.c.h.b16 %v2702
        %v2800 = vunpack.c.l.b16 %v2703
        %v2801 = vunpack.c.h.b16 %v2703
        %v2802 = vunpack.c.l.b16 %v2704
        %v2803 = vunpack.c.h.b16 %v2704
        %v2804 = vunpack.c.l.b16 %v2705
        %v2805 = vunpack.c.h.b16 %v2705
        %v2806 = vunpack.c.l.b16 %v2706
        %v2807 = vunpack.c.h.b16 %v2706
        %v2808 = vunpack.c.l.b16 %v2707
        %v2809 = vunpack.c.h.b16 %v2707
        %v2810 = vunpack.c.l.b16 %v2708
        %v2811 = vunpack.c.h.b16 %v2708
        %v2812 = vunpack.c.l.b16 %v2709
        %v2813 = vunpack.c.h.b16 %v2709
        %v2814 = vunpack.c.l.b16 %v2710
        %v2815 = vunpack.c.h.b16 %v2710
        %v2816 = vunpack.c.l.b16 %v2711
        %v2817 = vunpack.c.h.b16 %v2711
        %v2818 = vunpack.c.l.b16 %v2712
        %v2819 = vunpack.c.h.b16 %v2712
        %v2820 = vunpack.c.l.b16 %v2713
        %v2821 = vunpack.c.h.b16 %v2713
        %v2822 = vunpack.c.l.b16 %v2714
        %v2823 = vunpack.c.h.b16 %v2714
        %v2824 = vunpack.c.l.b16 %v2715
        %v2825 = vunpack.c.h.b16 %v2715
        %v2826 = vunpack.c.l.b16 %v2716
        %v2827 = vunpack.c.h.b16 %v2716
        %v2828 = vunpack.c.l.b16 %v2717
        %v2829 = vunpack.c.h.b16 %v2717
        %v2830 = vunpack.c.l.b16 %v2718
        %v2831 = vunpack.c.h.b16 %v2718
        %v2832 = vunpack.c.l.b16 %v2719
        %v2833 = vunpack.c.h.b16 %v2719
        %v2834 = vunpack.c.l.b16 %v2720
        %v2835 = vunpack.c.h.b16 %v2720
        %v2836 = vunpack.c.l.b16 %v2721
        %v2837 = vunpack.c.h.b16 %v2721
        %v2838 = vpack.c.b16 %v2776, %v2774
        %v2839 = vpack.c.b16 %v2777, %v2775
        %v2840 = vpack.c.b16 %v2780, %v2778
        %v2841 = vpack.c.b16 %v2781, %v2779
        %v2842 = vpack.c.b16 %v2784, %v2782
        %v2843 = vpack.c.b16 %v2785, %v2783
        %v2844 = vpack.c.b16 %v2788, %v2786
        %v2845 = vpack.c.b16 %v2789, %v2787
        %v2846 = vpack.c.b16 %v2792, %v2790
        %v2847 = vpack.c.b16 %v2793, %v2791
        %v2848 = vpack.c.b16 %v2796, %v2794
        %v2849 = vpack.c.b16 %v2797, %v2795
        %v2850 = vpack.c.b16 %v2800, %v2798
        %v2851 = vpack.c.b16 %v2801, %v2799
        %v2852 = vpack.c.b16 %v2804, %v2802
        %v2853 = vpack.c.b16 %v2805, %v2803
        %v2854 = vpack.c.b16 %v2808, %v2806
        %v2855 = vpack.c.b16 %v2809, %v2807
        %v2856 = vpack.c.b16 %v2812, %v2810
        %v2857 = vpack.c.b16 %v2813, %v2811
        %v2858 = vpack.c.b16 %v2816, %v2814
        %v2859 = vpack.c.b16 %v2817, %v2815
        %v2860 = vpack.c.b16 %v2820, %v2818
        %v2861 = vpack.c.b16 %v2821, %v2819
        %v2862 = vpack.c.b16 %v2824, %v2822
        %v2863 = vpack.c.b16 %v2825, %v2823
        %v2864 = vpack.c.b16 %v2828, %v2826
        %v2865 = vpack.c.b16 %v2829, %v2827
        %v2866 = vpack.c.b16 %v2832, %v2830
        %v2867 = vpack.c.b16 %v2833, %v2831
        %v2868 = vpack.c.b16 %v2836, %v2834
        %v2869 = vpack.c.b16 %v2837, %v2835
        %2902 = vmatprep.subr.bf16.mxu0 %v2853
        %2903 = vmatpush1.bf16.xpose.msra.mxu0 %v2852
        %2904 = vmatprep.subr.bf16.mxu0 %v2851
        %2905 = vmatpush1.bf16.xpose.msra.mxu0 %v2850
        %2906 = vmatprep.subr.bf16.mxu0 %v2849
        %2907 = vmatpush1.bf16.xpose.msra.mxu0 %v2848
        %2908 = vmatprep.subr.bf16.mxu0 %v2847
        %2909 = vmatpush1.bf16.xpose.msra.mxu0 %v2846
        %2910 = vmatprep.subr.bf16.mxu0 %v2845
        %2911 = vmatpush1.bf16.xpose.msra.mxu0 %v2844
        %2912 = vmatprep.subr.bf16.mxu0 %v2843
        %2913 = vmatpush1.bf16.xpose.msra.mxu0 %v2842
        %2914 = vmatprep.subr.bf16.mxu0 %v2841
        %2915 = vmatpush1.bf16.xpose.msra.mxu0 %v2840
        %2916 = vmatprep.subr.bf16.mxu0 %v2839
        %2917 = vmatpush1.bf16.xpose.msra.mxu0 %v2838
        %2918 = vmatprep.subr.bf16.mxu0 %v2869
        %2919 = vmatpush2.bf16.xpose.msra.mxu0 %v2868
        %2920 = vmatprep.subr.bf16.mxu0 %v2867
        %2921 = vmatpush2.bf16.xpose.msra.mxu0 %v2866
        %2922 = vmatprep.subr.bf16.mxu0 %v2865
        %2923 = vmatpush2.bf16.xpose.msra.mxu0 %v2864
        %2924 = vmatprep.subr.bf16.mxu0 %v2863
        %2925 = vmatpush2.bf16.xpose.msra.mxu0 %v2862
        %2926 = vmatprep.subr.bf16.mxu0 %v2861
        %2927 = vmatpush2.bf16.xpose.msra.mxu0 %v2860
        %2928 = vmatprep.subr.bf16.mxu0 %v2859
        %2929 = vmatpush2.bf16.xpose.msra.mxu0 %v2858
        %2930 = vmatprep.subr.bf16.mxu0 %v2857
        %2931 = vmatpush2.bf16.xpose.msra.mxu0 %v2856
        %2932 = vmatprep.subr.bf16.mxu0 %v2855
        %2933 = vmatpush2.bf16.xpose.msra.mxu0 %v2854
        %2934 = vmatprep.mubr.bf16.mxu0 %v2735
        %2935 = vmatmul.mubr.bf16.gmra.mxu0 %v2734
        %v2936 = vpop.f32.mrf.mxu0
        %v2937 = vadd.f32 0.0, %v2936
        %v2938 = vpop.f32.mrf.mxu0
        %v2939 = vadd.f32 0.0, %v2938
        %v2940 = vpop.f32.mrf.mxu0
        %v2941 = vadd.f32 0.0, %v2940
        %v2942 = vpop.f32.mrf.mxu0
        %v2943 = vadd.f32 0.0, %v2942
        %2944 = vmatprep.mubr.bf16.mxu0 %v2737
        %2945 = vmatmul.mubr.bf16.gmra.mxu0 %v2736
        %v2946 = vpop.f32.mrf.mxu0
        %v2947 = vadd.f32 0.0, %v2946
        %v2948 = vpop.f32.mrf.mxu0
        %v2949 = vadd.f32 0.0, %v2948
        %v2950 = vpop.f32.mrf.mxu0
        %v2951 = vadd.f32 0.0, %v2950
        %v2952 = vpop.f32.mrf.mxu0
        %v2953 = vadd.f32 0.0, %v2952
        %2954 = vdwg.mxu0
        %v2955 = vadd.f32 %v2678, %v2937
        %v2956 = vadd.f32 %v2679, %v2939
        %v2957 = vadd.f32 %v2680, %v2941
        %v2958 = vadd.f32 %v2681, %v2943
        %v2959 = vadd.f32 %v2682, %v2947
        %v2960 = vadd.f32 %v2683, %v2949
        %v2961 = vadd.f32 %v2684, %v2951
        %v2962 = vadd.f32 %v2685, %v2953
        %2963 = vst [vmem:[#allocation2] sm:$0xff] %v2955
        %2964 = vst [vmem:[#allocation2 + $0x8] sm:$0xff] %v2956
        %2965 = vst [vmem:[#allocation2 + $0x10] sm:$0xff] %v2957
        %2966 = vst [vmem:[#allocation2 + $0x18] sm:$0xff] %v2958
        %2967 = vst [vmem:[#allocation2 + $0x20] sm:$0xff] %v2959
        %2968 = vst [vmem:[#allocation2 + $0x28] sm:$0xff] %v2960
        %2969 = vst [vmem:[#allocation2 + $0x30] sm:$0xff] %v2961
        %2970 = vst [vmem:[#allocation2 + $0x38] sm:$0xff] %v2962
        %p2971 = scmp.eq.s32.totalorder %s31, 1
        // Predicated region
        $region113: #{tpu_custom_call.1} parent=31 // pred_check
          %p2972 = pneg %p2971
        $region114: #{tpu_custom_call.1} parent=31 // pred_check_branch
          %2974 = sbr.rel (%p2972) target = $region116
        $region115: #{tpu_custom_call.1} parent=31 // pred_region
          %v2975 = vld [vmem:[#allocation2] sm:$0xff]
          %v2976 = vld [vmem:[#allocation2 + $0x8] sm:$0xff]
          %v2977 = vld [vmem:[#allocation2 + $0x10] sm:$0xff]
          %v2978 = vld [vmem:[#allocation2 + $0x18] sm:$0xff]
          %v2979 = vld [vmem:[#allocation2 + $0x20] sm:$0xff]
          %v2980 = vld [vmem:[#allocation2 + $0x28] sm:$0xff]
          %v2981 = vld [vmem:[#allocation2 + $0x30] sm:$0xff]
          %v2982 = vld [vmem:[#allocation2 + $0x38] sm:$0xff]
          %v2983 = vpack.c.bf16 %v2977, %v2975
          %v2984 = vpack.c.bf16 %v2978, %v2976
          %v2985 = vpack.c.bf16 %v2981, %v2979
          %v2986 = vpack.c.bf16 %v2982, %v2980
          %v2991 = vunpack.c.l.b16 %v2983
          %v2992 = vunpack.c.l.b16 %v2984
          %v2993 = vunpack.c.h.b16 %v2983
          %v2994 = vunpack.c.h.b16 %v2984
          %v2995 = vunpack.c.l.b16 %v2985
          %v2996 = vunpack.c.l.b16 %v2986
          %v2997 = vunpack.c.h.b16 %v2985
          %v2998 = vunpack.c.h.b16 %v2986
          %v2999 = vpack.c.b16 %v2992, %v2991
          %v3000 = vpack.c.b16 %v2994, %v2993
          %v3001 = vpack.c.b16 %v2996, %v2995
          %v3002 = vpack.c.b16 %v2998, %v2997
          %3007 = vst [vmem:[%s273] sm:$0xff] %v2999
          %3008 = vst [vmem:[%s273 + $0x8] sm:$0xff] %v3000
          %3009 = vst [vmem:[%s273 + $0x10] sm:$0xff] %v3001
          %3010 = vst [vmem:[%s273 + $0x18] sm:$0xff] %v3002
        $region116: #{tpu_custom_call.1} parent=31 // pred_fallthru
          _
        %s3011 = sand.u32 %s130, 1
        %s3012 = scalar_lea.sflag [#allocation6], %s3011
        %s3013 = sand.u32 %s130, 1
        %s3014 = smul.addr %s3013, 32
        %s3015 = scalar_lea.vmem [#allocation11], %s3014
        // Predicated region
        $region117: #{tpu_custom_call.1} parent=31 // pred_check
          %p3016 = pneg %p140
        $region118: #{tpu_custom_call.1} parent=31 // pred_check_branch
          %3018 = sbr.rel (%p3016) target = $region120
        $region119: #{tpu_custom_call.1} parent=31 // pred_region
          %s3019 = smul.u32 4, %s29
          %s3020 = smul.u32 2, %s30
          %s3022 = ssub.s32 512, 512
          %3023 = vsyncadd %s3012, %s3022
          %s3024 = smul.addr %s3019, 4
          %s3025 = sadd.s32 %s3020, %s3024
          %s3026 = smul.addr %s3025, 64
          %s3027 = scalar_lea.hbm %s3, %s3026
          %s3028 = sshll.u32 %s3015, 4
          %s3029 = int_to_ptr.vmem [resolvable:$true] %s3028
          %3034 = dma.vmem_to_hbm [thread:$0]  %s3029, 512, %s3027, %s3012, 128, 256, 8
        $region120: #{tpu_custom_call.1} parent=31 // pred_fallthru
          _
      $region32: #{tpu_custom_call.1} parent=5 // pred_fallthru
        _
      %p3035 = scmp.le.s32.totalorder 2, %s19
      // Predicated region
      $region121: #{tpu_custom_call.1} parent=5 // pred_check
        %p3036 = pneg %p3035
      $region122: #{tpu_custom_call.1} parent=5 // pred_check_branch
        %3038 = sbr.rel (%p3036) target = $region124
      $region123: #{tpu_custom_call.1} parent=5 // pred_region
        %s3039 = ssub.s32 %s19, 2
        // Predicated region
        $region125: #{tpu_custom_call.1} parent=123 // pred_check
          %p3040 = pneg %p146
        $region126: #{tpu_custom_call.1} parent=123 // pred_check_branch
          %3042 = sbr.rel (%p3040) target = $region128
        $region127: #{tpu_custom_call.1} parent=123 // pred_region
          %s3043 = sand.u32 %s131, 1
          %s3044 = scalar_lea.sflag [#allocation6], %s3043
          %s3045 = sand.u32 %s131, 1
          %s3046 = smul.addr %s3045, 32
          %s3047 = scalar_lea.vmem [#allocation11], %s3046
          %3048 = dma.done %s3044, 512
        $region128: #{tpu_custom_call.1} parent=123 // pred_fallthru
          _
      $region124: #{tpu_custom_call.1} parent=5 // pred_fallthru
        _
    $region6: #{tpu_custom_call.1} parent=1 // loop_footer
      %s23 = sadd.s32 1, %s19
    $region7: #{tpu_custom_call.1} parent=1 // loop_footer_branch
      %18 = sbr.rel target = $region3
    $region8: #{tpu_custom_call.1} parent=1 // loop_exit
      _
    %3049 = vsyncpa [#allocation5], 1
    %s3050 = scalar_lea.sflag [#allocation5], 1
    %3051 = vsyncpa %s3050, 1
    %3052 = vsyncpa [#allocation9], 1
    %s3053 = scalar_lea.sflag [#allocation9], 1
    %3054 = vsyncpa %s3053, 1
    %3055 = vsyncpa [#allocation6], 1
    %s3056 = scalar_lea.sflag [#allocation6], 1
    %3057 = vsyncpa %s3056, 1
    %3058 = vsyncpa [#allocation7], 1
    %s3059 = scalar_lea.sflag [#allocation7], 1
    %3060 = vsyncpa %s3059, 1

</llo_original>
